<compile_context>
chip_gen: v7x
topology: tpu7x:2x2x1
jax: 0.10.0
libtpu: 0.0.40
codegen_flags: <defaults>
</compile_context>

<pallas_src>
import jax
import jax.numpy as jnp
from jax import lax
from jax.experimental import pallas as pl
from jax.experimental.pallas import tpu as pltpu


# ----------------------------------------------------------------------------
# Pallas kernel: whole forward pass (folded conv -> maxpool(4) -> relu(fc1) ->
# conv_out1(stride 2) -> relu(fc2) -> conv_out2(stride 2) -> fc3 -> softmax)
# ----------------------------------------------------------------------------
def gcm_kernel(xw_ref, taps_ref, rmat_ref, w1e_ref, bias_ref, w2e_ref, w3e_ref,
               out_ref):
    # xw_ref   : (6, B, Pp) f32   im2col windows of the padded input (zero-padded to Pp)
    # taps_ref : (C, 4)     f32   per-output-channel folded conv taps [a0, a1, a2, beff]
    # rmat_ref : (B, B*C)   f32   conv_out1 channel reduction (block-diag of its weights)
    # w1e_ref  : (Pp, 128)  bf16  fc1 weight^T, even output cols only, K zero-padded
    # bias_ref : (3, 128)   f32   row0 = fc1 bias (even cols),
    #                             row1[:64] = fc2 bias (even cols) + folded conv_out1 bias,
    #                             row2[:2]  = fc3 bias + folded conv_out2 bias
    # w2e_ref  : (128, 64)  f32   fc2 weight^T, even output cols only
    # w3e_ref  : (64, 2)    f32   fc3 weight^T scaled by conv_out2 weight
    # out_ref  : (B, 2)     f32   softmax probabilities
    C = taps_ref.shape[0]
    B = xw_ref.shape[1]
    Pp = xw_ref.shape[2]
    n2 = w2e_ref.shape[1]
    n3 = w3e_ref.shape[1]

    taps = taps_ref[...]                                   # (C, 4)
    a0 = taps[:, 0:1]
    a1 = taps[:, 1:2]
    a2 = taps[:, 2:3]
    beff = taps[:, 3:4]

    xw = xw_ref[...]                                       # (6, B, Pp)

    # ---- folded 3-tap conv + MaxPool1d(4), vectorized over all C channels ---
    # (channel axis stacked into the sublane dimension; row order is (b, c)).
    pooled_parts = []
    for b in range(B):                                     # tiny static batch loop
        xb = [jnp.broadcast_to(xw[j, b:b + 1, :], (C, Pp)) for j in range(6)]
        pooled_b = None
        for m in range(4):                                 # 4 positions of each pool window
            y = a0 * xb[m] + a1 * xb[m + 1] + a2 * xb[m + 2] + beff
            pooled_b = y if pooled_b is None else jnp.maximum(pooled_b, y)
        pooled_parts.append(pooled_b)                      # (C, Pp)
    pooled = jnp.concatenate(pooled_parts, axis=0)         # (B*C, Pp)

    # ---- fc1 (even cols only) + ReLU: ONE channel-stacked bf16 matmul -------
    act = jnp.dot(pooled.astype(jnp.bfloat16), w1e_ref[...],
                  preferred_element_type=jnp.float32)
    act = jnp.maximum(act + bias_ref[0:1, :], 0.0)         # (B*C, 128)

    # ---- conv_out1: stride-2 already in w1e; channel mix + batch de-stack ---
    # (its bias is folded into the fc2 bias row of bias_ref)
    r = jnp.dot(rmat_ref[...], act, preferred_element_type=jnp.float32)   # (B, 128)

    # ---- fc2 (even cols only) + ReLU ----------------------------------------
    y2 = jnp.dot(r, w2e_ref[...], preferred_element_type=jnp.float32)
    y2 = jnp.maximum(y2 + bias_ref[1:2, :n2], 0.0)         # (B, 64)

    # ---- conv_out2 folded into fc3 weight/bias; fc3 + softmax ----------------
    logits = (jnp.dot(y2, w3e_ref[...], preferred_element_type=jnp.float32)
              + bias_ref[2:3, :n3])                        # (B, 2)
    mx = jnp.max(logits, axis=-1, keepdims=True)
    e = jnp.exp(logits - mx)
    out_ref[...] = e / jnp.sum(e, axis=-1, keepdims=True)


# ----------------------------------------------------------------------------
# Wrapper: layout prep + parameter algebra (data independent), then pallas_call
# ----------------------------------------------------------------------------
def gcm_forward(x, p):
    f32 = jnp.float32
    B, L = x.shape
    P = L // 4                                             # 2000
    Pp = ((P + 127) // 128) * 128                          # 2048 (lane aligned)

    # ---- im2col of the padded length axis (layout plumbing) -----------------
    # xw[j, b, p] = x_pad[b, 4p + j], j = 0..5 (Conv1d padding=1 -> length L+2)
    xq = jnp.pad(x.astype(f32), ((0, 0), (1, 1)))          # (B, L+2)
    xw = jnp.stack([xq[:, j: j + 4 * (P - 1) + 1: 4] for j in range(6)], axis=0)
    xw = jnp.pad(xw, ((0, 0), (0, 0), (0, Pp - P)))        # (6, B, Pp)

    # ---- parameter algebra (independent of x) --------------------------------
    w1 = p["conv_in1_w"][:, 0, 0]                          # (10,)
    b1 = p["conv_in1_b"]                                   # (10,)
    W2 = p["conv_in2_w"]                                   # (10, 10, 3)
    b2 = p["conv_in2_b"]                                   # (10,)
    C = W2.shape[0]

    # fold conv_in1 (1x1) into conv_in2's 3 taps (exact by linearity)
    a = jnp.einsum("cik,i->ck", W2, w1)                    # (10, 3)
    beff = b2 + jnp.einsum("cik,i->c", W2, b1)             # (10,)
    taps = jnp.concatenate([a, beff[:, None]], axis=1).astype(f32)   # (10, 4)

    co1_w = p["co1_w"][0, :, 0]                            # (10,)
    co1_b = p["co1_b"][0]
    co2_w = p["co2_w"][0, 0, 0]
    co2_b = p["co2_b"][0]

    # conv_out1 channel reduction as a block-diagonal (B, B*C) matrix
    rmat = jnp.kron(jnp.eye(B, dtype=f32), co1_w[None, :].astype(f32))   # (B, B*C)

    # fc1: only even output columns reach conv_out1 (kernel 1, stride 2)
    w1e = p["fc1_w"].T[:, ::2]                             # (2000, 128)
    w1e = jnp.pad(w1e, ((0, Pp - P), (0, 0))).astype(jnp.bfloat16)   # (Pp, 128)
    bfc1e = p["fc1_b"][::2].astype(f32)                    # (128,)

    # fc2: only even output columns reach conv_out2; fold conv_out1 bias in
    w2e = p["fc2_w"].T[:, ::2].astype(f32)                 # (128, 64)
    bfc2e = p["fc2_b"][::2] + co1_b * jnp.sum(w2e, axis=0)          # (64,)

    # fc3: fold conv_out2 scale / bias in
    w3t = p["fc3_w"].T.astype(f32)                         # (64, 2)
    w3e = co2_w * w3t
    bfc3e = p["fc3_b"] + co2_b * jnp.sum(w3t, axis=0)      # (2,)

    n1 = w1e.shape[1]                                      # 128
    bias = jnp.zeros((3, n1), f32)
    bias = bias.at[0, :].set(bfc1e)
    bias = bias.at[1, :bfc2e.shape[0]].set(bfc2e)
    bias = bias.at[2, :bfc3e.shape[0]].set(bfc3e)

    vmem = pl.BlockSpec(memory_space=pltpu.MemorySpace.VMEM)

    out = pl.pallas_call(
        gcm_kernel,
        out_shape=jax.ShapeDtypeStruct((B, 2), f32),
        in_specs=[vmem] * 7,
        out_specs=vmem,
    )(xw, taps, rmat, w1e, bias, w2e, w3e)

    # torch: .squeeze() on (B, 1, 2); the size-1 dim is already gone here.
    return jnp.squeeze(out)


# ----------------------------------------------------------------------------
# Pure-JAX reference (mirrors the PyTorch forward) for validation
# ----------------------------------------------------------------------------
def _conv1d(x, w, b, stride=1, padding=0):
    out = lax.conv_general_dilated(x, w, (stride,), [(padding, padding)],
                                   dimension_numbers=("NCH", "OIH", "NCH"))
    return out + b[None, :, None]


def gcm_reference(x, p):
    B, L = x.shape
    h = _conv1d(x[:, None, :], p["conv_in1_w"], p["conv_in1_b"], 1, 1)  # (B,10,L+2)
    h = _conv1d(h, p["conv_in2_w"], p["conv_in2_b"], 1, 0)              # (B,10,L)
    h = h.reshape(B, 10, L // 4, 4).max(axis=-1)                        # (B,10,2000)
    h = jax.nn.relu(h @ p["fc1_w"].T + p["fc1_b"])                      # (B,10,256)
    h = _conv1d(h, p["co1_w"], p["co1_b"], 2, 0)                        # (B,1,128)
    h = jax.nn.relu(h @ p["fc2_w"].T + p["fc2_b"])                      # (B,1,128)
    h = _conv1d(h, p["co2_w"], p["co2_b"], 2, 0)                        # (B,1,64)
    h = h @ p["fc3_w"].T + p["fc3_b"]                                   # (B,1,2)
    return jnp.squeeze(jax.nn.softmax(h, axis=-1))


# ----------------------------------------------------------------------------
def init_params(key):
    ks = jax.random.split(key, 14)

    def nrm(k, shape, scale):
        return scale * jax.random.normal(k, shape, jnp.float32)

    return dict(
        conv_in1_w=nrm(ks[0], (10, 1, 1), 0.5),
        conv_in1_b=nrm(ks[1], (10,), 0.1),
        conv_in2_w=nrm(ks[2], (10, 10, 3), 0.3),
        conv_in2_b=nrm(ks[3], (10,), 0.1),
        fc1_w=nrm(ks[4], (256, 2000), (2.0 / 2000) ** 0.5),   # kaiming-like
        fc1_b=nrm(ks[5], (256,), 0.05),
        fc2_w=nrm(ks[6], (128, 128), (2.0 / 128) ** 0.5),     # kaiming-like
        fc2_b=nrm(ks[7], (128,), 0.05),
        co1_w=nrm(ks[8], (1, 10, 1), 0.3),
        co1_b=nrm(ks[9], (1,), 0.1),
        co2_w=nrm(ks[10], (1, 1, 1), 0.5),
        co2_b=nrm(ks[11], (1,), 0.1),
        fc3_w=nrm(ks[12], (2, 64), (1.0 / 64) ** 0.5),
        fc3_b=nrm(ks[13], (2,), 0.05),
    )


if __name__ == "__main__":
    key = jax.random.PRNGKey(0)
    k_x, k_p = jax.random.split(key)

    B, L = 2, 8000                  # fc1 in_features=2000 => L = 4*2000
    x = jax.random.normal(k_x, (B, L), jnp.float32)
    params = init_params(k_p)

    out = jax.block_until_ready(gcm_forward(x, params))
    assert out.shape == (B, 2), out.shape

    ref = jax.block_until_ready(gcm_reference(x, params))
    assert jnp.allclose(out, ref, rtol=2e-2, atol=2e-2), (out, ref)

    print("KERNEL_OK")
</pallas_src>

<mosaic_0001>
module attributes {stable_mosaic.version = 11 : i64} {
  func.func @gcm_kernel(%arg0: memref<6x2x2048xf32, #tpu.memory_space<vmem>>, %arg1: memref<10x4xf32, #tpu.memory_space<vmem>>, %arg2: memref<2x20xf32, #tpu.memory_space<vmem>>, %arg3: memref<2048x128xbf16, #tpu.memory_space<vmem>>, %arg4: memref<3x128xf32, #tpu.memory_space<vmem>>, %arg5: memref<128x64xf32, #tpu.memory_space<vmem>>, %arg6: memref<64x2xf32, #tpu.memory_space<vmem>>, %arg7: memref<2x2xf32, #tpu.memory_space<vmem>>) attributes {dimension_semantics = [], scalar_prefetch = 0 : i64, scratch_operands = 0 : i64, tpu.core_type = #tpu.core_type<tc>} {
    %c0 = arith.constant 0 : index
    %c0_0 = arith.constant 0 : index
    %0 = vector.load %arg1[%c0, %c0_0] : memref<10x4xf32, #tpu.memory_space<vmem>>, vector<10x4xf32>
    %1 = vector.extract_strided_slice %0 {offsets = [0, 0], sizes = [10, 1], strides = [1, 1]} : vector<10x4xf32> to vector<10x1xf32>
    %2 = vector.extract_strided_slice %0 {offsets = [0, 1], sizes = [10, 1], strides = [1, 1]} : vector<10x4xf32> to vector<10x1xf32>
    %3 = vector.extract_strided_slice %0 {offsets = [0, 2], sizes = [10, 1], strides = [1, 1]} : vector<10x4xf32> to vector<10x1xf32>
    %4 = vector.extract_strided_slice %0 {offsets = [0, 3], sizes = [10, 1], strides = [1, 1]} : vector<10x4xf32> to vector<10x1xf32>
    %c0_1 = arith.constant 0 : index
    %c0_2 = arith.constant 0 : index
    %c0_3 = arith.constant 0 : index
    %5 = vector.load %arg0[%c0_1, %c0_2, %c0_3] : memref<6x2x2048xf32, #tpu.memory_space<vmem>>, vector<6x2x2048xf32>
    %6 = vector.extract_strided_slice %5 {offsets = [0, 0, 0], sizes = [1, 1, 2048], strides = [1, 1, 1]} : vector<6x2x2048xf32> to vector<1x1x2048xf32>
    %7 = vector.shape_cast %6 : vector<1x1x2048xf32> to vector<1x2048xf32>
    %8 = vector.shape_cast %7 : vector<1x2048xf32> to vector<1x2048xf32>
    %9 = vector.broadcast %8 : vector<1x2048xf32> to vector<10x2048xf32>
    %10 = vector.extract_strided_slice %5 {offsets = [1, 0, 0], sizes = [1, 1, 2048], strides = [1, 1, 1]} : vector<6x2x2048xf32> to vector<1x1x2048xf32>
    %11 = vector.shape_cast %10 : vector<1x1x2048xf32> to vector<1x2048xf32>
    %12 = vector.shape_cast %11 : vector<1x2048xf32> to vector<1x2048xf32>
    %13 = vector.broadcast %12 : vector<1x2048xf32> to vector<10x2048xf32>
    %14 = vector.extract_strided_slice %5 {offsets = [2, 0, 0], sizes = [1, 1, 2048], strides = [1, 1, 1]} : vector<6x2x2048xf32> to vector<1x1x2048xf32>
    %15 = vector.shape_cast %14 : vector<1x1x2048xf32> to vector<1x2048xf32>
    %16 = vector.shape_cast %15 : vector<1x2048xf32> to vector<1x2048xf32>
    %17 = vector.broadcast %16 : vector<1x2048xf32> to vector<10x2048xf32>
    %18 = vector.extract_strided_slice %5 {offsets = [3, 0, 0], sizes = [1, 1, 2048], strides = [1, 1, 1]} : vector<6x2x2048xf32> to vector<1x1x2048xf32>
    %19 = vector.shape_cast %18 : vector<1x1x2048xf32> to vector<1x2048xf32>
    %20 = vector.shape_cast %19 : vector<1x2048xf32> to vector<1x2048xf32>
    %21 = vector.broadcast %20 : vector<1x2048xf32> to vector<10x2048xf32>
    %22 = vector.extract_strided_slice %5 {offsets = [4, 0, 0], sizes = [1, 1, 2048], strides = [1, 1, 1]} : vector<6x2x2048xf32> to vector<1x1x2048xf32>
    %23 = vector.shape_cast %22 : vector<1x1x2048xf32> to vector<1x2048xf32>
    %24 = vector.shape_cast %23 : vector<1x2048xf32> to vector<1x2048xf32>
    %25 = vector.broadcast %24 : vector<1x2048xf32> to vector<10x2048xf32>
    %26 = vector.extract_strided_slice %5 {offsets = [5, 0, 0], sizes = [1, 1, 2048], strides = [1, 1, 1]} : vector<6x2x2048xf32> to vector<1x1x2048xf32>
    %27 = vector.shape_cast %26 : vector<1x1x2048xf32> to vector<1x2048xf32>
    %28 = vector.shape_cast %27 : vector<1x2048xf32> to vector<1x2048xf32>
    %29 = vector.broadcast %28 : vector<1x2048xf32> to vector<10x2048xf32>
    %30 = vector.broadcast %1 : vector<10x1xf32> to vector<10x2048xf32>
    %31 = arith.mulf %30, %9 : vector<10x2048xf32>
    %32 = vector.broadcast %2 : vector<10x1xf32> to vector<10x2048xf32>
    %33 = arith.mulf %32, %13 : vector<10x2048xf32>
    %34 = arith.addf %31, %33 : vector<10x2048xf32>
    %35 = vector.broadcast %3 : vector<10x1xf32> to vector<10x2048xf32>
    %36 = arith.mulf %35, %17 : vector<10x2048xf32>
    %37 = arith.addf %34, %36 : vector<10x2048xf32>
    %38 = vector.broadcast %4 : vector<10x1xf32> to vector<10x2048xf32>
    %39 = arith.addf %37, %38 : vector<10x2048xf32>
    %40 = vector.broadcast %1 : vector<10x1xf32> to vector<10x2048xf32>
    %41 = arith.mulf %40, %13 : vector<10x2048xf32>
    %42 = vector.broadcast %2 : vector<10x1xf32> to vector<10x2048xf32>
    %43 = arith.mulf %42, %17 : vector<10x2048xf32>
    %44 = arith.addf %41, %43 : vector<10x2048xf32>
    %45 = vector.broadcast %3 : vector<10x1xf32> to vector<10x2048xf32>
    %46 = arith.mulf %45, %21 : vector<10x2048xf32>
    %47 = arith.addf %44, %46 : vector<10x2048xf32>
    %48 = vector.broadcast %4 : vector<10x1xf32> to vector<10x2048xf32>
    %49 = arith.addf %47, %48 : vector<10x2048xf32>
    %50 = arith.maximumf %39, %49 : vector<10x2048xf32>
    %51 = vector.broadcast %1 : vector<10x1xf32> to vector<10x2048xf32>
    %52 = arith.mulf %51, %17 : vector<10x2048xf32>
    %53 = vector.broadcast %2 : vector<10x1xf32> to vector<10x2048xf32>
    %54 = arith.mulf %53, %21 : vector<10x2048xf32>
    %55 = arith.addf %52, %54 : vector<10x2048xf32>
    %56 = vector.broadcast %3 : vector<10x1xf32> to vector<10x2048xf32>
    %57 = arith.mulf %56, %25 : vector<10x2048xf32>
    %58 = arith.addf %55, %57 : vector<10x2048xf32>
    %59 = vector.broadcast %4 : vector<10x1xf32> to vector<10x2048xf32>
    %60 = arith.addf %58, %59 : vector<10x2048xf32>
    %61 = arith.maximumf %50, %60 : vector<10x2048xf32>
    %62 = vector.broadcast %1 : vector<10x1xf32> to vector<10x2048xf32>
    %63 = arith.mulf %62, %21 : vector<10x2048xf32>
    %64 = vector.broadcast %2 : vector<10x1xf32> to vector<10x2048xf32>
    %65 = arith.mulf %64, %25 : vector<10x2048xf32>
    %66 = arith.addf %63, %65 : vector<10x2048xf32>
    %67 = vector.broadcast %3 : vector<10x1xf32> to vector<10x2048xf32>
    %68 = arith.mulf %67, %29 : vector<10x2048xf32>
    %69 = arith.addf %66, %68 : vector<10x2048xf32>
    %70 = vector.broadcast %4 : vector<10x1xf32> to vector<10x2048xf32>
    %71 = arith.addf %69, %70 : vector<10x2048xf32>
    %72 = arith.maximumf %61, %71 : vector<10x2048xf32>
    %73 = vector.extract_strided_slice %5 {offsets = [0, 1, 0], sizes = [1, 1, 2048], strides = [1, 1, 1]} : vector<6x2x2048xf32> to vector<1x1x2048xf32>
    %74 = vector.shape_cast %73 : vector<1x1x2048xf32> to vector<1x2048xf32>
    %75 = vector.shape_cast %74 : vector<1x2048xf32> to vector<1x2048xf32>
    %76 = vector.broadcast %75 : vector<1x2048xf32> to vector<10x2048xf32>
    %77 = vector.extract_strided_slice %5 {offsets = [1, 1, 0], sizes = [1, 1, 2048], strides = [1, 1, 1]} : vector<6x2x2048xf32> to vector<1x1x2048xf32>
    %78 = vector.shape_cast %77 : vector<1x1x2048xf32> to vector<1x2048xf32>
    %79 = vector.shape_cast %78 : vector<1x2048xf32> to vector<1x2048xf32>
    %80 = vector.broadcast %79 : vector<1x2048xf32> to vector<10x2048xf32>
    %81 = vector.extract_strided_slice %5 {offsets = [2, 1, 0], sizes = [1, 1, 2048], strides = [1, 1, 1]} : vector<6x2x2048xf32> to vector<1x1x2048xf32>
    %82 = vector.shape_cast %81 : vector<1x1x2048xf32> to vector<1x2048xf32>
    %83 = vector.shape_cast %82 : vector<1x2048xf32> to vector<1x2048xf32>
    %84 = vector.broadcast %83 : vector<1x2048xf32> to vector<10x2048xf32>
    %85 = vector.extract_strided_slice %5 {offsets = [3, 1, 0], sizes = [1, 1, 2048], strides = [1, 1, 1]} : vector<6x2x2048xf32> to vector<1x1x2048xf32>
    %86 = vector.shape_cast %85 : vector<1x1x2048xf32> to vector<1x2048xf32>
    %87 = vector.shape_cast %86 : vector<1x2048xf32> to vector<1x2048xf32>
    %88 = vector.broadcast %87 : vector<1x2048xf32> to vector<10x2048xf32>
    %89 = vector.extract_strided_slice %5 {offsets = [4, 1, 0], sizes = [1, 1, 2048], strides = [1, 1, 1]} : vector<6x2x2048xf32> to vector<1x1x2048xf32>
    %90 = vector.shape_cast %89 : vector<1x1x2048xf32> to vector<1x2048xf32>
    %91 = vector.shape_cast %90 : vector<1x2048xf32> to vector<1x2048xf32>
    %92 = vector.broadcast %91 : vector<1x2048xf32> to vector<10x2048xf32>
    %93 = vector.extract_strided_slice %5 {offsets = [5, 1, 0], sizes = [1, 1, 2048], strides = [1, 1, 1]} : vector<6x2x2048xf32> to vector<1x1x2048xf32>
    %94 = vector.shape_cast %93 : vector<1x1x2048xf32> to vector<1x2048xf32>
    %95 = vector.shape_cast %94 : vector<1x2048xf32> to vector<1x2048xf32>
    %96 = vector.broadcast %95 : vector<1x2048xf32> to vector<10x2048xf32>
    %97 = vector.broadcast %1 : vector<10x1xf32> to vector<10x2048xf32>
    %98 = arith.mulf %97, %76 : vector<10x2048xf32>
    %99 = vector.broadcast %2 : vector<10x1xf32> to vector<10x2048xf32>
    %100 = arith.mulf %99, %80 : vector<10x2048xf32>
    %101 = arith.addf %98, %100 : vector<10x2048xf32>
    %102 = vector.broadcast %3 : vector<10x1xf32> to vector<10x2048xf32>
    %103 = arith.mulf %102, %84 : vector<10x2048xf32>
    %104 = arith.addf %101, %103 : vector<10x2048xf32>
    %105 = vector.broadcast %4 : vector<10x1xf32> to vector<10x2048xf32>
    %106 = arith.addf %104, %105 : vector<10x2048xf32>
    %107 = vector.broadcast %1 : vector<10x1xf32> to vector<10x2048xf32>
    %108 = arith.mulf %107, %80 : vector<10x2048xf32>
    %109 = vector.broadcast %2 : vector<10x1xf32> to vector<10x2048xf32>
    %110 = arith.mulf %109, %84 : vector<10x2048xf32>
    %111 = arith.addf %108, %110 : vector<10x2048xf32>
    %112 = vector.broadcast %3 : vector<10x1xf32> to vector<10x2048xf32>
    %113 = arith.mulf %112, %88 : vector<10x2048xf32>
    %114 = arith.addf %111, %113 : vector<10x2048xf32>
    %115 = vector.broadcast %4 : vector<10x1xf32> to vector<10x2048xf32>
    %116 = arith.addf %114, %115 : vector<10x2048xf32>
    %117 = arith.maximumf %106, %116 : vector<10x2048xf32>
    %118 = vector.broadcast %1 : vector<10x1xf32> to vector<10x2048xf32>
    %119 = arith.mulf %118, %84 : vector<10x2048xf32>
    %120 = vector.broadcast %2 : vector<10x1xf32> to vector<10x2048xf32>
    %121 = arith.mulf %120, %88 : vector<10x2048xf32>
    %122 = arith.addf %119, %121 : vector<10x2048xf32>
    %123 = vector.broadcast %3 : vector<10x1xf32> to vector<10x2048xf32>
    %124 = arith.mulf %123, %92 : vector<10x2048xf32>
    %125 = arith.addf %122, %124 : vector<10x2048xf32>
    %126 = vector.broadcast %4 : vector<10x1xf32> to vector<10x2048xf32>
    %127 = arith.addf %125, %126 : vector<10x2048xf32>
    %128 = arith.maximumf %117, %127 : vector<10x2048xf32>
    %129 = vector.broadcast %1 : vector<10x1xf32> to vector<10x2048xf32>
    %130 = arith.mulf %129, %88 : vector<10x2048xf32>
    %131 = vector.broadcast %2 : vector<10x1xf32> to vector<10x2048xf32>
    %132 = arith.mulf %131, %92 : vector<10x2048xf32>
    %133 = arith.addf %130, %132 : vector<10x2048xf32>
    %134 = vector.broadcast %3 : vector<10x1xf32> to vector<10x2048xf32>
    %135 = arith.mulf %134, %96 : vector<10x2048xf32>
    %136 = arith.addf %133, %135 : vector<10x2048xf32>
    %137 = vector.broadcast %4 : vector<10x1xf32> to vector<10x2048xf32>
    %138 = arith.addf %136, %137 : vector<10x2048xf32>
    %139 = arith.maximumf %128, %138 : vector<10x2048xf32>
    %140 = tpu.concatenate %72, %139 in 0 : vector<10x2048xf32>, vector<10x2048xf32> -> vector<20x2048xf32>
    %141 = arith.truncf %140 : vector<20x2048xf32> to vector<20x2048xbf16>
    %c0_4 = arith.constant 0 : index
    %c0_5 = arith.constant 0 : index
    %142 = vector.load %arg3[%c0_4, %c0_5] : memref<2048x128xbf16, #tpu.memory_space<vmem>>, vector<2048x128xbf16>
    %cst = arith.constant dense<0.000000e+00> : vector<20x128xf32>
    %143 = tpu.matmul %141, %142, %cst {dimension_numbers = #tpu.dot_dimension_numbers<[1], [0], [0], [1], [0, 0, 1, 1], [], []>} : vector<20x2048xbf16>, vector<2048x128xbf16>, vector<20x128xf32> -> vector<20x128xf32>
    %c0_6 = arith.constant 0 : index
    %c0_7 = arith.constant 0 : index
    %144 = vector.load %arg4[%c0_6, %c0_7] : memref<3x128xf32, #tpu.memory_space<vmem>>, vector<1x128xf32>
    %145 = vector.broadcast %144 : vector<1x128xf32> to vector<20x128xf32>
    %146 = arith.addf %143, %145 : vector<20x128xf32>
    %cst_8 = arith.constant 0.000000e+00 : f32
    %147 = vector.broadcast %cst_8 : f32 to vector<20x128xf32>
    %148 = arith.maximumf %146, %147 : vector<20x128xf32>
    %c0_9 = arith.constant 0 : index
    %c0_10 = arith.constant 0 : index
    %149 = vector.load %arg2[%c0_9, %c0_10] : memref<2x20xf32, #tpu.memory_space<vmem>>, vector<2x20xf32>
    %cst_11 = arith.constant dense<0.000000e+00> : vector<2x128xf32>
    %150 = tpu.matmul %149, %148, %cst_11 {dimension_numbers = #tpu.dot_dimension_numbers<[1], [0], [0], [1], [0, 0, 1, 1], [], []>} : vector<2x20xf32>, vector<20x128xf32>, vector<2x128xf32> -> vector<2x128xf32>
    %c0_12 = arith.constant 0 : index
    %c0_13 = arith.constant 0 : index
    %151 = vector.load %arg5[%c0_12, %c0_13] : memref<128x64xf32, #tpu.memory_space<vmem>>, vector<128x64xf32>
    %cst_14 = arith.constant dense<0.000000e+00> : vector<2x64xf32>
    %152 = tpu.matmul %150, %151, %cst_14 {dimension_numbers = #tpu.dot_dimension_numbers<[1], [0], [0], [1], [0, 0, 1, 1], [], []>} : vector<2x128xf32>, vector<128x64xf32>, vector<2x64xf32> -> vector<2x64xf32>
    %c1 = arith.constant 1 : index
    %c0_15 = arith.constant 0 : index
    %153 = vector.load %arg4[%c1, %c0_15] : memref<3x128xf32, #tpu.memory_space<vmem>>, vector<1x64xf32>
    %154 = vector.broadcast %153 : vector<1x64xf32> to vector<2x64xf32>
    %155 = arith.addf %152, %154 : vector<2x64xf32>
    %cst_16 = arith.constant 0.000000e+00 : f32
    %156 = vector.broadcast %cst_16 : f32 to vector<2x64xf32>
    %157 = arith.maximumf %155, %156 : vector<2x64xf32>
    %c0_17 = arith.constant 0 : index
    %c0_18 = arith.constant 0 : index
    %158 = vector.load %arg6[%c0_17, %c0_18] : memref<64x2xf32, #tpu.memory_space<vmem>>, vector<64x2xf32>
    %cst_19 = arith.constant dense<0.000000e+00> : vector<2x2xf32>
    %159 = tpu.matmul %157, %158, %cst_19 {dimension_numbers = #tpu.dot_dimension_numbers<[1], [0], [0], [1], [0, 0, 1, 1], [], []>} : vector<2x64xf32>, vector<64x2xf32>, vector<2x2xf32> -> vector<2x2xf32>
    %c2 = arith.constant 2 : index
    %c0_20 = arith.constant 0 : index
    %160 = vector.load %arg4[%c2, %c0_20] : memref<3x128xf32, #tpu.memory_space<vmem>>, vector<1x2xf32>
    %161 = vector.broadcast %160 : vector<1x2xf32> to vector<2x2xf32>
    %162 = arith.addf %159, %161 : vector<2x2xf32>
    %cst_21 = arith.constant dense<0xFF800000> : vector<2xf32>
    %163 = vector.multi_reduction <maximumf>, %162, %cst_21 [1] : vector<2x2xf32> to vector<2xf32>
    %164 = vector.shape_cast %163 : vector<2xf32> to vector<2x1xf32>
    %165 = vector.broadcast %164 : vector<2x1xf32> to vector<2x2xf32>
    %166 = arith.subf %162, %165 : vector<2x2xf32>
    %167 = math.exp %166 : vector<2x2xf32>
    %cst_22 = arith.constant dense<0.000000e+00> : vector<2xf32>
    %168 = vector.multi_reduction <add>, %167, %cst_22 [1] : vector<2x2xf32> to vector<2xf32>
    %169 = vector.shape_cast %168 : vector<2xf32> to vector<2x1xf32>
    %170 = vector.broadcast %169 : vector<2x1xf32> to vector<2x2xf32>
    %171 = arith.divf %167, %170 : vector<2x2xf32>
    %c0_23 = arith.constant 0 : index
    %c0_24 = arith.constant 0 : index
    %172 = vector.load %arg7[%c0_23, %c0_24] : memref<2x2xf32, #tpu.memory_space<vmem>>, vector<2x2xf32>
    tpu.vector_store %arg7[%c0_23, %c0_24], %171 {strides = array<i32>} : memref<2x2xf32, #tpu.memory_space<vmem>>, vector<2x2xf32>,
    return
  }
}

</mosaic_0001>

<llo_original>
// kernel: tpu_custom_call.1
$region0: #{tpu_custom_call.1}
  #allocation0 [shape = 'u32[]', space=smem, size = 0x4, offset = 0x4, fixed_abs, tag = 'smem constant byte address 0x4 - core index']
  #allocation1 [shape = 'u32[144,128]{1,0:T(1,128)}', space=vmem, size = 0x12000, scoped, tag = 'internal scratch']
  %s0 = inlined_call_operand.vmem [shape: f32[6,2,2048], index: 0, kind: input, shape index: {}]
  %s1 = inlined_call_operand.vmem [shape: f32[10,4], index: 1, kind: input, shape index: {}]
  %s2 = inlined_call_operand.vmem [shape: f32[2,20], index: 2, kind: input, shape index: {}]
  %s3 = inlined_call_operand.hbm [shape: bf16[2048,128], index: 3, kind: input, shape index: {}]
  %s4 = inlined_call_operand.vmem [shape: f32[3,128], index: 4, kind: input, shape index: {}]
  %s5 = inlined_call_operand.vmem [shape: f32[128,64], index: 5, kind: input, shape index: {}]
  %s6 = inlined_call_operand.vmem [shape: f32[64,2], index: 6, kind: input, shape index: {}]
  %s7 = inlined_call_operand.hbm [shape: f32[2,2], index: 7, kind: output, shape index: {}]
  %s8 = sld [smem:[#allocation0]]
  $region42: #{tpu_custom_call.1} parent=0
    _
  %s10 = ssub.s32 1, %s8
  %s11 = scalar_select 0, %s10, %s8
  $region1: #{tpu_custom_call.1} parent=0
    #allocation2 [shape = 'u8[524288]{0}', space=vmem, size = 0x80000, scoped, tag = 'input window, operand 3, single buffered']
    #allocation3 [shape = 's32[1]{0}', space=sflag, size = 0x4, scoped, tag = 'scoped memory for tpu_custom_call.1']
    #allocation4 [shape = 's32[1]{0}', space=sflag, size = 0x4, scoped, tag = 'scoped memory for tpu_custom_call.1']
    #allocation5 [shape = 'u8[1024]{0}', space=vmem, size = 0x400, scoped, tag = 'output window, operand 0, single buffered']
    %12 = vsyncpa [#allocation3], 0
    %13 = vsyncpa [#allocation4], 0
    // Predicated region
    $region2: #{tpu_custom_call.1} parent=1 // pred_check
      _
    $region3: #{tpu_custom_call.1} parent=1 // pred_check_branch
      %15 = sbr.rel (0) target = $region5
    $region4: #{tpu_custom_call.1} parent=1 // pred_region
      _
    $region5: #{tpu_custom_call.1} parent=1 // pred_fallthru
      _
    // Predicated region
    $region6: #{tpu_custom_call.1} parent=1 // pred_check
      _
    $region7: #{tpu_custom_call.1} parent=1 // pred_check_branch
      %17 = sbr.rel (0) target = $region9
    $region8: #{tpu_custom_call.1} parent=1 // pred_region
      _
    $region9: #{tpu_custom_call.1} parent=1 // pred_fallthru
      _
    // Predicated region
    $region10: #{tpu_custom_call.1} parent=1 // pred_check
      _
    $region11: #{tpu_custom_call.1} parent=1 // pred_check_branch
      %19 = sbr.rel (0) target = $region13
    $region12: #{tpu_custom_call.1} parent=1 // pred_region
      _
    $region13: #{tpu_custom_call.1} parent=1 // pred_fallthru
      _
    // Predicated region
    $region14: #{tpu_custom_call.1} parent=1 // pred_check
      _
    $region15: #{tpu_custom_call.1} parent=1 // pred_check_branch
      %21 = sbr.rel (0) target = $region17
    $region16: #{tpu_custom_call.1} parent=1 // pred_region
      %s23 = ssub.s32 16384, 16384
      %24 = vsyncadd [#allocation3], %s23
      %s25 = sshll.u32 [#allocation2], 4
      %s26 = int_to_ptr.vmem [resolvable:$true] %s25
      %31 = dma.hbm_to_vmem [thread:$0]  %s3, 16384, %s26, [#allocation3], 64, 64, 4
    $region17: #{tpu_custom_call.1} parent=1 // pred_fallthru
      _
    // Predicated region
    $region18: #{tpu_custom_call.1} parent=1 // pred_check
      _
    $region19: #{tpu_custom_call.1} parent=1 // pred_check_branch
      %33 = sbr.rel (0) target = $region21
    $region20: #{tpu_custom_call.1} parent=1 // pred_region
      _
    $region21: #{tpu_custom_call.1} parent=1 // pred_fallthru
      _
    // Predicated region
    $region22: #{tpu_custom_call.1} parent=1 // pred_check
      _
    $region23: #{tpu_custom_call.1} parent=1 // pred_check_branch
      %35 = sbr.rel (0) target = $region25
    $region24: #{tpu_custom_call.1} parent=1 // pred_region
      _
    $region25: #{tpu_custom_call.1} parent=1 // pred_fallthru
      _
    // Predicated region
    $region26: #{tpu_custom_call.1} parent=1 // pred_check
      _
    $region27: #{tpu_custom_call.1} parent=1 // pred_check_branch
      %37 = sbr.rel (0) target = $region29
    $region28: #{tpu_custom_call.1} parent=1 // pred_region
      _
    $region29: #{tpu_custom_call.1} parent=1 // pred_fallthru
      _
    // Predicated region
    $region30: #{tpu_custom_call.1} parent=1 // pred_check
      _
    $region31: #{tpu_custom_call.1} parent=1 // pred_check_branch
      %39 = sbr.rel (0) target = $region33
    $region32: #{tpu_custom_call.1} parent=1 // pred_region
      %40 = dma.done [#allocation3], 16384
    $region33: #{tpu_custom_call.1} parent=1 // pred_fallthru
      _
    %v42 = vld [vmem:[%s1] sm:$0xff]
    %v43 = vld [vmem:[%s1 + $0x8] sm:$0x3]
    %v44 = vld [vmem:[%s0] sm:$0xff]
    %v45 = vld [vmem:[%s0 + $0x8] sm:$0xff]
    %v46 = vld [vmem:[%s0 + $0x10] sm:$0xff]
    %v47 = vld [vmem:[%s0 + $0x18] sm:$0xff]
    %v48 = vld [vmem:[%s0 + $0x20] sm:$0xff]
    %v49 = vld [vmem:[%s0 + $0x28] sm:$0xff]
    %v50 = vld [vmem:[%s0 + $0x30] sm:$0xff]
    %v51 = vld [vmem:[%s0 + $0x38] sm:$0xff]
    %v52 = vld [vmem:[%s0 + $0x40] sm:$0xff]
    %v53 = vld [vmem:[%s0 + $0x48] sm:$0xff]
    %v54 = vld [vmem:[%s0 + $0x50] sm:$0xff]
    %v55 = vld [vmem:[%s0 + $0x58] sm:$0xff]
    %v56 = vld [vmem:[%s0 + $0x60] sm:$0xff]
    %v57 = vld [vmem:[%s0 + $0x68] sm:$0xff]
    %v58 = vld [vmem:[%s0 + $0x70] sm:$0xff]
    %v59 = vld [vmem:[%s0 + $0x78] sm:$0xff]
    %v60 = vld [vmem:[%s0 + $0x80] sm:$0xff]
    %v61 = vld [vmem:[%s0 + $0x88] sm:$0xff]
    %v62 = vld [vmem:[%s0 + $0x90] sm:$0xff]
    %v63 = vld [vmem:[%s0 + $0x98] sm:$0xff]
    %v64 = vld [vmem:[%s0 + $0xa0] sm:$0xff]
    %v65 = vld [vmem:[%s0 + $0xa8] sm:$0xff]
    %v66 = vld [vmem:[%s0 + $0xb0] sm:$0xff]
    %v67 = vld [vmem:[%s0 + $0xb8] sm:$0xff]
    %v72 = vlaneseq
    %v73 = vshrl.u32 %v72, 7
    %v74 = vsub.s32 0, %v73
    %v75 = vrot.slane %v44, %v74
    %v76 = vlaneseq
    %v77 = vshrl.u32 %v76, 7
    %v78 = vsub.s32 2, %v77
    %v79 = vrot.slane %v44, %v78
    %v80 = vlaneseq
    %v81 = vshrl.u32 %v80, 7
    %v82 = vsub.s32 4, %v81
    %v83 = vrot.slane %v44, %v82
    %v84 = vlaneseq
    %v85 = vshrl.u32 %v84, 7
    %v86 = vsub.s32 6, %v85
    %v87 = vrot.slane %v44, %v86
    %v88 = vlaneseq
    %v89 = vshrl.u32 %v88, 7
    %v90 = vsub.s32 0, %v89
    %v91 = vrot.slane %v45, %v90
    %v92 = vlaneseq
    %v93 = vshrl.u32 %v92, 7
    %v94 = vsub.s32 2, %v93
    %v95 = vrot.slane %v45, %v94
    %v96 = vlaneseq
    %v97 = vshrl.u32 %v96, 7
    %v98 = vsub.s32 4, %v97
    %v99 = vrot.slane %v45, %v98
    %v100 = vlaneseq
    %v101 = vshrl.u32 %v100, 7
    %v102 = vsub.s32 6, %v101
    %v103 = vrot.slane %v45, %v102
    %v104 = vlaneseq
    %v105 = vshrl.u32 %v104, 7
    %v106 = vsub.s32 0, %v105
    %v107 = vrot.slane %v46, %v106
    %v108 = vlaneseq
    %v109 = vshrl.u32 %v108, 7
    %v110 = vsub.s32 2, %v109
    %v111 = vrot.slane %v46, %v110
    %v112 = vlaneseq
    %v113 = vshrl.u32 %v112, 7
    %v114 = vsub.s32 4, %v113
    %v115 = vrot.slane %v46, %v114
    %v116 = vlaneseq
    %v117 = vshrl.u32 %v116, 7
    %v118 = vsub.s32 6, %v117
    %v119 = vrot.slane %v46, %v118
    %v120 = vlaneseq
    %v121 = vshrl.u32 %v120, 7
    %v122 = vsub.s32 0, %v121
    %v123 = vrot.slane %v47, %v122
    %v124 = vlaneseq
    %v125 = vshrl.u32 %v124, 7
    %v126 = vsub.s32 2, %v125
    %v127 = vrot.slane %v47, %v126
    %v128 = vlaneseq
    %v129 = vshrl.u32 %v128, 7
    %v130 = vsub.s32 4, %v129
    %v131 = vrot.slane %v47, %v130
    %v132 = vlaneseq
    %v133 = vshrl.u32 %v132, 7
    %v134 = vsub.s32 6, %v133
    %v135 = vrot.slane %v47, %v134
    %v152 = vlaneseq
    %v153 = vshrl.u32 %v152, 7
    %v154 = vsub.s32 0, %v153
    %v155 = vrot.slane %v75, %v154
    %v156 = vlaneseq
    %v157 = vshrl.u32 %v156, 7
    %v158 = vsub.s32 0, %v157
    %v159 = vrot.slane %v79, %v158
    %v160 = vlaneseq
    %v161 = vshrl.u32 %v160, 7
    %v162 = vsub.s32 0, %v161
    %v163 = vrot.slane %v83, %v162
    %v164 = vlaneseq
    %v165 = vshrl.u32 %v164, 7
    %v166 = vsub.s32 0, %v165
    %v167 = vrot.slane %v87, %v166
    %v168 = vlaneseq
    %v169 = vshrl.u32 %v168, 7
    %v170 = vsub.s32 0, %v169
    %v171 = vrot.slane %v91, %v170
    %v172 = vlaneseq
    %v173 = vshrl.u32 %v172, 7
    %v174 = vsub.s32 0, %v173
    %v175 = vrot.slane %v95, %v174
    %v176 = vlaneseq
    %v177 = vshrl.u32 %v176, 7
    %v178 = vsub.s32 0, %v177
    %v179 = vrot.slane %v99, %v178
    %v180 = vlaneseq
    %v181 = vshrl.u32 %v180, 7
    %v182 = vsub.s32 0, %v181
    %v183 = vrot.slane %v103, %v182
    %v184 = vlaneseq
    %v185 = vshrl.u32 %v184, 7
    %v186 = vsub.s32 0, %v185
    %v187 = vrot.slane %v107, %v186
    %v188 = vlaneseq
    %v189 = vshrl.u32 %v188, 7
    %v190 = vsub.s32 0, %v189
    %v191 = vrot.slane %v111, %v190
    %v192 = vlaneseq
    %v193 = vshrl.u32 %v192, 7
    %v194 = vsub.s32 0, %v193
    %v195 = vrot.slane %v115, %v194
    %v196 = vlaneseq
    %v197 = vshrl.u32 %v196, 7
    %v198 = vsub.s32 0, %v197
    %v199 = vrot.slane %v119, %v198
    %v200 = vlaneseq
    %v201 = vshrl.u32 %v200, 7
    %v202 = vsub.s32 0, %v201
    %v203 = vrot.slane %v123, %v202
    %v204 = vlaneseq
    %v205 = vshrl.u32 %v204, 7
    %v206 = vsub.s32 0, %v205
    %v207 = vrot.slane %v127, %v206
    %v208 = vlaneseq
    %v209 = vshrl.u32 %v208, 7
    %v210 = vsub.s32 0, %v209
    %v211 = vrot.slane %v131, %v210
    %v212 = vlaneseq
    %v213 = vshrl.u32 %v212, 7
    %v214 = vsub.s32 0, %v213
    %v215 = vrot.slane %v135, %v214
    %v220 = vlaneseq
    %v221 = vshrl.u32 %v220, 7
    %v222 = vsub.s32 0, %v221
    %v223 = vrot.slane %v48, %v222
    %v224 = vlaneseq
    %v225 = vshrl.u32 %v224, 7
    %v226 = vsub.s32 2, %v225
    %v227 = vrot.slane %v48, %v226
    %v228 = vlaneseq
    %v229 = vshrl.u32 %v228, 7
    %v230 = vsub.s32 4, %v229
    %v231 = vrot.slane %v48, %v230
    %v232 = vlaneseq
    %v233 = vshrl.u32 %v232, 7
    %v234 = vsub.s32 6, %v233
    %v235 = vrot.slane %v48, %v234
    %v236 = vlaneseq
    %v237 = vshrl.u32 %v236, 7
    %v238 = vsub.s32 0, %v237
    %v239 = vrot.slane %v49, %v238
    %v240 = vlaneseq
    %v241 = vshrl.u32 %v240, 7
    %v242 = vsub.s32 2, %v241
    %v243 = vrot.slane %v49, %v242
    %v244 = vlaneseq
    %v245 = vshrl.u32 %v244, 7
    %v246 = vsub.s32 4, %v245
    %v247 = vrot.slane %v49, %v246
    %v248 = vlaneseq
    %v249 = vshrl.u32 %v248, 7
    %v250 = vsub.s32 6, %v249
    %v251 = vrot.slane %v49, %v250
    %v252 = vlaneseq
    %v253 = vshrl.u32 %v252, 7
    %v254 = vsub.s32 0, %v253
    %v255 = vrot.slane %v50, %v254
    %v256 = vlaneseq
    %v257 = vshrl.u32 %v256, 7
    %v258 = vsub.s32 2, %v257
    %v259 = vrot.slane %v50, %v258
    %v260 = vlaneseq
    %v261 = vshrl.u32 %v260, 7
    %v262 = vsub.s32 4, %v261
    %v263 = vrot.slane %v50, %v262
    %v264 = vlaneseq
    %v265 = vshrl.u32 %v264, 7
    %v266 = vsub.s32 6, %v265
    %v267 = vrot.slane %v50, %v266
    %v268 = vlaneseq
    %v269 = vshrl.u32 %v268, 7
    %v270 = vsub.s32 0, %v269
    %v271 = vrot.slane %v51, %v270
    %v272 = vlaneseq
    %v273 = vshrl.u32 %v272, 7
    %v274 = vsub.s32 2, %v273
    %v275 = vrot.slane %v51, %v274
    %v276 = vlaneseq
    %v277 = vshrl.u32 %v276, 7
    %v278 = vsub.s32 4, %v277
    %v279 = vrot.slane %v51, %v278
    %v280 = vlaneseq
    %v281 = vshrl.u32 %v280, 7
    %v282 = vsub.s32 6, %v281
    %v283 = vrot.slane %v51, %v282
    %v300 = vlaneseq
    %v301 = vshrl.u32 %v300, 7
    %v302 = vsub.s32 0, %v301
    %v303 = vrot.slane %v223, %v302
    %v304 = vlaneseq
    %v305 = vshrl.u32 %v304, 7
    %v306 = vsub.s32 0, %v305
    %v307 = vrot.slane %v227, %v306
    %v308 = vlaneseq
    %v309 = vshrl.u32 %v308, 7
    %v310 = vsub.s32 0, %v309
    %v311 = vrot.slane %v231, %v310
    %v312 = vlaneseq
    %v313 = vshrl.u32 %v312, 7
    %v314 = vsub.s32 0, %v313
    %v315 = vrot.slane %v235, %v314
    %v316 = vlaneseq
    %v317 = vshrl.u32 %v316, 7
    %v318 = vsub.s32 0, %v317
    %v319 = vrot.slane %v239, %v318
    %v320 = vlaneseq
    %v321 = vshrl.u32 %v320, 7
    %v322 = vsub.s32 0, %v321
    %v323 = vrot.slane %v243, %v322
    %v324 = vlaneseq
    %v325 = vshrl.u32 %v324, 7
    %v326 = vsub.s32 0, %v325
    %v327 = vrot.slane %v247, %v326
    %v328 = vlaneseq
    %v329 = vshrl.u32 %v328, 7
    %v330 = vsub.s32 0, %v329
    %v331 = vrot.slane %v251, %v330
    %v332 = vlaneseq
    %v333 = vshrl.u32 %v332, 7
    %v334 = vsub.s32 0, %v333
    %v335 = vrot.slane %v255, %v334
    %v336 = vlaneseq
    %v337 = vshrl.u32 %v336, 7
    %v338 = vsub.s32 0, %v337
    %v339 = vrot.slane %v259, %v338
    %v340 = vlaneseq
    %v341 = vshrl.u32 %v340, 7
    %v342 = vsub.s32 0, %v341
    %v343 = vrot.slane %v263, %v342
    %v344 = vlaneseq
    %v345 = vshrl.u32 %v344, 7
    %v346 = vsub.s32 0, %v345
    %v347 = vrot.slane %v267, %v346
    %v348 = vlaneseq
    %v349 = vshrl.u32 %v348, 7
    %v350 = vsub.s32 0, %v349
    %v351 = vrot.slane %v271, %v350
    %v352 = vlaneseq
    %v353 = vshrl.u32 %v352, 7
    %v354 = vsub.s32 0, %v353
    %v355 = vrot.slane %v275, %v354
    %v356 = vlaneseq
    %v357 = vshrl.u32 %v356, 7
    %v358 = vsub.s32 0, %v357
    %v359 = vrot.slane %v279, %v358
    %v360 = vlaneseq
    %v361 = vshrl.u32 %v360, 7
    %v362 = vsub.s32 0, %v361
    %v363 = vrot.slane %v283, %v362
    %v368 = vlaneseq
    %v369 = vshrl.u32 %v368, 7
    %v370 = vsub.s32 0, %v369
    %v371 = vrot.slane %v52, %v370
    %v372 = vlaneseq
    %v373 = vshrl.u32 %v372, 7
    %v374 = vsub.s32 2, %v373
    %v375 = vrot.slane %v52, %v374
    %v376 = vlaneseq
    %v377 = vshrl.u32 %v376, 7
    %v378 = vsub.s32 4, %v377
    %v379 = vrot.slane %v52, %v378
    %v380 = vlaneseq
    %v381 = vshrl.u32 %v380, 7
    %v382 = vsub.s32 6, %v381
    %v383 = vrot.slane %v52, %v382
    %v384 = vlaneseq
    %v385 = vshrl.u32 %v384, 7
    %v386 = vsub.s32 0, %v385
    %v387 = vrot.slane %v53, %v386
    %v388 = vlaneseq
    %v389 = vshrl.u32 %v388, 7
    %v390 = vsub.s32 2, %v389
    %v391 = vrot.slane %v53, %v390
    %v392 = vlaneseq
    %v393 = vshrl.u32 %v392, 7
    %v394 = vsub.s32 4, %v393
    %v395 = vrot.slane %v53, %v394
    %v396 = vlaneseq
    %v397 = vshrl.u32 %v396, 7
    %v398 = vsub.s32 6, %v397
    %v399 = vrot.slane %v53, %v398
    %v400 = vlaneseq
    %v401 = vshrl.u32 %v400, 7
    %v402 = vsub.s32 0, %v401
    %v403 = vrot.slane %v54, %v402
    %v404 = vlaneseq
    %v405 = vshrl.u32 %v404, 7
    %v406 = vsub.s32 2, %v405
    %v407 = vrot.slane %v54, %v406
    %v408 = vlaneseq
    %v409 = vshrl.u32 %v408, 7
    %v410 = vsub.s32 4, %v409
    %v411 = vrot.slane %v54, %v410
    %v412 = vlaneseq
    %v413 = vshrl.u32 %v412, 7
    %v414 = vsub.s32 6, %v413
    %v415 = vrot.slane %v54, %v414
    %v416 = vlaneseq
    %v417 = vshrl.u32 %v416, 7
    %v418 = vsub.s32 0, %v417
    %v419 = vrot.slane %v55, %v418
    %v420 = vlaneseq
    %v421 = vshrl.u32 %v420, 7
    %v422 = vsub.s32 2, %v421
    %v423 = vrot.slane %v55, %v422
    %v424 = vlaneseq
    %v425 = vshrl.u32 %v424, 7
    %v426 = vsub.s32 4, %v425
    %v427 = vrot.slane %v55, %v426
    %v428 = vlaneseq
    %v429 = vshrl.u32 %v428, 7
    %v430 = vsub.s32 6, %v429
    %v431 = vrot.slane %v55, %v430
    %v448 = vlaneseq
    %v449 = vshrl.u32 %v448, 7
    %v450 = vsub.s32 0, %v449
    %v451 = vrot.slane %v371, %v450
    %v452 = vlaneseq
    %v453 = vshrl.u32 %v452, 7
    %v454 = vsub.s32 0, %v453
    %v455 = vrot.slane %v375, %v454
    %v456 = vlaneseq
    %v457 = vshrl.u32 %v456, 7
    %v458 = vsub.s32 0, %v457
    %v459 = vrot.slane %v379, %v458
    %v460 = vlaneseq
    %v461 = vshrl.u32 %v460, 7
    %v462 = vsub.s32 0, %v461
    %v463 = vrot.slane %v383, %v462
    %v464 = vlaneseq
    %v465 = vshrl.u32 %v464, 7
    %v466 = vsub.s32 0, %v465
    %v467 = vrot.slane %v387, %v466
    %v468 = vlaneseq
    %v469 = vshrl.u32 %v468, 7
    %v470 = vsub.s32 0, %v469
    %v471 = vrot.slane %v391, %v470
    %v472 = vlaneseq
    %v473 = vshrl.u32 %v472, 7
    %v474 = vsub.s32 0, %v473
    %v475 = vrot.slane %v395, %v474
    %v476 = vlaneseq
    %v477 = vshrl.u32 %v476, 7
    %v478 = vsub.s32 0, %v477
    %v479 = vrot.slane %v399, %v478
    %v480 = vlaneseq
    %v481 = vshrl.u32 %v480, 7
    %v482 = vsub.s32 0, %v481
    %v483 = vrot.slane %v403, %v482
    %v484 = vlaneseq
    %v485 = vshrl.u32 %v484, 7
    %v486 = vsub.s32 0, %v485
    %v487 = vrot.slane %v407, %v486
    %v488 = vlaneseq
    %v489 = vshrl.u32 %v488, 7
    %v490 = vsub.s32 0, %v489
    %v491 = vrot.slane %v411, %v490
    %v492 = vlaneseq
    %v493 = vshrl.u32 %v492, 7
    %v494 = vsub.s32 0, %v493
    %v495 = vrot.slane %v415, %v494
    %v496 = vlaneseq
    %v497 = vshrl.u32 %v496, 7
    %v498 = vsub.s32 0, %v497
    %v499 = vrot.slane %v419, %v498
    %v500 = vlaneseq
    %v501 = vshrl.u32 %v500, 7
    %v502 = vsub.s32 0, %v501
    %v503 = vrot.slane %v423, %v502
    %v504 = vlaneseq
    %v505 = vshrl.u32 %v504, 7
    %v506 = vsub.s32 0, %v505
    %v507 = vrot.slane %v427, %v506
    %v508 = vlaneseq
    %v509 = vshrl.u32 %v508, 7
    %v510 = vsub.s32 0, %v509
    %v511 = vrot.slane %v431, %v510
    %v516 = vlaneseq
    %v517 = vshrl.u32 %v516, 7
    %v518 = vsub.s32 0, %v517
    %v519 = vrot.slane %v56, %v518
    %v520 = vlaneseq
    %v521 = vshrl.u32 %v520, 7
    %v522 = vsub.s32 2, %v521
    %v523 = vrot.slane %v56, %v522
    %v524 = vlaneseq
    %v525 = vshrl.u32 %v524, 7
    %v526 = vsub.s32 4, %v525
    %v527 = vrot.slane %v56, %v526
    %v528 = vlaneseq
    %v529 = vshrl.u32 %v528, 7
    %v530 = vsub.s32 6, %v529
    %v531 = vrot.slane %v56, %v530
    %v532 = vlaneseq
    %v533 = vshrl.u32 %v532, 7
    %v534 = vsub.s32 0, %v533
    %v535 = vrot.slane %v57, %v534
    %v536 = vlaneseq
    %v537 = vshrl.u32 %v536, 7
    %v538 = vsub.s32 2, %v537
    %v539 = vrot.slane %v57, %v538
    %v540 = vlaneseq
    %v541 = vshrl.u32 %v540, 7
    %v542 = vsub.s32 4, %v541
    %v543 = vrot.slane %v57, %v542
    %v544 = vlaneseq
    %v545 = vshrl.u32 %v544, 7
    %v546 = vsub.s32 6, %v545
    %v547 = vrot.slane %v57, %v546
    %v548 = vlaneseq
    %v549 = vshrl.u32 %v548, 7
    %v550 = vsub.s32 0, %v549
    %v551 = vrot.slane %v58, %v550
    %v552 = vlaneseq
    %v553 = vshrl.u32 %v552, 7
    %v554 = vsub.s32 2, %v553
    %v555 = vrot.slane %v58, %v554
    %v556 = vlaneseq
    %v557 = vshrl.u32 %v556, 7
    %v558 = vsub.s32 4, %v557
    %v559 = vrot.slane %v58, %v558
    %v560 = vlaneseq
    %v561 = vshrl.u32 %v560, 7
    %v562 = vsub.s32 6, %v561
    %v563 = vrot.slane %v58, %v562
    %v564 = vlaneseq
    %v565 = vshrl.u32 %v564, 7
    %v566 = vsub.s32 0, %v565
    %v567 = vrot.slane %v59, %v566
    %v568 = vlaneseq
    %v569 = vshrl.u32 %v568, 7
    %v570 = vsub.s32 2, %v569
    %v571 = vrot.slane %v59, %v570
    %v572 = vlaneseq
    %v573 = vshrl.u32 %v572, 7
    %v574 = vsub.s32 4, %v573
    %v575 = vrot.slane %v59, %v574
    %v576 = vlaneseq
    %v577 = vshrl.u32 %v576, 7
    %v578 = vsub.s32 6, %v577
    %v579 = vrot.slane %v59, %v578
    %v596 = vlaneseq
    %v597 = vshrl.u32 %v596, 7
    %v598 = vsub.s32 0, %v597
    %v599 = vrot.slane %v519, %v598
    %v600 = vlaneseq
    %v601 = vshrl.u32 %v600, 7
    %v602 = vsub.s32 0, %v601
    %v603 = vrot.slane %v523, %v602
    %v604 = vlaneseq
    %v605 = vshrl.u32 %v604, 7
    %v606 = vsub.s32 0, %v605
    %v607 = vrot.slane %v527, %v606
    %v608 = vlaneseq
    %v609 = vshrl.u32 %v608, 7
    %v610 = vsub.s32 0, %v609
    %v611 = vrot.slane %v531, %v610
    %v612 = vlaneseq
    %v613 = vshrl.u32 %v612, 7
    %v614 = vsub.s32 0, %v613
    %v615 = vrot.slane %v535, %v614
    %v616 = vlaneseq
    %v617 = vshrl.u32 %v616, 7
    %v618 = vsub.s32 0, %v617
    %v619 = vrot.slane %v539, %v618
    %v620 = vlaneseq
    %v621 = vshrl.u32 %v620, 7
    %v622 = vsub.s32 0, %v621
    %v623 = vrot.slane %v543, %v622
    %v624 = vlaneseq
    %v625 = vshrl.u32 %v624, 7
    %v626 = vsub.s32 0, %v625
    %v627 = vrot.slane %v547, %v626
    %v628 = vlaneseq
    %v629 = vshrl.u32 %v628, 7
    %v630 = vsub.s32 0, %v629
    %v631 = vrot.slane %v551, %v630
    %v632 = vlaneseq
    %v633 = vshrl.u32 %v632, 7
    %v634 = vsub.s32 0, %v633
    %v635 = vrot.slane %v555, %v634
    %v636 = vlaneseq
    %v637 = vshrl.u32 %v636, 7
    %v638 = vsub.s32 0, %v637
    %v639 = vrot.slane %v559, %v638
    %v640 = vlaneseq
    %v641 = vshrl.u32 %v640, 7
    %v642 = vsub.s32 0, %v641
    %v643 = vrot.slane %v563, %v642
    %v644 = vlaneseq
    %v645 = vshrl.u32 %v644, 7
    %v646 = vsub.s32 0, %v645
    %v647 = vrot.slane %v567, %v646
    %v648 = vlaneseq
    %v649 = vshrl.u32 %v648, 7
    %v650 = vsub.s32 0, %v649
    %v651 = vrot.slane %v571, %v650
    %v652 = vlaneseq
    %v653 = vshrl.u32 %v652, 7
    %v654 = vsub.s32 0, %v653
    %v655 = vrot.slane %v575, %v654
    %v656 = vlaneseq
    %v657 = vshrl.u32 %v656, 7
    %v658 = vsub.s32 0, %v657
    %v659 = vrot.slane %v579, %v658
    %v664 = vlaneseq
    %v665 = vshrl.u32 %v664, 7
    %v666 = vsub.s32 0, %v665
    %v667 = vrot.slane %v60, %v666
    %v668 = vlaneseq
    %v669 = vshrl.u32 %v668, 7
    %v670 = vsub.s32 2, %v669
    %v671 = vrot.slane %v60, %v670
    %v672 = vlaneseq
    %v673 = vshrl.u32 %v672, 7
    %v674 = vsub.s32 4, %v673
    %v675 = vrot.slane %v60, %v674
    %v676 = vlaneseq
    %v677 = vshrl.u32 %v676, 7
    %v678 = vsub.s32 6, %v677
    %v679 = vrot.slane %v60, %v678
    %v680 = vlaneseq
    %v681 = vshrl.u32 %v680, 7
    %v682 = vsub.s32 0, %v681
    %v683 = vrot.slane %v61, %v682
    %v684 = vlaneseq
    %v685 = vshrl.u32 %v684, 7
    %v686 = vsub.s32 2, %v685
    %v687 = vrot.slane %v61, %v686
    %v688 = vlaneseq
    %v689 = vshrl.u32 %v688, 7
    %v690 = vsub.s32 4, %v689
    %v691 = vrot.slane %v61, %v690
    %v692 = vlaneseq
    %v693 = vshrl.u32 %v692, 7
    %v694 = vsub.s32 6, %v693
    %v695 = vrot.slane %v61, %v694
    %v696 = vlaneseq
    %v697 = vshrl.u32 %v696, 7
    %v698 = vsub.s32 0, %v697
    %v699 = vrot.slane %v62, %v698
    %v700 = vlaneseq
    %v701 = vshrl.u32 %v700, 7
    %v702 = vsub.s32 2, %v701
    %v703 = vrot.slane %v62, %v702
    %v704 = vlaneseq
    %v705 = vshrl.u32 %v704, 7
    %v706 = vsub.s32 4, %v705
    %v707 = vrot.slane %v62, %v706
    %v708 = vlaneseq
    %v709 = vshrl.u32 %v708, 7
    %v710 = vsub.s32 6, %v709
    %v711 = vrot.slane %v62, %v710
    %v712 = vlaneseq
    %v713 = vshrl.u32 %v712, 7
    %v714 = vsub.s32 0, %v713
    %v715 = vrot.slane %v63, %v714
    %v716 = vlaneseq
    %v717 = vshrl.u32 %v716, 7
    %v718 = vsub.s32 2, %v717
    %v719 = vrot.slane %v63, %v718
    %v720 = vlaneseq
    %v721 = vshrl.u32 %v720, 7
    %v722 = vsub.s32 4, %v721
    %v723 = vrot.slane %v63, %v722
    %v724 = vlaneseq
    %v725 = vshrl.u32 %v724, 7
    %v726 = vsub.s32 6, %v725
    %v727 = vrot.slane %v63, %v726
    %v744 = vlaneseq
    %v745 = vshrl.u32 %v744, 7
    %v746 = vsub.s32 0, %v745
    %v747 = vrot.slane %v667, %v746
    %v748 = vlaneseq
    %v749 = vshrl.u32 %v748, 7
    %v750 = vsub.s32 0, %v749
    %v751 = vrot.slane %v671, %v750
    %v752 = vlaneseq
    %v753 = vshrl.u32 %v752, 7
    %v754 = vsub.s32 0, %v753
    %v755 = vrot.slane %v675, %v754
    %v756 = vlaneseq
    %v757 = vshrl.u32 %v756, 7
    %v758 = vsub.s32 0, %v757
    %v759 = vrot.slane %v679, %v758
    %v760 = vlaneseq
    %v761 = vshrl.u32 %v760, 7
    %v762 = vsub.s32 0, %v761
    %v763 = vrot.slane %v683, %v762
    %v764 = vlaneseq
    %v765 = vshrl.u32 %v764, 7
    %v766 = vsub.s32 0, %v765
    %v767 = vrot.slane %v687, %v766
    %v768 = vlaneseq
    %v769 = vshrl.u32 %v768, 7
    %v770 = vsub.s32 0, %v769
    %v771 = vrot.slane %v691, %v770
    %v772 = vlaneseq
    %v773 = vshrl.u32 %v772, 7
    %v774 = vsub.s32 0, %v773
    %v775 = vrot.slane %v695, %v774
    %v776 = vlaneseq
    %v777 = vshrl.u32 %v776, 7
    %v778 = vsub.s32 0, %v777
    %v779 = vrot.slane %v699, %v778
    %v780 = vlaneseq
    %v781 = vshrl.u32 %v780, 7
    %v782 = vsub.s32 0, %v781
    %v783 = vrot.slane %v703, %v782
    %v784 = vlaneseq
    %v785 = vshrl.u32 %v784, 7
    %v786 = vsub.s32 0, %v785
    %v787 = vrot.slane %v707, %v786
    %v788 = vlaneseq
    %v789 = vshrl.u32 %v788, 7
    %v790 = vsub.s32 0, %v789
    %v791 = vrot.slane %v711, %v790
    %v792 = vlaneseq
    %v793 = vshrl.u32 %v792, 7
    %v794 = vsub.s32 0, %v793
    %v795 = vrot.slane %v715, %v794
    %v796 = vlaneseq
    %v797 = vshrl.u32 %v796, 7
    %v798 = vsub.s32 0, %v797
    %v799 = vrot.slane %v719, %v798
    %v800 = vlaneseq
    %v801 = vshrl.u32 %v800, 7
    %v802 = vsub.s32 0, %v801
    %v803 = vrot.slane %v723, %v802
    %v804 = vlaneseq
    %v805 = vshrl.u32 %v804, 7
    %v806 = vsub.s32 0, %v805
    %v807 = vrot.slane %v727, %v806
    %v812 = vlaneseq
    %v813 = vshrl.u32 %v812, 7
    %v814 = vsub.s32 0, %v813
    %v815 = vrot.slane %v64, %v814
    %v816 = vlaneseq
    %v817 = vshrl.u32 %v816, 7
    %v818 = vsub.s32 2, %v817
    %v819 = vrot.slane %v64, %v818
    %v820 = vlaneseq
    %v821 = vshrl.u32 %v820, 7
    %v822 = vsub.s32 4, %v821
    %v823 = vrot.slane %v64, %v822
    %v824 = vlaneseq
    %v825 = vshrl.u32 %v824, 7
    %v826 = vsub.s32 6, %v825
    %v827 = vrot.slane %v64, %v826
    %v828 = vlaneseq
    %v829 = vshrl.u32 %v828, 7
    %v830 = vsub.s32 0, %v829
    %v831 = vrot.slane %v65, %v830
    %v832 = vlaneseq
    %v833 = vshrl.u32 %v832, 7
    %v834 = vsub.s32 2, %v833
    %v835 = vrot.slane %v65, %v834
    %v836 = vlaneseq
    %v837 = vshrl.u32 %v836, 7
    %v838 = vsub.s32 4, %v837
    %v839 = vrot.slane %v65, %v838
    %v840 = vlaneseq
    %v841 = vshrl.u32 %v840, 7
    %v842 = vsub.s32 6, %v841
    %v843 = vrot.slane %v65, %v842
    %v844 = vlaneseq
    %v845 = vshrl.u32 %v844, 7
    %v846 = vsub.s32 0, %v845
    %v847 = vrot.slane %v66, %v846
    %v848 = vlaneseq
    %v849 = vshrl.u32 %v848, 7
    %v850 = vsub.s32 2, %v849
    %v851 = vrot.slane %v66, %v850
    %v852 = vlaneseq
    %v853 = vshrl.u32 %v852, 7
    %v854 = vsub.s32 4, %v853
    %v855 = vrot.slane %v66, %v854
    %v856 = vlaneseq
    %v857 = vshrl.u32 %v856, 7
    %v858 = vsub.s32 6, %v857
    %v859 = vrot.slane %v66, %v858
    %v860 = vlaneseq
    %v861 = vshrl.u32 %v860, 7
    %v862 = vsub.s32 0, %v861
    %v863 = vrot.slane %v67, %v862
    %v864 = vlaneseq
    %v865 = vshrl.u32 %v864, 7
    %v866 = vsub.s32 2, %v865
    %v867 = vrot.slane %v67, %v866
    %v868 = vlaneseq
    %v869 = vshrl.u32 %v868, 7
    %v870 = vsub.s32 4, %v869
    %v871 = vrot.slane %v67, %v870
    %v872 = vlaneseq
    %v873 = vshrl.u32 %v872, 7
    %v874 = vsub.s32 6, %v873
    %v875 = vrot.slane %v67, %v874
    %v892 = vlaneseq
    %v893 = vshrl.u32 %v892, 7
    %v894 = vsub.s32 0, %v893
    %v895 = vrot.slane %v815, %v894
    %v896 = vlaneseq
    %v897 = vshrl.u32 %v896, 7
    %v898 = vsub.s32 0, %v897
    %v899 = vrot.slane %v819, %v898
    %v900 = vlaneseq
    %v901 = vshrl.u32 %v900, 7
    %v902 = vsub.s32 0, %v901
    %v903 = vrot.slane %v823, %v902
    %v904 = vlaneseq
    %v905 = vshrl.u32 %v904, 7
    %v906 = vsub.s32 0, %v905
    %v907 = vrot.slane %v827, %v906
    %v908 = vlaneseq
    %v909 = vshrl.u32 %v908, 7
    %v910 = vsub.s32 0, %v909
    %v911 = vrot.slane %v831, %v910
    %v912 = vlaneseq
    %v913 = vshrl.u32 %v912, 7
    %v914 = vsub.s32 0, %v913
    %v915 = vrot.slane %v835, %v914
    %v916 = vlaneseq
    %v917 = vshrl.u32 %v916, 7
    %v918 = vsub.s32 0, %v917
    %v919 = vrot.slane %v839, %v918
    %v920 = vlaneseq
    %v921 = vshrl.u32 %v920, 7
    %v922 = vsub.s32 0, %v921
    %v923 = vrot.slane %v843, %v922
    %v924 = vlaneseq
    %v925 = vshrl.u32 %v924, 7
    %v926 = vsub.s32 0, %v925
    %v927 = vrot.slane %v847, %v926
    %v928 = vlaneseq
    %v929 = vshrl.u32 %v928, 7
    %v930 = vsub.s32 0, %v929
    %v931 = vrot.slane %v851, %v930
    %v932 = vlaneseq
    %v933 = vshrl.u32 %v932, 7
    %v934 = vsub.s32 0, %v933
    %v935 = vrot.slane %v855, %v934
    %v936 = vlaneseq
    %v937 = vshrl.u32 %v936, 7
    %v938 = vsub.s32 0, %v937
    %v939 = vrot.slane %v859, %v938
    %v940 = vlaneseq
    %v941 = vshrl.u32 %v940, 7
    %v942 = vsub.s32 0, %v941
    %v943 = vrot.slane %v863, %v942
    %v944 = vlaneseq
    %v945 = vshrl.u32 %v944, 7
    %v946 = vsub.s32 0, %v945
    %v947 = vrot.slane %v867, %v946
    %v948 = vlaneseq
    %v949 = vshrl.u32 %v948, 7
    %v950 = vsub.s32 0, %v949
    %v951 = vrot.slane %v871, %v950
    %v952 = vlaneseq
    %v953 = vshrl.u32 %v952, 7
    %v954 = vsub.s32 0, %v953
    %v955 = vrot.slane %v875, %v954
    %957 = vset.pattern.permute.xlu0 0
    %958 = vperm.xlu0 %957, %v42
    %v959 = vpop.permute.xlu0 %958
    %962 = vset.pattern.permute.xlu0 0
    %963 = vperm.xlu0 %962, %v43
    %v964 = vpop.permute.xlu0 %963
    %v966 = vmul.f32 %v959, %v155
    %v967 = vmul.f32 %v959, %v159
    %v968 = vmul.f32 %v959, %v163
    %v969 = vmul.f32 %v959, %v167
    %v970 = vmul.f32 %v959, %v171
    %v971 = vmul.f32 %v959, %v175
    %v972 = vmul.f32 %v959, %v179
    %v973 = vmul.f32 %v959, %v183
    %v974 = vmul.f32 %v959, %v187
    %v975 = vmul.f32 %v959, %v191
    %v976 = vmul.f32 %v959, %v195
    %v977 = vmul.f32 %v959, %v199
    %v978 = vmul.f32 %v959, %v203
    %v979 = vmul.f32 %v959, %v207
    %v980 = vmul.f32 %v959, %v211
    %v981 = vmul.f32 %v959, %v215
    %v982 = vmul.f32 %v964, %v155
    %v983 = vmul.f32 %v964, %v159
    %v984 = vmul.f32 %v964, %v163
    %v985 = vmul.f32 %v964, %v167
    %v986 = vmul.f32 %v964, %v171
    %v987 = vmul.f32 %v964, %v175
    %v988 = vmul.f32 %v964, %v179
    %v989 = vmul.f32 %v964, %v183
    %v990 = vmul.f32 %v964, %v187
    %v991 = vmul.f32 %v964, %v191
    %v992 = vmul.f32 %v964, %v195
    %v993 = vmul.f32 %v964, %v199
    %v994 = vmul.f32 %v964, %v203
    %v995 = vmul.f32 %v964, %v207
    %v996 = vmul.f32 %v964, %v211
    %v997 = vmul.f32 %v964, %v215
    %998 = vset.pattern.permute.xlu0 1
    %999 = vperm.xlu0 %998, %v42
    %v1000 = vpop.permute.xlu0 %999
    %1002 = vset.pattern.permute.xlu0 1
    %1003 = vperm.xlu0 %1002, %v43
    %v1004 = vpop.permute.xlu0 %1003
    %v1006 = vmul.f32 %v1000, %v303
    %v1007 = vmul.f32 %v1000, %v307
    %v1008 = vmul.f32 %v1000, %v311
    %v1009 = vmul.f32 %v1000, %v315
    %v1010 = vmul.f32 %v1000, %v319
    %v1011 = vmul.f32 %v1000, %v323
    %v1012 = vmul.f32 %v1000, %v327
    %v1013 = vmul.f32 %v1000, %v331
    %v1014 = vmul.f32 %v1000, %v335
    %v1015 = vmul.f32 %v1000, %v339
    %v1016 = vmul.f32 %v1000, %v343
    %v1017 = vmul.f32 %v1000, %v347
    %v1018 = vmul.f32 %v1000, %v351
    %v1019 = vmul.f32 %v1000, %v355
    %v1020 = vmul.f32 %v1000, %v359
    %v1021 = vmul.f32 %v1000, %v363
    %v1022 = vmul.f32 %v1004, %v303
    %v1023 = vmul.f32 %v1004, %v307
    %v1024 = vmul.f32 %v1004, %v311
    %v1025 = vmul.f32 %v1004, %v315
    %v1026 = vmul.f32 %v1004, %v319
    %v1027 = vmul.f32 %v1004, %v323
    %v1028 = vmul.f32 %v1004, %v327
    %v1029 = vmul.f32 %v1004, %v331
    %v1030 = vmul.f32 %v1004, %v335
    %v1031 = vmul.f32 %v1004, %v339
    %v1032 = vmul.f32 %v1004, %v343
    %v1033 = vmul.f32 %v1004, %v347
    %v1034 = vmul.f32 %v1004, %v351
    %v1035 = vmul.f32 %v1004, %v355
    %v1036 = vmul.f32 %v1004, %v359
    %v1037 = vmul.f32 %v1004, %v363
    %v1038 = vadd.f32 %v966, %v1006
    %v1039 = vadd.f32 %v967, %v1007
    %v1040 = vadd.f32 %v968, %v1008
    %v1041 = vadd.f32 %v969, %v1009
    %v1042 = vadd.f32 %v970, %v1010
    %v1043 = vadd.f32 %v971, %v1011
    %v1044 = vadd.f32 %v972, %v1012
    %v1045 = vadd.f32 %v973, %v1013
    %v1046 = vadd.f32 %v974, %v1014
    %v1047 = vadd.f32 %v975, %v1015
    %v1048 = vadd.f32 %v976, %v1016
    %v1049 = vadd.f32 %v977, %v1017
    %v1050 = vadd.f32 %v978, %v1018
    %v1051 = vadd.f32 %v979, %v1019
    %v1052 = vadd.f32 %v980, %v1020
    %v1053 = vadd.f32 %v981, %v1021
    %v1054 = vadd.f32 %v982, %v1022
    %v1055 = vadd.f32 %v983, %v1023
    %v1056 = vadd.f32 %v984, %v1024
    %v1057 = vadd.f32 %v985, %v1025
    %v1058 = vadd.f32 %v986, %v1026
    %v1059 = vadd.f32 %v987, %v1027
    %v1060 = vadd.f32 %v988, %v1028
    %v1061 = vadd.f32 %v989, %v1029
    %v1062 = vadd.f32 %v990, %v1030
    %v1063 = vadd.f32 %v991, %v1031
    %v1064 = vadd.f32 %v992, %v1032
    %v1065 = vadd.f32 %v993, %v1033
    %v1066 = vadd.f32 %v994, %v1034
    %v1067 = vadd.f32 %v995, %v1035
    %v1068 = vadd.f32 %v996, %v1036
    %v1069 = vadd.f32 %v997, %v1037
    %1070 = vset.pattern.permute.xlu0 2
    %1071 = vperm.xlu0 %1070, %v42
    %v1072 = vpop.permute.xlu0 %1071
    %1074 = vset.pattern.permute.xlu0 2
    %1075 = vperm.xlu0 %1074, %v43
    %v1076 = vpop.permute.xlu0 %1075
    %v1078 = vmul.f32 %v1072, %v451
    %v1079 = vmul.f32 %v1072, %v455
    %v1080 = vmul.f32 %v1072, %v459
    %v1081 = vmul.f32 %v1072, %v463
    %v1082 = vmul.f32 %v1072, %v467
    %v1083 = vmul.f32 %v1072, %v471
    %v1084 = vmul.f32 %v1072, %v475
    %v1085 = vmul.f32 %v1072, %v479
    %v1086 = vmul.f32 %v1072, %v483
    %v1087 = vmul.f32 %v1072, %v487
    %v1088 = vmul.f32 %v1072, %v491
    %v1089 = vmul.f32 %v1072, %v495
    %v1090 = vmul.f32 %v1072, %v499
    %v1091 = vmul.f32 %v1072, %v503
    %v1092 = vmul.f32 %v1072, %v507
    %v1093 = vmul.f32 %v1072, %v511
    %v1094 = vmul.f32 %v1076, %v451
    %v1095 = vmul.f32 %v1076, %v455
    %v1096 = vmul.f32 %v1076, %v459
    %v1097 = vmul.f32 %v1076, %v463
    %v1098 = vmul.f32 %v1076, %v467
    %v1099 = vmul.f32 %v1076, %v471
    %v1100 = vmul.f32 %v1076, %v475
    %v1101 = vmul.f32 %v1076, %v479
    %v1102 = vmul.f32 %v1076, %v483
    %v1103 = vmul.f32 %v1076, %v487
    %v1104 = vmul.f32 %v1076, %v491
    %v1105 = vmul.f32 %v1076, %v495
    %v1106 = vmul.f32 %v1076, %v499
    %v1107 = vmul.f32 %v1076, %v503
    %v1108 = vmul.f32 %v1076, %v507
    %v1109 = vmul.f32 %v1076, %v511
    %v1110 = vadd.f32 %v1038, %v1078
    %v1111 = vadd.f32 %v1039, %v1079
    %v1112 = vadd.f32 %v1040, %v1080
    %v1113 = vadd.f32 %v1041, %v1081
    %v1114 = vadd.f32 %v1042, %v1082
    %v1115 = vadd.f32 %v1043, %v1083
    %v1116 = vadd.f32 %v1044, %v1084
    %v1117 = vadd.f32 %v1045, %v1085
    %v1118 = vadd.f32 %v1046, %v1086
    %v1119 = vadd.f32 %v1047, %v1087
    %v1120 = vadd.f32 %v1048, %v1088
    %v1121 = vadd.f32 %v1049, %v1089
    %v1122 = vadd.f32 %v1050, %v1090
    %v1123 = vadd.f32 %v1051, %v1091
    %v1124 = vadd.f32 %v1052, %v1092
    %v1125 = vadd.f32 %v1053, %v1093
    %v1126 = vadd.f32 %v1054, %v1094
    %v1127 = vadd.f32 %v1055, %v1095
    %v1128 = vadd.f32 %v1056, %v1096
    %v1129 = vadd.f32 %v1057, %v1097
    %v1130 = vadd.f32 %v1058, %v1098
    %v1131 = vadd.f32 %v1059, %v1099
    %v1132 = vadd.f32 %v1060, %v1100
    %v1133 = vadd.f32 %v1061, %v1101
    %v1134 = vadd.f32 %v1062, %v1102
    %v1135 = vadd.f32 %v1063, %v1103
    %v1136 = vadd.f32 %v1064, %v1104
    %v1137 = vadd.f32 %v1065, %v1105
    %v1138 = vadd.f32 %v1066, %v1106
    %v1139 = vadd.f32 %v1067, %v1107
    %v1140 = vadd.f32 %v1068, %v1108
    %v1141 = vadd.f32 %v1069, %v1109
    %1142 = vset.pattern.permute.xlu0 3
    %1143 = vperm.xlu0 %1142, %v42
    %v1144 = vpop.permute.xlu0 %1143
    %1146 = vset.pattern.permute.xlu0 3
    %1147 = vperm.xlu0 %1146, %v43
    %v1148 = vpop.permute.xlu0 %1147
    %v1150 = vadd.f32 %v1110, %v1144
    %v1151 = vadd.f32 %v1111, %v1144
    %v1152 = vadd.f32 %v1112, %v1144
    %v1153 = vadd.f32 %v1113, %v1144
    %v1154 = vadd.f32 %v1114, %v1144
    %v1155 = vadd.f32 %v1115, %v1144
    %v1156 = vadd.f32 %v1116, %v1144
    %v1157 = vadd.f32 %v1117, %v1144
    %v1158 = vadd.f32 %v1118, %v1144
    %v1159 = vadd.f32 %v1119, %v1144
    %v1160 = vadd.f32 %v1120, %v1144
    %v1161 = vadd.f32 %v1121, %v1144
    %v1162 = vadd.f32 %v1122, %v1144
    %v1163 = vadd.f32 %v1123, %v1144
    %v1164 = vadd.f32 %v1124, %v1144
    %v1165 = vadd.f32 %v1125, %v1144
    %v1166 = vadd.f32 %v1126, %v1148
    %v1167 = vadd.f32 %v1127, %v1148
    %v1168 = vadd.f32 %v1128, %v1148
    %v1169 = vadd.f32 %v1129, %v1148
    %v1170 = vadd.f32 %v1130, %v1148
    %v1171 = vadd.f32 %v1131, %v1148
    %v1172 = vadd.f32 %v1132, %v1148
    %v1173 = vadd.f32 %v1133, %v1148
    %v1174 = vadd.f32 %v1134, %v1148
    %v1175 = vadd.f32 %v1135, %v1148
    %v1176 = vadd.f32 %v1136, %v1148
    %v1177 = vadd.f32 %v1137, %v1148
    %v1178 = vadd.f32 %v1138, %v1148
    %v1179 = vadd.f32 %v1139, %v1148
    %v1180 = vadd.f32 %v1140, %v1148
    %v1181 = vadd.f32 %v1141, %v1148
    %v1182 = vmul.f32 %v959, %v303
    %v1183 = vmul.f32 %v959, %v307
    %v1184 = vmul.f32 %v959, %v311
    %v1185 = vmul.f32 %v959, %v315
    %v1186 = vmul.f32 %v959, %v319
    %v1187 = vmul.f32 %v959, %v323
    %v1188 = vmul.f32 %v959, %v327
    %v1189 = vmul.f32 %v959, %v331
    %v1190 = vmul.f32 %v959, %v335
    %v1191 = vmul.f32 %v959, %v339
    %v1192 = vmul.f32 %v959, %v343
    %v1193 = vmul.f32 %v959, %v347
    %v1194 = vmul.f32 %v959, %v351
    %v1195 = vmul.f32 %v959, %v355
    %v1196 = vmul.f32 %v959, %v359
    %v1197 = vmul.f32 %v959, %v363
    %v1198 = vmul.f32 %v964, %v303
    %v1199 = vmul.f32 %v964, %v307
    %v1200 = vmul.f32 %v964, %v311
    %v1201 = vmul.f32 %v964, %v315
    %v1202 = vmul.f32 %v964, %v319
    %v1203 = vmul.f32 %v964, %v323
    %v1204 = vmul.f32 %v964, %v327
    %v1205 = vmul.f32 %v964, %v331
    %v1206 = vmul.f32 %v964, %v335
    %v1207 = vmul.f32 %v964, %v339
    %v1208 = vmul.f32 %v964, %v343
    %v1209 = vmul.f32 %v964, %v347
    %v1210 = vmul.f32 %v964, %v351
    %v1211 = vmul.f32 %v964, %v355
    %v1212 = vmul.f32 %v964, %v359
    %v1213 = vmul.f32 %v964, %v363
    %v1214 = vmul.f32 %v1000, %v451
    %v1215 = vmul.f32 %v1000, %v455
    %v1216 = vmul.f32 %v1000, %v459
    %v1217 = vmul.f32 %v1000, %v463
    %v1218 = vmul.f32 %v1000, %v467
    %v1219 = vmul.f32 %v1000, %v471
    %v1220 = vmul.f32 %v1000, %v475
    %v1221 = vmul.f32 %v1000, %v479
    %v1222 = vmul.f32 %v1000, %v483
    %v1223 = vmul.f32 %v1000, %v487
    %v1224 = vmul.f32 %v1000, %v491
    %v1225 = vmul.f32 %v1000, %v495
    %v1226 = vmul.f32 %v1000, %v499
    %v1227 = vmul.f32 %v1000, %v503
    %v1228 = vmul.f32 %v1000, %v507
    %v1229 = vmul.f32 %v1000, %v511
    %v1230 = vmul.f32 %v1004, %v451
    %v1231 = vmul.f32 %v1004, %v455
    %v1232 = vmul.f32 %v1004, %v459
    %v1233 = vmul.f32 %v1004, %v463
    %v1234 = vmul.f32 %v1004, %v467
    %v1235 = vmul.f32 %v1004, %v471
    %v1236 = vmul.f32 %v1004, %v475
    %v1237 = vmul.f32 %v1004, %v479
    %v1238 = vmul.f32 %v1004, %v483
    %v1239 = vmul.f32 %v1004, %v487
    %v1240 = vmul.f32 %v1004, %v491
    %v1241 = vmul.f32 %v1004, %v495
    %v1242 = vmul.f32 %v1004, %v499
    %v1243 = vmul.f32 %v1004, %v503
    %v1244 = vmul.f32 %v1004, %v507
    %v1245 = vmul.f32 %v1004, %v511
    %v1246 = vadd.f32 %v1182, %v1214
    %v1247 = vadd.f32 %v1183, %v1215
    %v1248 = vadd.f32 %v1184, %v1216
    %v1249 = vadd.f32 %v1185, %v1217
    %v1250 = vadd.f32 %v1186, %v1218
    %v1251 = vadd.f32 %v1187, %v1219
    %v1252 = vadd.f32 %v1188, %v1220
    %v1253 = vadd.f32 %v1189, %v1221
    %v1254 = vadd.f32 %v1190, %v1222
    %v1255 = vadd.f32 %v1191, %v1223
    %v1256 = vadd.f32 %v1192, %v1224
    %v1257 = vadd.f32 %v1193, %v1225
    %v1258 = vadd.f32 %v1194, %v1226
    %v1259 = vadd.f32 %v1195, %v1227
    %v1260 = vadd.f32 %v1196, %v1228
    %v1261 = vadd.f32 %v1197, %v1229
    %v1262 = vadd.f32 %v1198, %v1230
    %v1263 = vadd.f32 %v1199, %v1231
    %v1264 = vadd.f32 %v1200, %v1232
    %v1265 = vadd.f32 %v1201, %v1233
    %v1266 = vadd.f32 %v1202, %v1234
    %v1267 = vadd.f32 %v1203, %v1235
    %v1268 = vadd.f32 %v1204, %v1236
    %v1269 = vadd.f32 %v1205, %v1237
    %v1270 = vadd.f32 %v1206, %v1238
    %v1271 = vadd.f32 %v1207, %v1239
    %v1272 = vadd.f32 %v1208, %v1240
    %v1273 = vadd.f32 %v1209, %v1241
    %v1274 = vadd.f32 %v1210, %v1242
    %v1275 = vadd.f32 %v1211, %v1243
    %v1276 = vadd.f32 %v1212, %v1244
    %v1277 = vadd.f32 %v1213, %v1245
    %v1278 = vmul.f32 %v1072, %v599
    %v1279 = vmul.f32 %v1072, %v603
    %v1280 = vmul.f32 %v1072, %v607
    %v1281 = vmul.f32 %v1072, %v611
    %v1282 = vmul.f32 %v1072, %v615
    %v1283 = vmul.f32 %v1072, %v619
    %v1284 = vmul.f32 %v1072, %v623
    %v1285 = vmul.f32 %v1072, %v627
    %v1286 = vmul.f32 %v1072, %v631
    %v1287 = vmul.f32 %v1072, %v635
    %v1288 = vmul.f32 %v1072, %v639
    %v1289 = vmul.f32 %v1072, %v643
    %v1290 = vmul.f32 %v1072, %v647
    %v1291 = vmul.f32 %v1072, %v651
    %v1292 = vmul.f32 %v1072, %v655
    %v1293 = vmul.f32 %v1072, %v659
    %v1294 = vmul.f32 %v1076, %v599
    %v1295 = vmul.f32 %v1076, %v603
    %v1296 = vmul.f32 %v1076, %v607
    %v1297 = vmul.f32 %v1076, %v611
    %v1298 = vmul.f32 %v1076, %v615
    %v1299 = vmul.f32 %v1076, %v619
    %v1300 = vmul.f32 %v1076, %v623
    %v1301 = vmul.f32 %v1076, %v627
    %v1302 = vmul.f32 %v1076, %v631
    %v1303 = vmul.f32 %v1076, %v635
    %v1304 = vmul.f32 %v1076, %v639
    %v1305 = vmul.f32 %v1076, %v643
    %v1306 = vmul.f32 %v1076, %v647
    %v1307 = vmul.f32 %v1076, %v651
    %v1308 = vmul.f32 %v1076, %v655
    %v1309 = vmul.f32 %v1076, %v659
    %v1310 = vadd.f32 %v1246, %v1278
    %v1311 = vadd.f32 %v1247, %v1279
    %v1312 = vadd.f32 %v1248, %v1280
    %v1313 = vadd.f32 %v1249, %v1281
    %v1314 = vadd.f32 %v1250, %v1282
    %v1315 = vadd.f32 %v1251, %v1283
    %v1316 = vadd.f32 %v1252, %v1284
    %v1317 = vadd.f32 %v1253, %v1285
    %v1318 = vadd.f32 %v1254, %v1286
    %v1319 = vadd.f32 %v1255, %v1287
    %v1320 = vadd.f32 %v1256, %v1288
    %v1321 = vadd.f32 %v1257, %v1289
    %v1322 = vadd.f32 %v1258, %v1290
    %v1323 = vadd.f32 %v1259, %v1291
    %v1324 = vadd.f32 %v1260, %v1292
    %v1325 = vadd.f32 %v1261, %v1293
    %v1326 = vadd.f32 %v1262, %v1294
    %v1327 = vadd.f32 %v1263, %v1295
    %v1328 = vadd.f32 %v1264, %v1296
    %v1329 = vadd.f32 %v1265, %v1297
    %v1330 = vadd.f32 %v1266, %v1298
    %v1331 = vadd.f32 %v1267, %v1299
    %v1332 = vadd.f32 %v1268, %v1300
    %v1333 = vadd.f32 %v1269, %v1301
    %v1334 = vadd.f32 %v1270, %v1302
    %v1335 = vadd.f32 %v1271, %v1303
    %v1336 = vadd.f32 %v1272, %v1304
    %v1337 = vadd.f32 %v1273, %v1305
    %v1338 = vadd.f32 %v1274, %v1306
    %v1339 = vadd.f32 %v1275, %v1307
    %v1340 = vadd.f32 %v1276, %v1308
    %v1341 = vadd.f32 %v1277, %v1309
    %v1342 = vadd.f32 %v1310, %v1144
    %v1343 = vadd.f32 %v1311, %v1144
    %v1344 = vadd.f32 %v1312, %v1144
    %v1345 = vadd.f32 %v1313, %v1144
    %v1346 = vadd.f32 %v1314, %v1144
    %v1347 = vadd.f32 %v1315, %v1144
    %v1348 = vadd.f32 %v1316, %v1144
    %v1349 = vadd.f32 %v1317, %v1144
    %v1350 = vadd.f32 %v1318, %v1144
    %v1351 = vadd.f32 %v1319, %v1144
    %v1352 = vadd.f32 %v1320, %v1144
    %v1353 = vadd.f32 %v1321, %v1144
    %v1354 = vadd.f32 %v1322, %v1144
    %v1355 = vadd.f32 %v1323, %v1144
    %v1356 = vadd.f32 %v1324, %v1144
    %v1357 = vadd.f32 %v1325, %v1144
    %v1358 = vadd.f32 %v1326, %v1148
    %v1359 = vadd.f32 %v1327, %v1148
    %v1360 = vadd.f32 %v1328, %v1148
    %v1361 = vadd.f32 %v1329, %v1148
    %v1362 = vadd.f32 %v1330, %v1148
    %v1363 = vadd.f32 %v1331, %v1148
    %v1364 = vadd.f32 %v1332, %v1148
    %v1365 = vadd.f32 %v1333, %v1148
    %v1366 = vadd.f32 %v1334, %v1148
    %v1367 = vadd.f32 %v1335, %v1148
    %v1368 = vadd.f32 %v1336, %v1148
    %v1369 = vadd.f32 %v1337, %v1148
    %v1370 = vadd.f32 %v1338, %v1148
    %v1371 = vadd.f32 %v1339, %v1148
    %v1372 = vadd.f32 %v1340, %v1148
    %v1373 = vadd.f32 %v1341, %v1148
    %v1374 = vmax.f32 %v1150, %v1342
    %v1375 = vmax.f32 %v1151, %v1343
    %v1376 = vmax.f32 %v1152, %v1344
    %v1377 = vmax.f32 %v1153, %v1345
    %v1378 = vmax.f32 %v1154, %v1346
    %v1379 = vmax.f32 %v1155, %v1347
    %v1380 = vmax.f32 %v1156, %v1348
    %v1381 = vmax.f32 %v1157, %v1349
    %v1382 = vmax.f32 %v1158, %v1350
    %v1383 = vmax.f32 %v1159, %v1351
    %v1384 = vmax.f32 %v1160, %v1352
    %v1385 = vmax.f32 %v1161, %v1353
    %v1386 = vmax.f32 %v1162, %v1354
    %v1387 = vmax.f32 %v1163, %v1355
    %v1388 = vmax.f32 %v1164, %v1356
    %v1389 = vmax.f32 %v1165, %v1357
    %v1390 = vmax.f32 %v1166, %v1358
    %v1391 = vmax.f32 %v1167, %v1359
    %v1392 = vmax.f32 %v1168, %v1360
    %v1393 = vmax.f32 %v1169, %v1361
    %v1394 = vmax.f32 %v1170, %v1362
    %v1395 = vmax.f32 %v1171, %v1363
    %v1396 = vmax.f32 %v1172, %v1364
    %v1397 = vmax.f32 %v1173, %v1365
    %v1398 = vmax.f32 %v1174, %v1366
    %v1399 = vmax.f32 %v1175, %v1367
    %v1400 = vmax.f32 %v1176, %v1368
    %v1401 = vmax.f32 %v1177, %v1369
    %v1402 = vmax.f32 %v1178, %v1370
    %v1403 = vmax.f32 %v1179, %v1371
    %v1404 = vmax.f32 %v1180, %v1372
    %v1405 = vmax.f32 %v1181, %v1373
    %v1406 = vmul.f32 %v959, %v451
    %v1407 = vmul.f32 %v959, %v455
    %v1408 = vmul.f32 %v959, %v459
    %v1409 = vmul.f32 %v959, %v463
    %v1410 = vmul.f32 %v959, %v467
    %v1411 = vmul.f32 %v959, %v471
    %v1412 = vmul.f32 %v959, %v475
    %v1413 = vmul.f32 %v959, %v479
    %v1414 = vmul.f32 %v959, %v483
    %v1415 = vmul.f32 %v959, %v487
    %v1416 = vmul.f32 %v959, %v491
    %v1417 = vmul.f32 %v959, %v495
    %v1418 = vmul.f32 %v959, %v499
    %v1419 = vmul.f32 %v959, %v503
    %v1420 = vmul.f32 %v959, %v507
    %v1421 = vmul.f32 %v959, %v511
    %v1422 = vmul.f32 %v964, %v451
    %v1423 = vmul.f32 %v964, %v455
    %v1424 = vmul.f32 %v964, %v459
    %v1425 = vmul.f32 %v964, %v463
    %v1426 = vmul.f32 %v964, %v467
    %v1427 = vmul.f32 %v964, %v471
    %v1428 = vmul.f32 %v964, %v475
    %v1429 = vmul.f32 %v964, %v479
    %v1430 = vmul.f32 %v964, %v483
    %v1431 = vmul.f32 %v964, %v487
    %v1432 = vmul.f32 %v964, %v491
    %v1433 = vmul.f32 %v964, %v495
    %v1434 = vmul.f32 %v964, %v499
    %v1435 = vmul.f32 %v964, %v503
    %v1436 = vmul.f32 %v964, %v507
    %v1437 = vmul.f32 %v964, %v511
    %v1438 = vmul.f32 %v1000, %v599
    %v1439 = vmul.f32 %v1000, %v603
    %v1440 = vmul.f32 %v1000, %v607
    %v1441 = vmul.f32 %v1000, %v611
    %v1442 = vmul.f32 %v1000, %v615
    %v1443 = vmul.f32 %v1000, %v619
    %v1444 = vmul.f32 %v1000, %v623
    %v1445 = vmul.f32 %v1000, %v627
    %v1446 = vmul.f32 %v1000, %v631
    %v1447 = vmul.f32 %v1000, %v635
    %v1448 = vmul.f32 %v1000, %v639
    %v1449 = vmul.f32 %v1000, %v643
    %v1450 = vmul.f32 %v1000, %v647
    %v1451 = vmul.f32 %v1000, %v651
    %v1452 = vmul.f32 %v1000, %v655
    %v1453 = vmul.f32 %v1000, %v659
    %v1454 = vmul.f32 %v1004, %v599
    %v1455 = vmul.f32 %v1004, %v603
    %v1456 = vmul.f32 %v1004, %v607
    %v1457 = vmul.f32 %v1004, %v611
    %v1458 = vmul.f32 %v1004, %v615
    %v1459 = vmul.f32 %v1004, %v619
    %v1460 = vmul.f32 %v1004, %v623
    %v1461 = vmul.f32 %v1004, %v627
    %v1462 = vmul.f32 %v1004, %v631
    %v1463 = vmul.f32 %v1004, %v635
    %v1464 = vmul.f32 %v1004, %v639
    %v1465 = vmul.f32 %v1004, %v643
    %v1466 = vmul.f32 %v1004, %v647
    %v1467 = vmul.f32 %v1004, %v651
    %v1468 = vmul.f32 %v1004, %v655
    %v1469 = vmul.f32 %v1004, %v659
    %v1470 = vadd.f32 %v1406, %v1438
    %v1471 = vadd.f32 %v1407, %v1439
    %v1472 = vadd.f32 %v1408, %v1440
    %v1473 = vadd.f32 %v1409, %v1441
    %v1474 = vadd.f32 %v1410, %v1442
    %v1475 = vadd.f32 %v1411, %v1443
    %v1476 = vadd.f32 %v1412, %v1444
    %v1477 = vadd.f32 %v1413, %v1445
    %v1478 = vadd.f32 %v1414, %v1446
    %v1479 = vadd.f32 %v1415, %v1447
    %v1480 = vadd.f32 %v1416, %v1448
    %v1481 = vadd.f32 %v1417, %v1449
    %v1482 = vadd.f32 %v1418, %v1450
    %v1483 = vadd.f32 %v1419, %v1451
    %v1484 = vadd.f32 %v1420, %v1452
    %v1485 = vadd.f32 %v1421, %v1453
    %v1486 = vadd.f32 %v1422, %v1454
    %v1487 = vadd.f32 %v1423, %v1455
    %v1488 = vadd.f32 %v1424, %v1456
    %v1489 = vadd.f32 %v1425, %v1457
    %v1490 = vadd.f32 %v1426, %v1458
    %v1491 = vadd.f32 %v1427, %v1459
    %v1492 = vadd.f32 %v1428, %v1460
    %v1493 = vadd.f32 %v1429, %v1461
    %v1494 = vadd.f32 %v1430, %v1462
    %v1495 = vadd.f32 %v1431, %v1463
    %v1496 = vadd.f32 %v1432, %v1464
    %v1497 = vadd.f32 %v1433, %v1465
    %v1498 = vadd.f32 %v1434, %v1466
    %v1499 = vadd.f32 %v1435, %v1467
    %v1500 = vadd.f32 %v1436, %v1468
    %v1501 = vadd.f32 %v1437, %v1469
    %v1502 = vmul.f32 %v1072, %v747
    %v1503 = vmul.f32 %v1072, %v751
    %v1504 = vmul.f32 %v1072, %v755
    %v1505 = vmul.f32 %v1072, %v759
    %v1506 = vmul.f32 %v1072, %v763
    %v1507 = vmul.f32 %v1072, %v767
    %v1508 = vmul.f32 %v1072, %v771
    %v1509 = vmul.f32 %v1072, %v775
    %v1510 = vmul.f32 %v1072, %v779
    %v1511 = vmul.f32 %v1072, %v783
    %v1512 = vmul.f32 %v1072, %v787
    %v1513 = vmul.f32 %v1072, %v791
    %v1514 = vmul.f32 %v1072, %v795
    %v1515 = vmul.f32 %v1072, %v799
    %v1516 = vmul.f32 %v1072, %v803
    %v1517 = vmul.f32 %v1072, %v807
    %v1518 = vmul.f32 %v1076, %v747
    %v1519 = vmul.f32 %v1076, %v751
    %v1520 = vmul.f32 %v1076, %v755
    %v1521 = vmul.f32 %v1076, %v759
    %v1522 = vmul.f32 %v1076, %v763
    %v1523 = vmul.f32 %v1076, %v767
    %v1524 = vmul.f32 %v1076, %v771
    %v1525 = vmul.f32 %v1076, %v775
    %v1526 = vmul.f32 %v1076, %v779
    %v1527 = vmul.f32 %v1076, %v783
    %v1528 = vmul.f32 %v1076, %v787
    %v1529 = vmul.f32 %v1076, %v791
    %v1530 = vmul.f32 %v1076, %v795
    %v1531 = vmul.f32 %v1076, %v799
    %v1532 = vmul.f32 %v1076, %v803
    %v1533 = vmul.f32 %v1076, %v807
    %v1534 = vadd.f32 %v1470, %v1502
    %v1535 = vadd.f32 %v1471, %v1503
    %v1536 = vadd.f32 %v1472, %v1504
    %v1537 = vadd.f32 %v1473, %v1505
    %v1538 = vadd.f32 %v1474, %v1506
    %v1539 = vadd.f32 %v1475, %v1507
    %v1540 = vadd.f32 %v1476, %v1508
    %v1541 = vadd.f32 %v1477, %v1509
    %v1542 = vadd.f32 %v1478, %v1510
    %v1543 = vadd.f32 %v1479, %v1511
    %v1544 = vadd.f32 %v1480, %v1512
    %v1545 = vadd.f32 %v1481, %v1513
    %v1546 = vadd.f32 %v1482, %v1514
    %v1547 = vadd.f32 %v1483, %v1515
    %v1548 = vadd.f32 %v1484, %v1516
    %v1549 = vadd.f32 %v1485, %v1517
    %v1550 = vadd.f32 %v1486, %v1518
    %v1551 = vadd.f32 %v1487, %v1519
    %v1552 = vadd.f32 %v1488, %v1520
    %v1553 = vadd.f32 %v1489, %v1521
    %v1554 = vadd.f32 %v1490, %v1522
    %v1555 = vadd.f32 %v1491, %v1523
    %v1556 = vadd.f32 %v1492, %v1524
    %v1557 = vadd.f32 %v1493, %v1525
    %v1558 = vadd.f32 %v1494, %v1526
    %v1559 = vadd.f32 %v1495, %v1527
    %v1560 = vadd.f32 %v1496, %v1528
    %v1561 = vadd.f32 %v1497, %v1529
    %v1562 = vadd.f32 %v1498, %v1530
    %v1563 = vadd.f32 %v1499, %v1531
    %v1564 = vadd.f32 %v1500, %v1532
    %v1565 = vadd.f32 %v1501, %v1533
    %v1566 = vadd.f32 %v1534, %v1144
    %v1567 = vadd.f32 %v1535, %v1144
    %v1568 = vadd.f32 %v1536, %v1144
    %v1569 = vadd.f32 %v1537, %v1144
    %v1570 = vadd.f32 %v1538, %v1144
    %v1571 = vadd.f32 %v1539, %v1144
    %v1572 = vadd.f32 %v1540, %v1144
    %v1573 = vadd.f32 %v1541, %v1144
    %v1574 = vadd.f32 %v1542, %v1144
    %v1575 = vadd.f32 %v1543, %v1144
    %v1576 = vadd.f32 %v1544, %v1144
    %v1577 = vadd.f32 %v1545, %v1144
    %v1578 = vadd.f32 %v1546, %v1144
    %v1579 = vadd.f32 %v1547, %v1144
    %v1580 = vadd.f32 %v1548, %v1144
    %v1581 = vadd.f32 %v1549, %v1144
    %v1582 = vadd.f32 %v1550, %v1148
    %v1583 = vadd.f32 %v1551, %v1148
    %v1584 = vadd.f32 %v1552, %v1148
    %v1585 = vadd.f32 %v1553, %v1148
    %v1586 = vadd.f32 %v1554, %v1148
    %v1587 = vadd.f32 %v1555, %v1148
    %v1588 = vadd.f32 %v1556, %v1148
    %v1589 = vadd.f32 %v1557, %v1148
    %v1590 = vadd.f32 %v1558, %v1148
    %v1591 = vadd.f32 %v1559, %v1148
    %v1592 = vadd.f32 %v1560, %v1148
    %v1593 = vadd.f32 %v1561, %v1148
    %v1594 = vadd.f32 %v1562, %v1148
    %v1595 = vadd.f32 %v1563, %v1148
    %v1596 = vadd.f32 %v1564, %v1148
    %v1597 = vadd.f32 %v1565, %v1148
    %v1598 = vmax.f32 %v1374, %v1566
    %v1599 = vmax.f32 %v1375, %v1567
    %v1600 = vmax.f32 %v1376, %v1568
    %v1601 = vmax.f32 %v1377, %v1569
    %v1602 = vmax.f32 %v1378, %v1570
    %v1603 = vmax.f32 %v1379, %v1571
    %v1604 = vmax.f32 %v1380, %v1572
    %v1605 = vmax.f32 %v1381, %v1573
    %v1606 = vmax.f32 %v1382, %v1574
    %v1607 = vmax.f32 %v1383, %v1575
    %v1608 = vmax.f32 %v1384, %v1576
    %v1609 = vmax.f32 %v1385, %v1577
    %v1610 = vmax.f32 %v1386, %v1578
    %v1611 = vmax.f32 %v1387, %v1579
    %v1612 = vmax.f32 %v1388, %v1580
    %v1613 = vmax.f32 %v1389, %v1581
    %v1614 = vmax.f32 %v1390, %v1582
    %v1615 = vmax.f32 %v1391, %v1583
    %v1616 = vmax.f32 %v1392, %v1584
    %v1617 = vmax.f32 %v1393, %v1585
    %v1618 = vmax.f32 %v1394, %v1586
    %v1619 = vmax.f32 %v1395, %v1587
    %v1620 = vmax.f32 %v1396, %v1588
    %v1621 = vmax.f32 %v1397, %v1589
    %v1622 = vmax.f32 %v1398, %v1590
    %v1623 = vmax.f32 %v1399, %v1591
    %v1624 = vmax.f32 %v1400, %v1592
    %v1625 = vmax.f32 %v1401, %v1593
    %v1626 = vmax.f32 %v1402, %v1594
    %v1627 = vmax.f32 %v1403, %v1595
    %v1628 = vmax.f32 %v1404, %v1596
    %v1629 = vmax.f32 %v1405, %v1597
    %v1630 = vmul.f32 %v959, %v599
    %v1631 = vmul.f32 %v959, %v603
    %v1632 = vmul.f32 %v959, %v607
    %v1633 = vmul.f32 %v959, %v611
    %v1634 = vmul.f32 %v959, %v615
    %v1635 = vmul.f32 %v959, %v619
    %v1636 = vmul.f32 %v959, %v623
    %v1637 = vmul.f32 %v959, %v627
    %v1638 = vmul.f32 %v959, %v631
    %v1639 = vmul.f32 %v959, %v635
    %v1640 = vmul.f32 %v959, %v639
    %v1641 = vmul.f32 %v959, %v643
    %v1642 = vmul.f32 %v959, %v647
    %v1643 = vmul.f32 %v959, %v651
    %v1644 = vmul.f32 %v959, %v655
    %v1645 = vmul.f32 %v959, %v659
    %v1646 = vmul.f32 %v964, %v599
    %v1647 = vmul.f32 %v964, %v603
    %v1648 = vmul.f32 %v964, %v607
    %v1649 = vmul.f32 %v964, %v611
    %v1650 = vmul.f32 %v964, %v615
    %v1651 = vmul.f32 %v964, %v619
    %v1652 = vmul.f32 %v964, %v623
    %v1653 = vmul.f32 %v964, %v627
    %v1654 = vmul.f32 %v964, %v631
    %v1655 = vmul.f32 %v964, %v635
    %v1656 = vmul.f32 %v964, %v639
    %v1657 = vmul.f32 %v964, %v643
    %v1658 = vmul.f32 %v964, %v647
    %v1659 = vmul.f32 %v964, %v651
    %v1660 = vmul.f32 %v964, %v655
    %v1661 = vmul.f32 %v964, %v659
    %v1662 = vmul.f32 %v1000, %v747
    %v1663 = vmul.f32 %v1000, %v751
    %v1664 = vmul.f32 %v1000, %v755
    %v1665 = vmul.f32 %v1000, %v759
    %v1666 = vmul.f32 %v1000, %v763
    %v1667 = vmul.f32 %v1000, %v767
    %v1668 = vmul.f32 %v1000, %v771
    %v1669 = vmul.f32 %v1000, %v775
    %v1670 = vmul.f32 %v1000, %v779
    %v1671 = vmul.f32 %v1000, %v783
    %v1672 = vmul.f32 %v1000, %v787
    %v1673 = vmul.f32 %v1000, %v791
    %v1674 = vmul.f32 %v1000, %v795
    %v1675 = vmul.f32 %v1000, %v799
    %v1676 = vmul.f32 %v1000, %v803
    %v1677 = vmul.f32 %v1000, %v807
    %v1678 = vmul.f32 %v1004, %v747
    %v1679 = vmul.f32 %v1004, %v751
    %v1680 = vmul.f32 %v1004, %v755
    %v1681 = vmul.f32 %v1004, %v759
    %v1682 = vmul.f32 %v1004, %v763
    %v1683 = vmul.f32 %v1004, %v767
    %v1684 = vmul.f32 %v1004, %v771
    %v1685 = vmul.f32 %v1004, %v775
    %v1686 = vmul.f32 %v1004, %v779
    %v1687 = vmul.f32 %v1004, %v783
    %v1688 = vmul.f32 %v1004, %v787
    %v1689 = vmul.f32 %v1004, %v791
    %v1690 = vmul.f32 %v1004, %v795
    %v1691 = vmul.f32 %v1004, %v799
    %v1692 = vmul.f32 %v1004, %v803
    %v1693 = vmul.f32 %v1004, %v807
    %v1694 = vadd.f32 %v1630, %v1662
    %v1695 = vadd.f32 %v1631, %v1663
    %v1696 = vadd.f32 %v1632, %v1664
    %v1697 = vadd.f32 %v1633, %v1665
    %v1698 = vadd.f32 %v1634, %v1666
    %v1699 = vadd.f32 %v1635, %v1667
    %v1700 = vadd.f32 %v1636, %v1668
    %v1701 = vadd.f32 %v1637, %v1669
    %v1702 = vadd.f32 %v1638, %v1670
    %v1703 = vadd.f32 %v1639, %v1671
    %v1704 = vadd.f32 %v1640, %v1672
    %v1705 = vadd.f32 %v1641, %v1673
    %v1706 = vadd.f32 %v1642, %v1674
    %v1707 = vadd.f32 %v1643, %v1675
    %v1708 = vadd.f32 %v1644, %v1676
    %v1709 = vadd.f32 %v1645, %v1677
    %v1710 = vadd.f32 %v1646, %v1678
    %v1711 = vadd.f32 %v1647, %v1679
    %v1712 = vadd.f32 %v1648, %v1680
    %v1713 = vadd.f32 %v1649, %v1681
    %v1714 = vadd.f32 %v1650, %v1682
    %v1715 = vadd.f32 %v1651, %v1683
    %v1716 = vadd.f32 %v1652, %v1684
    %v1717 = vadd.f32 %v1653, %v1685
    %v1718 = vadd.f32 %v1654, %v1686
    %v1719 = vadd.f32 %v1655, %v1687
    %v1720 = vadd.f32 %v1656, %v1688
    %v1721 = vadd.f32 %v1657, %v1689
    %v1722 = vadd.f32 %v1658, %v1690
    %v1723 = vadd.f32 %v1659, %v1691
    %v1724 = vadd.f32 %v1660, %v1692
    %v1725 = vadd.f32 %v1661, %v1693
    %v1726 = vmul.f32 %v1072, %v895
    %v1727 = vmul.f32 %v1072, %v899
    %v1728 = vmul.f32 %v1072, %v903
    %v1729 = vmul.f32 %v1072, %v907
    %v1730 = vmul.f32 %v1072, %v911
    %v1731 = vmul.f32 %v1072, %v915
    %v1732 = vmul.f32 %v1072, %v919
    %v1733 = vmul.f32 %v1072, %v923
    %v1734 = vmul.f32 %v1072, %v927
    %v1735 = vmul.f32 %v1072, %v931
    %v1736 = vmul.f32 %v1072, %v935
    %v1737 = vmul.f32 %v1072, %v939
    %v1738 = vmul.f32 %v1072, %v943
    %v1739 = vmul.f32 %v1072, %v947
    %v1740 = vmul.f32 %v1072, %v951
    %v1741 = vmul.f32 %v1072, %v955
    %v1742 = vmul.f32 %v1076, %v895
    %v1743 = vmul.f32 %v1076, %v899
    %v1744 = vmul.f32 %v1076, %v903
    %v1745 = vmul.f32 %v1076, %v907
    %v1746 = vmul.f32 %v1076, %v911
    %v1747 = vmul.f32 %v1076, %v915
    %v1748 = vmul.f32 %v1076, %v919
    %v1749 = vmul.f32 %v1076, %v923
    %v1750 = vmul.f32 %v1076, %v927
    %v1751 = vmul.f32 %v1076, %v931
    %v1752 = vmul.f32 %v1076, %v935
    %v1753 = vmul.f32 %v1076, %v939
    %v1754 = vmul.f32 %v1076, %v943
    %v1755 = vmul.f32 %v1076, %v947
    %v1756 = vmul.f32 %v1076, %v951
    %v1757 = vmul.f32 %v1076, %v955
    %v1758 = vadd.f32 %v1694, %v1726
    %v1759 = vadd.f32 %v1695, %v1727
    %v1760 = vadd.f32 %v1696, %v1728
    %v1761 = vadd.f32 %v1697, %v1729
    %v1762 = vadd.f32 %v1698, %v1730
    %v1763 = vadd.f32 %v1699, %v1731
    %v1764 = vadd.f32 %v1700, %v1732
    %v1765 = vadd.f32 %v1701, %v1733
    %v1766 = vadd.f32 %v1702, %v1734
    %v1767 = vadd.f32 %v1703, %v1735
    %v1768 = vadd.f32 %v1704, %v1736
    %v1769 = vadd.f32 %v1705, %v1737
    %v1770 = vadd.f32 %v1706, %v1738
    %v1771 = vadd.f32 %v1707, %v1739
    %v1772 = vadd.f32 %v1708, %v1740
    %v1773 = vadd.f32 %v1709, %v1741
    %v1774 = vadd.f32 %v1710, %v1742
    %v1775 = vadd.f32 %v1711, %v1743
    %v1776 = vadd.f32 %v1712, %v1744
    %v1777 = vadd.f32 %v1713, %v1745
    %v1778 = vadd.f32 %v1714, %v1746
    %v1779 = vadd.f32 %v1715, %v1747
    %v1780 = vadd.f32 %v1716, %v1748
    %v1781 = vadd.f32 %v1717, %v1749
    %v1782 = vadd.f32 %v1718, %v1750
    %v1783 = vadd.f32 %v1719, %v1751
    %v1784 = vadd.f32 %v1720, %v1752
    %v1785 = vadd.f32 %v1721, %v1753
    %v1786 = vadd.f32 %v1722, %v1754
    %v1787 = vadd.f32 %v1723, %v1755
    %v1788 = vadd.f32 %v1724, %v1756
    %v1789 = vadd.f32 %v1725, %v1757
    %v1790 = vadd.f32 %v1758, %v1144
    %v1791 = vadd.f32 %v1759, %v1144
    %v1792 = vadd.f32 %v1760, %v1144
    %v1793 = vadd.f32 %v1761, %v1144
    %v1794 = vadd.f32 %v1762, %v1144
    %v1795 = vadd.f32 %v1763, %v1144
    %v1796 = vadd.f32 %v1764, %v1144
    %v1797 = vadd.f32 %v1765, %v1144
    %v1798 = vadd.f32 %v1766, %v1144
    %v1799 = vadd.f32 %v1767, %v1144
    %v1800 = vadd.f32 %v1768, %v1144
    %v1801 = vadd.f32 %v1769, %v1144
    %v1802 = vadd.f32 %v1770, %v1144
    %v1803 = vadd.f32 %v1771, %v1144
    %v1804 = vadd.f32 %v1772, %v1144
    %v1805 = vadd.f32 %v1773, %v1144
    %v1806 = vadd.f32 %v1774, %v1148
    %v1807 = vadd.f32 %v1775, %v1148
    %v1808 = vadd.f32 %v1776, %v1148
    %v1809 = vadd.f32 %v1777, %v1148
    %v1810 = vadd.f32 %v1778, %v1148
    %v1811 = vadd.f32 %v1779, %v1148
    %v1812 = vadd.f32 %v1780, %v1148
    %v1813 = vadd.f32 %v1781, %v1148
    %v1814 = vadd.f32 %v1782, %v1148
    %v1815 = vadd.f32 %v1783, %v1148
    %v1816 = vadd.f32 %v1784, %v1148
    %v1817 = vadd.f32 %v1785, %v1148
    %v1818 = vadd.f32 %v1786, %v1148
    %v1819 = vadd.f32 %v1787, %v1148
    %v1820 = vadd.f32 %v1788, %v1148
    %v1821 = vadd.f32 %v1789, %v1148
    %v1822 = vmax.f32 %v1598, %v1790
    %v1823 = vmax.f32 %v1599, %v1791
    %v1824 = vmax.f32 %v1600, %v1792
    %v1825 = vmax.f32 %v1601, %v1793
    %v1826 = vmax.f32 %v1602, %v1794
    %v1827 = vmax.f32 %v1603, %v1795
    %v1828 = vmax.f32 %v1604, %v1796
    %v1829 = vmax.f32 %v1605, %v1797
    %v1830 = vmax.f32 %v1606, %v1798
    %v1831 = vmax.f32 %v1607, %v1799
    %v1832 = vmax.f32 %v1608, %v1800
    %v1833 = vmax.f32 %v1609, %v1801
    %v1834 = vmax.f32 %v1610, %v1802
    %v1835 = vmax.f32 %v1611, %v1803
    %v1836 = vmax.f32 %v1612, %v1804
    %v1837 = vmax.f32 %v1613, %v1805
    %v1838 = vmax.f32 %v1614, %v1806
    %v1839 = vmax.f32 %v1615, %v1807
    %v1840 = vmax.f32 %v1616, %v1808
    %v1841 = vmax.f32 %v1617, %v1809
    %v1842 = vmax.f32 %v1618, %v1810
    %v1843 = vmax.f32 %v1619, %v1811
    %v1844 = vmax.f32 %v1620, %v1812
    %v1845 = vmax.f32 %v1621, %v1813
    %v1846 = vmax.f32 %v1622, %v1814
    %v1847 = vmax.f32 %v1623, %v1815
    %v1848 = vmax.f32 %v1624, %v1816
    %v1849 = vmax.f32 %v1625, %v1817
    %v1850 = vmax.f32 %v1626, %v1818
    %v1851 = vmax.f32 %v1627, %v1819
    %v1852 = vmax.f32 %v1628, %v1820
    %v1853 = vmax.f32 %v1629, %v1821
    %v1854 = vlaneseq
    %v1855 = vshrl.u32 %v1854, 7
    %v1856 = vsub.s32 1, %v1855
    %v1857 = vrot.slane %v44, %v1856
    %v1858 = vlaneseq
    %v1859 = vshrl.u32 %v1858, 7
    %v1860 = vsub.s32 3, %v1859
    %v1861 = vrot.slane %v44, %v1860
    %v1862 = vlaneseq
    %v1863 = vshrl.u32 %v1862, 7
    %v1864 = vsub.s32 5, %v1863
    %v1865 = vrot.slane %v44, %v1864
    %v1866 = vlaneseq
    %v1867 = vshrl.u32 %v1866, 7
    %v1868 = vsub.s32 7, %v1867
    %v1869 = vrot.slane %v44, %v1868
    %v1870 = vlaneseq
    %v1871 = vshrl.u32 %v1870, 7
    %v1872 = vsub.s32 1, %v1871
    %v1873 = vrot.slane %v45, %v1872
    %v1874 = vlaneseq
    %v1875 = vshrl.u32 %v1874, 7
    %v1876 = vsub.s32 3, %v1875
    %v1877 = vrot.slane %v45, %v1876
    %v1878 = vlaneseq
    %v1879 = vshrl.u32 %v1878, 7
    %v1880 = vsub.s32 5, %v1879
    %v1881 = vrot.slane %v45, %v1880
    %v1882 = vlaneseq
    %v1883 = vshrl.u32 %v1882, 7
    %v1884 = vsub.s32 7, %v1883
    %v1885 = vrot.slane %v45, %v1884
    %v1886 = vlaneseq
    %v1887 = vshrl.u32 %v1886, 7
    %v1888 = vsub.s32 1, %v1887
    %v1889 = vrot.slane %v46, %v1888
    %v1890 = vlaneseq
    %v1891 = vshrl.u32 %v1890, 7
    %v1892 = vsub.s32 3, %v1891
    %v1893 = vrot.slane %v46, %v1892
    %v1894 = vlaneseq
    %v1895 = vshrl.u32 %v1894, 7
    %v1896 = vsub.s32 5, %v1895
    %v1897 = vrot.slane %v46, %v1896
    %v1898 = vlaneseq
    %v1899 = vshrl.u32 %v1898, 7
    %v1900 = vsub.s32 7, %v1899
    %v1901 = vrot.slane %v46, %v1900
    %v1902 = vlaneseq
    %v1903 = vshrl.u32 %v1902, 7
    %v1904 = vsub.s32 1, %v1903
    %v1905 = vrot.slane %v47, %v1904
    %v1906 = vlaneseq
    %v1907 = vshrl.u32 %v1906, 7
    %v1908 = vsub.s32 3, %v1907
    %v1909 = vrot.slane %v47, %v1908
    %v1910 = vlaneseq
    %v1911 = vshrl.u32 %v1910, 7
    %v1912 = vsub.s32 5, %v1911
    %v1913 = vrot.slane %v47, %v1912
    %v1914 = vlaneseq
    %v1915 = vshrl.u32 %v1914, 7
    %v1916 = vsub.s32 7, %v1915
    %v1917 = vrot.slane %v47, %v1916
    %v1934 = vlaneseq
    %v1935 = vshrl.u32 %v1934, 7
    %v1936 = vsub.s32 1, %v1935
    %v1937 = vrot.slane %v1857, %v1936
    %v1938 = vlaneseq
    %v1939 = vshrl.u32 %v1938, 7
    %v1940 = vsub.s32 1, %v1939
    %v1941 = vrot.slane %v1861, %v1940
    %v1942 = vlaneseq
    %v1943 = vshrl.u32 %v1942, 7
    %v1944 = vsub.s32 1, %v1943
    %v1945 = vrot.slane %v1865, %v1944
    %v1946 = vlaneseq
    %v1947 = vshrl.u32 %v1946, 7
    %v1948 = vsub.s32 1, %v1947
    %v1949 = vrot.slane %v1869, %v1948
    %v1950 = vlaneseq
    %v1951 = vshrl.u32 %v1950, 7
    %v1952 = vsub.s32 1, %v1951
    %v1953 = vrot.slane %v1873, %v1952
    %v1954 = vlaneseq
    %v1955 = vshrl.u32 %v1954, 7
    %v1956 = vsub.s32 1, %v1955
    %v1957 = vrot.slane %v1877, %v1956
    %v1958 = vlaneseq
    %v1959 = vshrl.u32 %v1958, 7
    %v1960 = vsub.s32 1, %v1959
    %v1961 = vrot.slane %v1881, %v1960
    %v1962 = vlaneseq
    %v1963 = vshrl.u32 %v1962, 7
    %v1964 = vsub.s32 1, %v1963
    %v1965 = vrot.slane %v1885, %v1964
    %v1966 = vlaneseq
    %v1967 = vshrl.u32 %v1966, 7
    %v1968 = vsub.s32 1, %v1967
    %v1969 = vrot.slane %v1889, %v1968
    %v1970 = vlaneseq
    %v1971 = vshrl.u32 %v1970, 7
    %v1972 = vsub.s32 1, %v1971
    %v1973 = vrot.slane %v1893, %v1972
    %v1974 = vlaneseq
    %v1975 = vshrl.u32 %v1974, 7
    %v1976 = vsub.s32 1, %v1975
    %v1977 = vrot.slane %v1897, %v1976
    %v1978 = vlaneseq
    %v1979 = vshrl.u32 %v1978, 7
    %v1980 = vsub.s32 1, %v1979
    %v1981 = vrot.slane %v1901, %v1980
    %v1982 = vlaneseq
    %v1983 = vshrl.u32 %v1982, 7
    %v1984 = vsub.s32 1, %v1983
    %v1985 = vrot.slane %v1905, %v1984
    %v1986 = vlaneseq
    %v1987 = vshrl.u32 %v1986, 7
    %v1988 = vsub.s32 1, %v1987
    %v1989 = vrot.slane %v1909, %v1988
    %v1990 = vlaneseq
    %v1991 = vshrl.u32 %v1990, 7
    %v1992 = vsub.s32 1, %v1991
    %v1993 = vrot.slane %v1913, %v1992
    %v1994 = vlaneseq
    %v1995 = vshrl.u32 %v1994, 7
    %v1996 = vsub.s32 1, %v1995
    %v1997 = vrot.slane %v1917, %v1996
    %v1998 = vlaneseq
    %v1999 = vshrl.u32 %v1998, 7
    %v2000 = vsub.s32 1, %v1999
    %v2001 = vrot.slane %v48, %v2000
    %v2002 = vlaneseq
    %v2003 = vshrl.u32 %v2002, 7
    %v2004 = vsub.s32 3, %v2003
    %v2005 = vrot.slane %v48, %v2004
    %v2006 = vlaneseq
    %v2007 = vshrl.u32 %v2006, 7
    %v2008 = vsub.s32 5, %v2007
    %v2009 = vrot.slane %v48, %v2008
    %v2010 = vlaneseq
    %v2011 = vshrl.u32 %v2010, 7
    %v2012 = vsub.s32 7, %v2011
    %v2013 = vrot.slane %v48, %v2012
    %v2014 = vlaneseq
    %v2015 = vshrl.u32 %v2014, 7
    %v2016 = vsub.s32 1, %v2015
    %v2017 = vrot.slane %v49, %v2016
    %v2018 = vlaneseq
    %v2019 = vshrl.u32 %v2018, 7
    %v2020 = vsub.s32 3, %v2019
    %v2021 = vrot.slane %v49, %v2020
    %v2022 = vlaneseq
    %v2023 = vshrl.u32 %v2022, 7
    %v2024 = vsub.s32 5, %v2023
    %v2025 = vrot.slane %v49, %v2024
    %v2026 = vlaneseq
    %v2027 = vshrl.u32 %v2026, 7
    %v2028 = vsub.s32 7, %v2027
    %v2029 = vrot.slane %v49, %v2028
    %v2030 = vlaneseq
    %v2031 = vshrl.u32 %v2030, 7
    %v2032 = vsub.s32 1, %v2031
    %v2033 = vrot.slane %v50, %v2032
    %v2034 = vlaneseq
    %v2035 = vshrl.u32 %v2034, 7
    %v2036 = vsub.s32 3, %v2035
    %v2037 = vrot.slane %v50, %v2036
    %v2038 = vlaneseq
    %v2039 = vshrl.u32 %v2038, 7
    %v2040 = vsub.s32 5, %v2039
    %v2041 = vrot.slane %v50, %v2040
    %v2042 = vlaneseq
    %v2043 = vshrl.u32 %v2042, 7
    %v2044 = vsub.s32 7, %v2043
    %v2045 = vrot.slane %v50, %v2044
    %v2046 = vlaneseq
    %v2047 = vshrl.u32 %v2046, 7
    %v2048 = vsub.s32 1, %v2047
    %v2049 = vrot.slane %v51, %v2048
    %v2050 = vlaneseq
    %v2051 = vshrl.u32 %v2050, 7
    %v2052 = vsub.s32 3, %v2051
    %v2053 = vrot.slane %v51, %v2052
    %v2054 = vlaneseq
    %v2055 = vshrl.u32 %v2054, 7
    %v2056 = vsub.s32 5, %v2055
    %v2057 = vrot.slane %v51, %v2056
    %v2058 = vlaneseq
    %v2059 = vshrl.u32 %v2058, 7
    %v2060 = vsub.s32 7, %v2059
    %v2061 = vrot.slane %v51, %v2060
    %v2078 = vlaneseq
    %v2079 = vshrl.u32 %v2078, 7
    %v2080 = vsub.s32 1, %v2079
    %v2081 = vrot.slane %v2001, %v2080
    %v2082 = vlaneseq
    %v2083 = vshrl.u32 %v2082, 7
    %v2084 = vsub.s32 1, %v2083
    %v2085 = vrot.slane %v2005, %v2084
    %v2086 = vlaneseq
    %v2087 = vshrl.u32 %v2086, 7
    %v2088 = vsub.s32 1, %v2087
    %v2089 = vrot.slane %v2009, %v2088
    %v2090 = vlaneseq
    %v2091 = vshrl.u32 %v2090, 7
    %v2092 = vsub.s32 1, %v2091
    %v2093 = vrot.slane %v2013, %v2092
    %v2094 = vlaneseq
    %v2095 = vshrl.u32 %v2094, 7
    %v2096 = vsub.s32 1, %v2095
    %v2097 = vrot.slane %v2017, %v2096
    %v2098 = vlaneseq
    %v2099 = vshrl.u32 %v2098, 7
    %v2100 = vsub.s32 1, %v2099
    %v2101 = vrot.slane %v2021, %v2100
    %v2102 = vlaneseq
    %v2103 = vshrl.u32 %v2102, 7
    %v2104 = vsub.s32 1, %v2103
    %v2105 = vrot.slane %v2025, %v2104
    %v2106 = vlaneseq
    %v2107 = vshrl.u32 %v2106, 7
    %v2108 = vsub.s32 1, %v2107
    %v2109 = vrot.slane %v2029, %v2108
    %v2110 = vlaneseq
    %v2111 = vshrl.u32 %v2110, 7
    %v2112 = vsub.s32 1, %v2111
    %v2113 = vrot.slane %v2033, %v2112
    %v2114 = vlaneseq
    %v2115 = vshrl.u32 %v2114, 7
    %v2116 = vsub.s32 1, %v2115
    %v2117 = vrot.slane %v2037, %v2116
    %v2118 = vlaneseq
    %v2119 = vshrl.u32 %v2118, 7
    %v2120 = vsub.s32 1, %v2119
    %v2121 = vrot.slane %v2041, %v2120
    %v2122 = vlaneseq
    %v2123 = vshrl.u32 %v2122, 7
    %v2124 = vsub.s32 1, %v2123
    %v2125 = vrot.slane %v2045, %v2124
    %v2126 = vlaneseq
    %v2127 = vshrl.u32 %v2126, 7
    %v2128 = vsub.s32 1, %v2127
    %v2129 = vrot.slane %v2049, %v2128
    %v2130 = vlaneseq
    %v2131 = vshrl.u32 %v2130, 7
    %v2132 = vsub.s32 1, %v2131
    %v2133 = vrot.slane %v2053, %v2132
    %v2134 = vlaneseq
    %v2135 = vshrl.u32 %v2134, 7
    %v2136 = vsub.s32 1, %v2135
    %v2137 = vrot.slane %v2057, %v2136
    %v2138 = vlaneseq
    %v2139 = vshrl.u32 %v2138, 7
    %v2140 = vsub.s32 1, %v2139
    %v2141 = vrot.slane %v2061, %v2140
    %v2142 = vlaneseq
    %v2143 = vshrl.u32 %v2142, 7
    %v2144 = vsub.s32 1, %v2143
    %v2145 = vrot.slane %v52, %v2144
    %v2146 = vlaneseq
    %v2147 = vshrl.u32 %v2146, 7
    %v2148 = vsub.s32 3, %v2147
    %v2149 = vrot.slane %v52, %v2148
    %v2150 = vlaneseq
    %v2151 = vshrl.u32 %v2150, 7
    %v2152 = vsub.s32 5, %v2151
    %v2153 = vrot.slane %v52, %v2152
    %v2154 = vlaneseq
    %v2155 = vshrl.u32 %v2154, 7
    %v2156 = vsub.s32 7, %v2155
    %v2157 = vrot.slane %v52, %v2156
    %v2158 = vlaneseq
    %v2159 = vshrl.u32 %v2158, 7
    %v2160 = vsub.s32 1, %v2159
    %v2161 = vrot.slane %v53, %v2160
    %v2162 = vlaneseq
    %v2163 = vshrl.u32 %v2162, 7
    %v2164 = vsub.s32 3, %v2163
    %v2165 = vrot.slane %v53, %v2164
    %v2166 = vlaneseq
    %v2167 = vshrl.u32 %v2166, 7
    %v2168 = vsub.s32 5, %v2167
    %v2169 = vrot.slane %v53, %v2168
    %v2170 = vlaneseq
    %v2171 = vshrl.u32 %v2170, 7
    %v2172 = vsub.s32 7, %v2171
    %v2173 = vrot.slane %v53, %v2172
    %v2174 = vlaneseq
    %v2175 = vshrl.u32 %v2174, 7
    %v2176 = vsub.s32 1, %v2175
    %v2177 = vrot.slane %v54, %v2176
    %v2178 = vlaneseq
    %v2179 = vshrl.u32 %v2178, 7
    %v2180 = vsub.s32 3, %v2179
    %v2181 = vrot.slane %v54, %v2180
    %v2182 = vlaneseq
    %v2183 = vshrl.u32 %v2182, 7
    %v2184 = vsub.s32 5, %v2183
    %v2185 = vrot.slane %v54, %v2184
    %v2186 = vlaneseq
    %v2187 = vshrl.u32 %v2186, 7
    %v2188 = vsub.s32 7, %v2187
    %v2189 = vrot.slane %v54, %v2188
    %v2190 = vlaneseq
    %v2191 = vshrl.u32 %v2190, 7
    %v2192 = vsub.s32 1, %v2191
    %v2193 = vrot.slane %v55, %v2192
    %v2194 = vlaneseq
    %v2195 = vshrl.u32 %v2194, 7
    %v2196 = vsub.s32 3, %v2195
    %v2197 = vrot.slane %v55, %v2196
    %v2198 = vlaneseq
    %v2199 = vshrl.u32 %v2198, 7
    %v2200 = vsub.s32 5, %v2199
    %v2201 = vrot.slane %v55, %v2200
    %v2202 = vlaneseq
    %v2203 = vshrl.u32 %v2202, 7
    %v2204 = vsub.s32 7, %v2203
    %v2205 = vrot.slane %v55, %v2204
    %v2222 = vlaneseq
    %v2223 = vshrl.u32 %v2222, 7
    %v2224 = vsub.s32 1, %v2223
    %v2225 = vrot.slane %v2145, %v2224
    %v2226 = vlaneseq
    %v2227 = vshrl.u32 %v2226, 7
    %v2228 = vsub.s32 1, %v2227
    %v2229 = vrot.slane %v2149, %v2228
    %v2230 = vlaneseq
    %v2231 = vshrl.u32 %v2230, 7
    %v2232 = vsub.s32 1, %v2231
    %v2233 = vrot.slane %v2153, %v2232
    %v2234 = vlaneseq
    %v2235 = vshrl.u32 %v2234, 7
    %v2236 = vsub.s32 1, %v2235
    %v2237 = vrot.slane %v2157, %v2236
    %v2238 = vlaneseq
    %v2239 = vshrl.u32 %v2238, 7
    %v2240 = vsub.s32 1, %v2239
    %v2241 = vrot.slane %v2161, %v2240
    %v2242 = vlaneseq
    %v2243 = vshrl.u32 %v2242, 7
    %v2244 = vsub.s32 1, %v2243
    %v2245 = vrot.slane %v2165, %v2244
    %v2246 = vlaneseq
    %v2247 = vshrl.u32 %v2246, 7
    %v2248 = vsub.s32 1, %v2247
    %v2249 = vrot.slane %v2169, %v2248
    %v2250 = vlaneseq
    %v2251 = vshrl.u32 %v2250, 7
    %v2252 = vsub.s32 1, %v2251
    %v2253 = vrot.slane %v2173, %v2252
    %v2254 = vlaneseq
    %v2255 = vshrl.u32 %v2254, 7
    %v2256 = vsub.s32 1, %v2255
    %v2257 = vrot.slane %v2177, %v2256
    %v2258 = vlaneseq
    %v2259 = vshrl.u32 %v2258, 7
    %v2260 = vsub.s32 1, %v2259
    %v2261 = vrot.slane %v2181, %v2260
    %v2262 = vlaneseq
    %v2263 = vshrl.u32 %v2262, 7
    %v2264 = vsub.s32 1, %v2263
    %v2265 = vrot.slane %v2185, %v2264
    %v2266 = vlaneseq
    %v2267 = vshrl.u32 %v2266, 7
    %v2268 = vsub.s32 1, %v2267
    %v2269 = vrot.slane %v2189, %v2268
    %v2270 = vlaneseq
    %v2271 = vshrl.u32 %v2270, 7
    %v2272 = vsub.s32 1, %v2271
    %v2273 = vrot.slane %v2193, %v2272
    %v2274 = vlaneseq
    %v2275 = vshrl.u32 %v2274, 7
    %v2276 = vsub.s32 1, %v2275
    %v2277 = vrot.slane %v2197, %v2276
    %v2278 = vlaneseq
    %v2279 = vshrl.u32 %v2278, 7
    %v2280 = vsub.s32 1, %v2279
    %v2281 = vrot.slane %v2201, %v2280
    %v2282 = vlaneseq
    %v2283 = vshrl.u32 %v2282, 7
    %v2284 = vsub.s32 1, %v2283
    %v2285 = vrot.slane %v2205, %v2284
    %v2286 = vlaneseq
    %v2287 = vshrl.u32 %v2286, 7
    %v2288 = vsub.s32 1, %v2287
    %v2289 = vrot.slane %v56, %v2288
    %v2290 = vlaneseq
    %v2291 = vshrl.u32 %v2290, 7
    %v2292 = vsub.s32 3, %v2291
    %v2293 = vrot.slane %v56, %v2292
    %v2294 = vlaneseq
    %v2295 = vshrl.u32 %v2294, 7
    %v2296 = vsub.s32 5, %v2295
    %v2297 = vrot.slane %v56, %v2296
    %v2298 = vlaneseq
    %v2299 = vshrl.u32 %v2298, 7
    %v2300 = vsub.s32 7, %v2299
    %v2301 = vrot.slane %v56, %v2300
    %v2302 = vlaneseq
    %v2303 = vshrl.u32 %v2302, 7
    %v2304 = vsub.s32 1, %v2303
    %v2305 = vrot.slane %v57, %v2304
    %v2306 = vlaneseq
    %v2307 = vshrl.u32 %v2306, 7
    %v2308 = vsub.s32 3, %v2307
    %v2309 = vrot.slane %v57, %v2308
    %v2310 = vlaneseq
    %v2311 = vshrl.u32 %v2310, 7
    %v2312 = vsub.s32 5, %v2311
    %v2313 = vrot.slane %v57, %v2312
    %v2314 = vlaneseq
    %v2315 = vshrl.u32 %v2314, 7
    %v2316 = vsub.s32 7, %v2315
    %v2317 = vrot.slane %v57, %v2316
    %v2318 = vlaneseq
    %v2319 = vshrl.u32 %v2318, 7
    %v2320 = vsub.s32 1, %v2319
    %v2321 = vrot.slane %v58, %v2320
    %v2322 = vlaneseq
    %v2323 = vshrl.u32 %v2322, 7
    %v2324 = vsub.s32 3, %v2323
    %v2325 = vrot.slane %v58, %v2324
    %v2326 = vlaneseq
    %v2327 = vshrl.u32 %v2326, 7
    %v2328 = vsub.s32 5, %v2327
    %v2329 = vrot.slane %v58, %v2328
    %v2330 = vlaneseq
    %v2331 = vshrl.u32 %v2330, 7
    %v2332 = vsub.s32 7, %v2331
    %v2333 = vrot.slane %v58, %v2332
    %v2334 = vlaneseq
    %v2335 = vshrl.u32 %v2334, 7
    %v2336 = vsub.s32 1, %v2335
    %v2337 = vrot.slane %v59, %v2336
    %v2338 = vlaneseq
    %v2339 = vshrl.u32 %v2338, 7
    %v2340 = vsub.s32 3, %v2339
    %v2341 = vrot.slane %v59, %v2340
    %v2342 = vlaneseq
    %v2343 = vshrl.u32 %v2342, 7
    %v2344 = vsub.s32 5, %v2343
    %v2345 = vrot.slane %v59, %v2344
    %v2346 = vlaneseq
    %v2347 = vshrl.u32 %v2346, 7
    %v2348 = vsub.s32 7, %v2347
    %v2349 = vrot.slane %v59, %v2348
    %v2366 = vlaneseq
    %v2367 = vshrl.u32 %v2366, 7
    %v2368 = vsub.s32 1, %v2367
    %v2369 = vrot.slane %v2289, %v2368
    %v2370 = vlaneseq
    %v2371 = vshrl.u32 %v2370, 7
    %v2372 = vsub.s32 1, %v2371
    %v2373 = vrot.slane %v2293, %v2372
    %v2374 = vlaneseq
    %v2375 = vshrl.u32 %v2374, 7
    %v2376 = vsub.s32 1, %v2375
    %v2377 = vrot.slane %v2297, %v2376
    %v2378 = vlaneseq
    %v2379 = vshrl.u32 %v2378, 7
    %v2380 = vsub.s32 1, %v2379
    %v2381 = vrot.slane %v2301, %v2380
    %v2382 = vlaneseq
    %v2383 = vshrl.u32 %v2382, 7
    %v2384 = vsub.s32 1, %v2383
    %v2385 = vrot.slane %v2305, %v2384
    %v2386 = vlaneseq
    %v2387 = vshrl.u32 %v2386, 7
    %v2388 = vsub.s32 1, %v2387
    %v2389 = vrot.slane %v2309, %v2388
    %v2390 = vlaneseq
    %v2391 = vshrl.u32 %v2390, 7
    %v2392 = vsub.s32 1, %v2391
    %v2393 = vrot.slane %v2313, %v2392
    %v2394 = vlaneseq
    %v2395 = vshrl.u32 %v2394, 7
    %v2396 = vsub.s32 1, %v2395
    %v2397 = vrot.slane %v2317, %v2396
    %v2398 = vlaneseq
    %v2399 = vshrl.u32 %v2398, 7
    %v2400 = vsub.s32 1, %v2399
    %v2401 = vrot.slane %v2321, %v2400
    %v2402 = vlaneseq
    %v2403 = vshrl.u32 %v2402, 7
    %v2404 = vsub.s32 1, %v2403
    %v2405 = vrot.slane %v2325, %v2404
    %v2406 = vlaneseq
    %v2407 = vshrl.u32 %v2406, 7
    %v2408 = vsub.s32 1, %v2407
    %v2409 = vrot.slane %v2329, %v2408
    %v2410 = vlaneseq
    %v2411 = vshrl.u32 %v2410, 7
    %v2412 = vsub.s32 1, %v2411
    %v2413 = vrot.slane %v2333, %v2412
    %v2414 = vlaneseq
    %v2415 = vshrl.u32 %v2414, 7
    %v2416 = vsub.s32 1, %v2415
    %v2417 = vrot.slane %v2337, %v2416
    %v2418 = vlaneseq
    %v2419 = vshrl.u32 %v2418, 7
    %v2420 = vsub.s32 1, %v2419
    %v2421 = vrot.slane %v2341, %v2420
    %v2422 = vlaneseq
    %v2423 = vshrl.u32 %v2422, 7
    %v2424 = vsub.s32 1, %v2423
    %v2425 = vrot.slane %v2345, %v2424
    %v2426 = vlaneseq
    %v2427 = vshrl.u32 %v2426, 7
    %v2428 = vsub.s32 1, %v2427
    %v2429 = vrot.slane %v2349, %v2428
    %v2430 = vlaneseq
    %v2431 = vshrl.u32 %v2430, 7
    %v2432 = vsub.s32 1, %v2431
    %v2433 = vrot.slane %v60, %v2432
    %v2434 = vlaneseq
    %v2435 = vshrl.u32 %v2434, 7
    %v2436 = vsub.s32 3, %v2435
    %v2437 = vrot.slane %v60, %v2436
    %v2438 = vlaneseq
    %v2439 = vshrl.u32 %v2438, 7
    %v2440 = vsub.s32 5, %v2439
    %v2441 = vrot.slane %v60, %v2440
    %v2442 = vlaneseq
    %v2443 = vshrl.u32 %v2442, 7
    %v2444 = vsub.s32 7, %v2443
    %v2445 = vrot.slane %v60, %v2444
    %v2446 = vlaneseq
    %v2447 = vshrl.u32 %v2446, 7
    %v2448 = vsub.s32 1, %v2447
    %v2449 = vrot.slane %v61, %v2448
    %v2450 = vlaneseq
    %v2451 = vshrl.u32 %v2450, 7
    %v2452 = vsub.s32 3, %v2451
    %v2453 = vrot.slane %v61, %v2452
    %v2454 = vlaneseq
    %v2455 = vshrl.u32 %v2454, 7
    %v2456 = vsub.s32 5, %v2455
    %v2457 = vrot.slane %v61, %v2456
    %v2458 = vlaneseq
    %v2459 = vshrl.u32 %v2458, 7
    %v2460 = vsub.s32 7, %v2459
    %v2461 = vrot.slane %v61, %v2460
    %v2462 = vlaneseq
    %v2463 = vshrl.u32 %v2462, 7
    %v2464 = vsub.s32 1, %v2463
    %v2465 = vrot.slane %v62, %v2464
    %v2466 = vlaneseq
    %v2467 = vshrl.u32 %v2466, 7
    %v2468 = vsub.s32 3, %v2467
    %v2469 = vrot.slane %v62, %v2468
    %v2470 = vlaneseq
    %v2471 = vshrl.u32 %v2470, 7
    %v2472 = vsub.s32 5, %v2471
    %v2473 = vrot.slane %v62, %v2472
    %v2474 = vlaneseq
    %v2475 = vshrl.u32 %v2474, 7
    %v2476 = vsub.s32 7, %v2475
    %v2477 = vrot.slane %v62, %v2476
    %v2478 = vlaneseq
    %v2479 = vshrl.u32 %v2478, 7
    %v2480 = vsub.s32 1, %v2479
    %v2481 = vrot.slane %v63, %v2480
    %v2482 = vlaneseq
    %v2483 = vshrl.u32 %v2482, 7
    %v2484 = vsub.s32 3, %v2483
    %v2485 = vrot.slane %v63, %v2484
    %v2486 = vlaneseq
    %v2487 = vshrl.u32 %v2486, 7
    %v2488 = vsub.s32 5, %v2487
    %v2489 = vrot.slane %v63, %v2488
    %v2490 = vlaneseq
    %v2491 = vshrl.u32 %v2490, 7
    %v2492 = vsub.s32 7, %v2491
    %v2493 = vrot.slane %v63, %v2492
    %v2510 = vlaneseq
    %v2511 = vshrl.u32 %v2510, 7
    %v2512 = vsub.s32 1, %v2511
    %v2513 = vrot.slane %v2433, %v2512
    %v2514 = vlaneseq
    %v2515 = vshrl.u32 %v2514, 7
    %v2516 = vsub.s32 1, %v2515
    %v2517 = vrot.slane %v2437, %v2516
    %v2518 = vlaneseq
    %v2519 = vshrl.u32 %v2518, 7
    %v2520 = vsub.s32 1, %v2519
    %v2521 = vrot.slane %v2441, %v2520
    %v2522 = vlaneseq
    %v2523 = vshrl.u32 %v2522, 7
    %v2524 = vsub.s32 1, %v2523
    %v2525 = vrot.slane %v2445, %v2524
    %v2526 = vlaneseq
    %v2527 = vshrl.u32 %v2526, 7
    %v2528 = vsub.s32 1, %v2527
    %v2529 = vrot.slane %v2449, %v2528
    %v2530 = vlaneseq
    %v2531 = vshrl.u32 %v2530, 7
    %v2532 = vsub.s32 1, %v2531
    %v2533 = vrot.slane %v2453, %v2532
    %v2534 = vlaneseq
    %v2535 = vshrl.u32 %v2534, 7
    %v2536 = vsub.s32 1, %v2535
    %v2537 = vrot.slane %v2457, %v2536
    %v2538 = vlaneseq
    %v2539 = vshrl.u32 %v2538, 7
    %v2540 = vsub.s32 1, %v2539
    %v2541 = vrot.slane %v2461, %v2540
    %v2542 = vlaneseq
    %v2543 = vshrl.u32 %v2542, 7
    %v2544 = vsub.s32 1, %v2543
    %v2545 = vrot.slane %v2465, %v2544
    %v2546 = vlaneseq
    %v2547 = vshrl.u32 %v2546, 7
    %v2548 = vsub.s32 1, %v2547
    %v2549 = vrot.slane %v2469, %v2548
    %v2550 = vlaneseq
    %v2551 = vshrl.u32 %v2550, 7
    %v2552 = vsub.s32 1, %v2551
    %v2553 = vrot.slane %v2473, %v2552
    %v2554 = vlaneseq
    %v2555 = vshrl.u32 %v2554, 7
    %v2556 = vsub.s32 1, %v2555
    %v2557 = vrot.slane %v2477, %v2556
    %v2558 = vlaneseq
    %v2559 = vshrl.u32 %v2558, 7
    %v2560 = vsub.s32 1, %v2559
    %v2561 = vrot.slane %v2481, %v2560
    %v2562 = vlaneseq
    %v2563 = vshrl.u32 %v2562, 7
    %v2564 = vsub.s32 1, %v2563
    %v2565 = vrot.slane %v2485, %v2564
    %v2566 = vlaneseq
    %v2567 = vshrl.u32 %v2566, 7
    %v2568 = vsub.s32 1, %v2567
    %v2569 = vrot.slane %v2489, %v2568
    %v2570 = vlaneseq
    %v2571 = vshrl.u32 %v2570, 7
    %v2572 = vsub.s32 1, %v2571
    %v2573 = vrot.slane %v2493, %v2572
    %v2574 = vlaneseq
    %v2575 = vshrl.u32 %v2574, 7
    %v2576 = vsub.s32 1, %v2575
    %v2577 = vrot.slane %v64, %v2576
    %v2578 = vlaneseq
    %v2579 = vshrl.u32 %v2578, 7
    %v2580 = vsub.s32 3, %v2579
    %v2581 = vrot.slane %v64, %v2580
    %v2582 = vlaneseq
    %v2583 = vshrl.u32 %v2582, 7
    %v2584 = vsub.s32 5, %v2583
    %v2585 = vrot.slane %v64, %v2584
    %v2586 = vlaneseq
    %v2587 = vshrl.u32 %v2586, 7
    %v2588 = vsub.s32 7, %v2587
    %v2589 = vrot.slane %v64, %v2588
    %v2590 = vlaneseq
    %v2591 = vshrl.u32 %v2590, 7
    %v2592 = vsub.s32 1, %v2591
    %v2593 = vrot.slane %v65, %v2592
    %v2594 = vlaneseq
    %v2595 = vshrl.u32 %v2594, 7
    %v2596 = vsub.s32 3, %v2595
    %v2597 = vrot.slane %v65, %v2596
    %v2598 = vlaneseq
    %v2599 = vshrl.u32 %v2598, 7
    %v2600 = vsub.s32 5, %v2599
    %v2601 = vrot.slane %v65, %v2600
    %v2602 = vlaneseq
    %v2603 = vshrl.u32 %v2602, 7
    %v2604 = vsub.s32 7, %v2603
    %v2605 = vrot.slane %v65, %v2604
    %v2606 = vlaneseq
    %v2607 = vshrl.u32 %v2606, 7
    %v2608 = vsub.s32 1, %v2607
    %v2609 = vrot.slane %v66, %v2608
    %v2610 = vlaneseq
    %v2611 = vshrl.u32 %v2610, 7
    %v2612 = vsub.s32 3, %v2611
    %v2613 = vrot.slane %v66, %v2612
    %v2614 = vlaneseq
    %v2615 = vshrl.u32 %v2614, 7
    %v2616 = vsub.s32 5, %v2615
    %v2617 = vrot.slane %v66, %v2616
    %v2618 = vlaneseq
    %v2619 = vshrl.u32 %v2618, 7
    %v2620 = vsub.s32 7, %v2619
    %v2621 = vrot.slane %v66, %v2620
    %v2622 = vlaneseq
    %v2623 = vshrl.u32 %v2622, 7
    %v2624 = vsub.s32 1, %v2623
    %v2625 = vrot.slane %v67, %v2624
    %v2626 = vlaneseq
    %v2627 = vshrl.u32 %v2626, 7
    %v2628 = vsub.s32 3, %v2627
    %v2629 = vrot.slane %v67, %v2628
    %v2630 = vlaneseq
    %v2631 = vshrl.u32 %v2630, 7
    %v2632 = vsub.s32 5, %v2631
    %v2633 = vrot.slane %v67, %v2632
    %v2634 = vlaneseq
    %v2635 = vshrl.u32 %v2634, 7
    %v2636 = vsub.s32 7, %v2635
    %v2637 = vrot.slane %v67, %v2636
    %v2654 = vlaneseq
    %v2655 = vshrl.u32 %v2654, 7
    %v2656 = vsub.s32 1, %v2655
    %v2657 = vrot.slane %v2577, %v2656
    %v2658 = vlaneseq
    %v2659 = vshrl.u32 %v2658, 7
    %v2660 = vsub.s32 1, %v2659
    %v2661 = vrot.slane %v2581, %v2660
    %v2662 = vlaneseq
    %v2663 = vshrl.u32 %v2662, 7
    %v2664 = vsub.s32 1, %v2663
    %v2665 = vrot.slane %v2585, %v2664
    %v2666 = vlaneseq
    %v2667 = vshrl.u32 %v2666, 7
    %v2668 = vsub.s32 1, %v2667
    %v2669 = vrot.slane %v2589, %v2668
    %v2670 = vlaneseq
    %v2671 = vshrl.u32 %v2670, 7
    %v2672 = vsub.s32 1, %v2671
    %v2673 = vrot.slane %v2593, %v2672
    %v2674 = vlaneseq
    %v2675 = vshrl.u32 %v2674, 7
    %v2676 = vsub.s32 1, %v2675
    %v2677 = vrot.slane %v2597, %v2676
    %v2678 = vlaneseq
    %v2679 = vshrl.u32 %v2678, 7
    %v2680 = vsub.s32 1, %v2679
    %v2681 = vrot.slane %v2601, %v2680
    %v2682 = vlaneseq
    %v2683 = vshrl.u32 %v2682, 7
    %v2684 = vsub.s32 1, %v2683
    %v2685 = vrot.slane %v2605, %v2684
    %v2686 = vlaneseq
    %v2687 = vshrl.u32 %v2686, 7
    %v2688 = vsub.s32 1, %v2687
    %v2689 = vrot.slane %v2609, %v2688
    %v2690 = vlaneseq
    %v2691 = vshrl.u32 %v2690, 7
    %v2692 = vsub.s32 1, %v2691
    %v2693 = vrot.slane %v2613, %v2692
    %v2694 = vlaneseq
    %v2695 = vshrl.u32 %v2694, 7
    %v2696 = vsub.s32 1, %v2695
    %v2697 = vrot.slane %v2617, %v2696
    %v2698 = vlaneseq
    %v2699 = vshrl.u32 %v2698, 7
    %v2700 = vsub.s32 1, %v2699
    %v2701 = vrot.slane %v2621, %v2700
    %v2702 = vlaneseq
    %v2703 = vshrl.u32 %v2702, 7
    %v2704 = vsub.s32 1, %v2703
    %v2705 = vrot.slane %v2625, %v2704
    %v2706 = vlaneseq
    %v2707 = vshrl.u32 %v2706, 7
    %v2708 = vsub.s32 1, %v2707
    %v2709 = vrot.slane %v2629, %v2708
    %v2710 = vlaneseq
    %v2711 = vshrl.u32 %v2710, 7
    %v2712 = vsub.s32 1, %v2711
    %v2713 = vrot.slane %v2633, %v2712
    %v2714 = vlaneseq
    %v2715 = vshrl.u32 %v2714, 7
    %v2716 = vsub.s32 1, %v2715
    %v2717 = vrot.slane %v2637, %v2716
    %v2718 = vmul.f32 %v959, %v1937
    %v2719 = vmul.f32 %v959, %v1941
    %v2720 = vmul.f32 %v959, %v1945
    %v2721 = vmul.f32 %v959, %v1949
    %v2722 = vmul.f32 %v959, %v1953
    %v2723 = vmul.f32 %v959, %v1957
    %v2724 = vmul.f32 %v959, %v1961
    %v2725 = vmul.f32 %v959, %v1965
    %v2726 = vmul.f32 %v959, %v1969
    %v2727 = vmul.f32 %v959, %v1973
    %v2728 = vmul.f32 %v959, %v1977
    %v2729 = vmul.f32 %v959, %v1981
    %v2730 = vmul.f32 %v959, %v1985
    %v2731 = vmul.f32 %v959, %v1989
    %v2732 = vmul.f32 %v959, %v1993
    %v2733 = vmul.f32 %v959, %v1997
    %v2734 = vmul.f32 %v964, %v1937
    %v2735 = vmul.f32 %v964, %v1941
    %v2736 = vmul.f32 %v964, %v1945
    %v2737 = vmul.f32 %v964, %v1949
    %v2738 = vmul.f32 %v964, %v1953
    %v2739 = vmul.f32 %v964, %v1957
    %v2740 = vmul.f32 %v964, %v1961
    %v2741 = vmul.f32 %v964, %v1965
    %v2742 = vmul.f32 %v964, %v1969
    %v2743 = vmul.f32 %v964, %v1973
    %v2744 = vmul.f32 %v964, %v1977
    %v2745 = vmul.f32 %v964, %v1981
    %v2746 = vmul.f32 %v964, %v1985
    %v2747 = vmul.f32 %v964, %v1989
    %v2748 = vmul.f32 %v964, %v1993
    %v2749 = vmul.f32 %v964, %v1997
    %v2750 = vmul.f32 %v1000, %v2081
    %v2751 = vmul.f32 %v1000, %v2085
    %v2752 = vmul.f32 %v1000, %v2089
    %v2753 = vmul.f32 %v1000, %v2093
    %v2754 = vmul.f32 %v1000, %v2097
    %v2755 = vmul.f32 %v1000, %v2101
    %v2756 = vmul.f32 %v1000, %v2105
    %v2757 = vmul.f32 %v1000, %v2109
    %v2758 = vmul.f32 %v1000, %v2113
    %v2759 = vmul.f32 %v1000, %v2117
    %v2760 = vmul.f32 %v1000, %v2121
    %v2761 = vmul.f32 %v1000, %v2125
    %v2762 = vmul.f32 %v1000, %v2129
    %v2763 = vmul.f32 %v1000, %v2133
    %v2764 = vmul.f32 %v1000, %v2137
    %v2765 = vmul.f32 %v1000, %v2141
    %v2766 = vmul.f32 %v1004, %v2081
    %v2767 = vmul.f32 %v1004, %v2085
    %v2768 = vmul.f32 %v1004, %v2089
    %v2769 = vmul.f32 %v1004, %v2093
    %v2770 = vmul.f32 %v1004, %v2097
    %v2771 = vmul.f32 %v1004, %v2101
    %v2772 = vmul.f32 %v1004, %v2105
    %v2773 = vmul.f32 %v1004, %v2109
    %v2774 = vmul.f32 %v1004, %v2113
    %v2775 = vmul.f32 %v1004, %v2117
    %v2776 = vmul.f32 %v1004, %v2121
    %v2777 = vmul.f32 %v1004, %v2125
    %v2778 = vmul.f32 %v1004, %v2129
    %v2779 = vmul.f32 %v1004, %v2133
    %v2780 = vmul.f32 %v1004, %v2137
    %v2781 = vmul.f32 %v1004, %v2141
    %v2782 = vadd.f32 %v2718, %v2750
    %v2783 = vadd.f32 %v2719, %v2751
    %v2784 = vadd.f32 %v2720, %v2752
    %v2785 = vadd.f32 %v2721, %v2753
    %v2786 = vadd.f32 %v2722, %v2754
    %v2787 = vadd.f32 %v2723, %v2755
    %v2788 = vadd.f32 %v2724, %v2756
    %v2789 = vadd.f32 %v2725, %v2757
    %v2790 = vadd.f32 %v2726, %v2758
    %v2791 = vadd.f32 %v2727, %v2759
    %v2792 = vadd.f32 %v2728, %v2760
    %v2793 = vadd.f32 %v2729, %v2761
    %v2794 = vadd.f32 %v2730, %v2762
    %v2795 = vadd.f32 %v2731, %v2763
    %v2796 = vadd.f32 %v2732, %v2764
    %v2797 = vadd.f32 %v2733, %v2765
    %v2798 = vadd.f32 %v2734, %v2766
    %v2799 = vadd.f32 %v2735, %v2767
    %v2800 = vadd.f32 %v2736, %v2768
    %v2801 = vadd.f32 %v2737, %v2769
    %v2802 = vadd.f32 %v2738, %v2770
    %v2803 = vadd.f32 %v2739, %v2771
    %v2804 = vadd.f32 %v2740, %v2772
    %v2805 = vadd.f32 %v2741, %v2773
    %v2806 = vadd.f32 %v2742, %v2774
    %v2807 = vadd.f32 %v2743, %v2775
    %v2808 = vadd.f32 %v2744, %v2776
    %v2809 = vadd.f32 %v2745, %v2777
    %v2810 = vadd.f32 %v2746, %v2778
    %v2811 = vadd.f32 %v2747, %v2779
    %v2812 = vadd.f32 %v2748, %v2780
    %v2813 = vadd.f32 %v2749, %v2781
    %v2814 = vmul.f32 %v1072, %v2225
    %v2815 = vmul.f32 %v1072, %v2229
    %v2816 = vmul.f32 %v1072, %v2233
    %v2817 = vmul.f32 %v1072, %v2237
    %v2818 = vmul.f32 %v1072, %v2241
    %v2819 = vmul.f32 %v1072, %v2245
    %v2820 = vmul.f32 %v1072, %v2249
    %v2821 = vmul.f32 %v1072, %v2253
    %v2822 = vmul.f32 %v1072, %v2257
    %v2823 = vmul.f32 %v1072, %v2261
    %v2824 = vmul.f32 %v1072, %v2265
    %v2825 = vmul.f32 %v1072, %v2269
    %v2826 = vmul.f32 %v1072, %v2273
    %v2827 = vmul.f32 %v1072, %v2277
    %v2828 = vmul.f32 %v1072, %v2281
    %v2829 = vmul.f32 %v1072, %v2285
    %v2830 = vmul.f32 %v1076, %v2225
    %v2831 = vmul.f32 %v1076, %v2229
    %v2832 = vmul.f32 %v1076, %v2233
    %v2833 = vmul.f32 %v1076, %v2237
    %v2834 = vmul.f32 %v1076, %v2241
    %v2835 = vmul.f32 %v1076, %v2245
    %v2836 = vmul.f32 %v1076, %v2249
    %v2837 = vmul.f32 %v1076, %v2253
    %v2838 = vmul.f32 %v1076, %v2257
    %v2839 = vmul.f32 %v1076, %v2261
    %v2840 = vmul.f32 %v1076, %v2265
    %v2841 = vmul.f32 %v1076, %v2269
    %v2842 = vmul.f32 %v1076, %v2273
    %v2843 = vmul.f32 %v1076, %v2277
    %v2844 = vmul.f32 %v1076, %v2281
    %v2845 = vmul.f32 %v1076, %v2285
    %v2846 = vadd.f32 %v2782, %v2814
    %v2847 = vadd.f32 %v2783, %v2815
    %v2848 = vadd.f32 %v2784, %v2816
    %v2849 = vadd.f32 %v2785, %v2817
    %v2850 = vadd.f32 %v2786, %v2818
    %v2851 = vadd.f32 %v2787, %v2819
    %v2852 = vadd.f32 %v2788, %v2820
    %v2853 = vadd.f32 %v2789, %v2821
    %v2854 = vadd.f32 %v2790, %v2822
    %v2855 = vadd.f32 %v2791, %v2823
    %v2856 = vadd.f32 %v2792, %v2824
    %v2857 = vadd.f32 %v2793, %v2825
    %v2858 = vadd.f32 %v2794, %v2826
    %v2859 = vadd.f32 %v2795, %v2827
    %v2860 = vadd.f32 %v2796, %v2828
    %v2861 = vadd.f32 %v2797, %v2829
    %v2862 = vadd.f32 %v2798, %v2830
    %v2863 = vadd.f32 %v2799, %v2831
    %v2864 = vadd.f32 %v2800, %v2832
    %v2865 = vadd.f32 %v2801, %v2833
    %v2866 = vadd.f32 %v2802, %v2834
    %v2867 = vadd.f32 %v2803, %v2835
    %v2868 = vadd.f32 %v2804, %v2836
    %v2869 = vadd.f32 %v2805, %v2837
    %v2870 = vadd.f32 %v2806, %v2838
    %v2871 = vadd.f32 %v2807, %v2839
    %v2872 = vadd.f32 %v2808, %v2840
    %v2873 = vadd.f32 %v2809, %v2841
    %v2874 = vadd.f32 %v2810, %v2842
    %v2875 = vadd.f32 %v2811, %v2843
    %v2876 = vadd.f32 %v2812, %v2844
    %v2877 = vadd.f32 %v2813, %v2845
    %v2878 = vadd.f32 %v2846, %v1144
    %v2879 = vadd.f32 %v2847, %v1144
    %v2880 = vadd.f32 %v2848, %v1144
    %v2881 = vadd.f32 %v2849, %v1144
    %v2882 = vadd.f32 %v2850, %v1144
    %v2883 = vadd.f32 %v2851, %v1144
    %v2884 = vadd.f32 %v2852, %v1144
    %v2885 = vadd.f32 %v2853, %v1144
    %v2886 = vadd.f32 %v2854, %v1144
    %v2887 = vadd.f32 %v2855, %v1144
    %v2888 = vadd.f32 %v2856, %v1144
    %v2889 = vadd.f32 %v2857, %v1144
    %v2890 = vadd.f32 %v2858, %v1144
    %v2891 = vadd.f32 %v2859, %v1144
    %v2892 = vadd.f32 %v2860, %v1144
    %v2893 = vadd.f32 %v2861, %v1144
    %v2894 = vadd.f32 %v2862, %v1148
    %v2895 = vadd.f32 %v2863, %v1148
    %v2896 = vadd.f32 %v2864, %v1148
    %v2897 = vadd.f32 %v2865, %v1148
    %v2898 = vadd.f32 %v2866, %v1148
    %v2899 = vadd.f32 %v2867, %v1148
    %v2900 = vadd.f32 %v2868, %v1148
    %v2901 = vadd.f32 %v2869, %v1148
    %v2902 = vadd.f32 %v2870, %v1148
    %v2903 = vadd.f32 %v2871, %v1148
    %v2904 = vadd.f32 %v2872, %v1148
    %v2905 = vadd.f32 %v2873, %v1148
    %v2906 = vadd.f32 %v2874, %v1148
    %v2907 = vadd.f32 %v2875, %v1148
    %v2908 = vadd.f32 %v2876, %v1148
    %v2909 = vadd.f32 %v2877, %v1148
    %v2910 = vmul.f32 %v959, %v2081
    %v2911 = vmul.f32 %v959, %v2085
    %v2912 = vmul.f32 %v959, %v2089
    %v2913 = vmul.f32 %v959, %v2093
    %v2914 = vmul.f32 %v959, %v2097
    %v2915 = vmul.f32 %v959, %v2101
    %v2916 = vmul.f32 %v959, %v2105
    %v2917 = vmul.f32 %v959, %v2109
    %v2918 = vmul.f32 %v959, %v2113
    %v2919 = vmul.f32 %v959, %v2117
    %v2920 = vmul.f32 %v959, %v2121
    %v2921 = vmul.f32 %v959, %v2125
    %v2922 = vmul.f32 %v959, %v2129
    %v2923 = vmul.f32 %v959, %v2133
    %v2924 = vmul.f32 %v959, %v2137
    %v2925 = vmul.f32 %v959, %v2141
    %v2926 = vmul.f32 %v964, %v2081
    %v2927 = vmul.f32 %v964, %v2085
    %v2928 = vmul.f32 %v964, %v2089
    %v2929 = vmul.f32 %v964, %v2093
    %v2930 = vmul.f32 %v964, %v2097
    %v2931 = vmul.f32 %v964, %v2101
    %v2932 = vmul.f32 %v964, %v2105
    %v2933 = vmul.f32 %v964, %v2109
    %v2934 = vmul.f32 %v964, %v2113
    %v2935 = vmul.f32 %v964, %v2117
    %v2936 = vmul.f32 %v964, %v2121
    %v2937 = vmul.f32 %v964, %v2125
    %v2938 = vmul.f32 %v964, %v2129
    %v2939 = vmul.f32 %v964, %v2133
    %v2940 = vmul.f32 %v964, %v2137
    %v2941 = vmul.f32 %v964, %v2141
    %v2942 = vmul.f32 %v1000, %v2225
    %v2943 = vmul.f32 %v1000, %v2229
    %v2944 = vmul.f32 %v1000, %v2233
    %v2945 = vmul.f32 %v1000, %v2237
    %v2946 = vmul.f32 %v1000, %v2241
    %v2947 = vmul.f32 %v1000, %v2245
    %v2948 = vmul.f32 %v1000, %v2249
    %v2949 = vmul.f32 %v1000, %v2253
    %v2950 = vmul.f32 %v1000, %v2257
    %v2951 = vmul.f32 %v1000, %v2261
    %v2952 = vmul.f32 %v1000, %v2265
    %v2953 = vmul.f32 %v1000, %v2269
    %v2954 = vmul.f32 %v1000, %v2273
    %v2955 = vmul.f32 %v1000, %v2277
    %v2956 = vmul.f32 %v1000, %v2281
    %v2957 = vmul.f32 %v1000, %v2285
    %v2958 = vmul.f32 %v1004, %v2225
    %v2959 = vmul.f32 %v1004, %v2229
    %v2960 = vmul.f32 %v1004, %v2233
    %v2961 = vmul.f32 %v1004, %v2237
    %v2962 = vmul.f32 %v1004, %v2241
    %v2963 = vmul.f32 %v1004, %v2245
    %v2964 = vmul.f32 %v1004, %v2249
    %v2965 = vmul.f32 %v1004, %v2253
    %v2966 = vmul.f32 %v1004, %v2257
    %v2967 = vmul.f32 %v1004, %v2261
    %v2968 = vmul.f32 %v1004, %v2265
    %v2969 = vmul.f32 %v1004, %v2269
    %v2970 = vmul.f32 %v1004, %v2273
    %v2971 = vmul.f32 %v1004, %v2277
    %v2972 = vmul.f32 %v1004, %v2281
    %v2973 = vmul.f32 %v1004, %v2285
    %v2974 = vadd.f32 %v2910, %v2942
    %v2975 = vadd.f32 %v2911, %v2943
    %v2976 = vadd.f32 %v2912, %v2944
    %v2977 = vadd.f32 %v2913, %v2945
    %v2978 = vadd.f32 %v2914, %v2946
    %v2979 = vadd.f32 %v2915, %v2947
    %v2980 = vadd.f32 %v2916, %v2948
    %v2981 = vadd.f32 %v2917, %v2949
    %v2982 = vadd.f32 %v2918, %v2950
    %v2983 = vadd.f32 %v2919, %v2951
    %v2984 = vadd.f32 %v2920, %v2952
    %v2985 = vadd.f32 %v2921, %v2953
    %v2986 = vadd.f32 %v2922, %v2954
    %v2987 = vadd.f32 %v2923, %v2955
    %v2988 = vadd.f32 %v2924, %v2956
    %v2989 = vadd.f32 %v2925, %v2957
    %v2990 = vadd.f32 %v2926, %v2958
    %v2991 = vadd.f32 %v2927, %v2959
    %v2992 = vadd.f32 %v2928, %v2960
    %v2993 = vadd.f32 %v2929, %v2961
    %v2994 = vadd.f32 %v2930, %v2962
    %v2995 = vadd.f32 %v2931, %v2963
    %v2996 = vadd.f32 %v2932, %v2964
    %v2997 = vadd.f32 %v2933, %v2965
    %v2998 = vadd.f32 %v2934, %v2966
    %v2999 = vadd.f32 %v2935, %v2967
    %v3000 = vadd.f32 %v2936, %v2968
    %v3001 = vadd.f32 %v2937, %v2969
    %v3002 = vadd.f32 %v2938, %v2970
    %v3003 = vadd.f32 %v2939, %v2971
    %v3004 = vadd.f32 %v2940, %v2972
    %v3005 = vadd.f32 %v2941, %v2973
    %v3006 = vmul.f32 %v1072, %v2369
    %v3007 = vmul.f32 %v1072, %v2373
    %v3008 = vmul.f32 %v1072, %v2377
    %v3009 = vmul.f32 %v1072, %v2381
    %v3010 = vmul.f32 %v1072, %v2385
    %v3011 = vmul.f32 %v1072, %v2389
    %v3012 = vmul.f32 %v1072, %v2393
    %v3013 = vmul.f32 %v1072, %v2397
    %v3014 = vmul.f32 %v1072, %v2401
    %v3015 = vmul.f32 %v1072, %v2405
    %v3016 = vmul.f32 %v1072, %v2409
    %v3017 = vmul.f32 %v1072, %v2413
    %v3018 = vmul.f32 %v1072, %v2417
    %v3019 = vmul.f32 %v1072, %v2421
    %v3020 = vmul.f32 %v1072, %v2425
    %v3021 = vmul.f32 %v1072, %v2429
    %v3022 = vmul.f32 %v1076, %v2369
    %v3023 = vmul.f32 %v1076, %v2373
    %v3024 = vmul.f32 %v1076, %v2377
    %v3025 = vmul.f32 %v1076, %v2381
    %v3026 = vmul.f32 %v1076, %v2385
    %v3027 = vmul.f32 %v1076, %v2389
    %v3028 = vmul.f32 %v1076, %v2393
    %v3029 = vmul.f32 %v1076, %v2397
    %v3030 = vmul.f32 %v1076, %v2401
    %v3031 = vmul.f32 %v1076, %v2405
    %v3032 = vmul.f32 %v1076, %v2409
    %v3033 = vmul.f32 %v1076, %v2413
    %v3034 = vmul.f32 %v1076, %v2417
    %v3035 = vmul.f32 %v1076, %v2421
    %v3036 = vmul.f32 %v1076, %v2425
    %v3037 = vmul.f32 %v1076, %v2429
    %v3038 = vadd.f32 %v2974, %v3006
    %v3039 = vadd.f32 %v2975, %v3007
    %v3040 = vadd.f32 %v2976, %v3008
    %v3041 = vadd.f32 %v2977, %v3009
    %v3042 = vadd.f32 %v2978, %v3010
    %v3043 = vadd.f32 %v2979, %v3011
    %v3044 = vadd.f32 %v2980, %v3012
    %v3045 = vadd.f32 %v2981, %v3013
    %v3046 = vadd.f32 %v2982, %v3014
    %v3047 = vadd.f32 %v2983, %v3015
    %v3048 = vadd.f32 %v2984, %v3016
    %v3049 = vadd.f32 %v2985, %v3017
    %v3050 = vadd.f32 %v2986, %v3018
    %v3051 = vadd.f32 %v2987, %v3019
    %v3052 = vadd.f32 %v2988, %v3020
    %v3053 = vadd.f32 %v2989, %v3021
    %v3054 = vadd.f32 %v2990, %v3022
    %v3055 = vadd.f32 %v2991, %v3023
    %v3056 = vadd.f32 %v2992, %v3024
    %v3057 = vadd.f32 %v2993, %v3025
    %v3058 = vadd.f32 %v2994, %v3026
    %v3059 = vadd.f32 %v2995, %v3027
    %v3060 = vadd.f32 %v2996, %v3028
    %v3061 = vadd.f32 %v2997, %v3029
    %v3062 = vadd.f32 %v2998, %v3030
    %v3063 = vadd.f32 %v2999, %v3031
    %v3064 = vadd.f32 %v3000, %v3032
    %v3065 = vadd.f32 %v3001, %v3033
    %v3066 = vadd.f32 %v3002, %v3034
    %v3067 = vadd.f32 %v3003, %v3035
    %v3068 = vadd.f32 %v3004, %v3036
    %v3069 = vadd.f32 %v3005, %v3037
    %v3070 = vadd.f32 %v3038, %v1144
    %v3071 = vadd.f32 %v3039, %v1144
    %v3072 = vadd.f32 %v3040, %v1144
    %v3073 = vadd.f32 %v3041, %v1144
    %v3074 = vadd.f32 %v3042, %v1144
    %v3075 = vadd.f32 %v3043, %v1144
    %v3076 = vadd.f32 %v3044, %v1144
    %v3077 = vadd.f32 %v3045, %v1144
    %v3078 = vadd.f32 %v3046, %v1144
    %v3079 = vadd.f32 %v3047, %v1144
    %v3080 = vadd.f32 %v3048, %v1144
    %v3081 = vadd.f32 %v3049, %v1144
    %v3082 = vadd.f32 %v3050, %v1144
    %v3083 = vadd.f32 %v3051, %v1144
    %v3084 = vadd.f32 %v3052, %v1144
    %v3085 = vadd.f32 %v3053, %v1144
    %v3086 = vadd.f32 %v3054, %v1148
    %v3087 = vadd.f32 %v3055, %v1148
    %v3088 = vadd.f32 %v3056, %v1148
    %v3089 = vadd.f32 %v3057, %v1148
    %v3090 = vadd.f32 %v3058, %v1148
    %v3091 = vadd.f32 %v3059, %v1148
    %v3092 = vadd.f32 %v3060, %v1148
    %v3093 = vadd.f32 %v3061, %v1148
    %v3094 = vadd.f32 %v3062, %v1148
    %v3095 = vadd.f32 %v3063, %v1148
    %v3096 = vadd.f32 %v3064, %v1148
    %v3097 = vadd.f32 %v3065, %v1148
    %v3098 = vadd.f32 %v3066, %v1148
    %v3099 = vadd.f32 %v3067, %v1148
    %v3100 = vadd.f32 %v3068, %v1148
    %v3101 = vadd.f32 %v3069, %v1148
    %v3102 = vmax.f32 %v2878, %v3070
    %v3103 = vmax.f32 %v2879, %v3071
    %v3104 = vmax.f32 %v2880, %v3072
    %v3105 = vmax.f32 %v2881, %v3073
    %v3106 = vmax.f32 %v2882, %v3074
    %v3107 = vmax.f32 %v2883, %v3075
    %v3108 = vmax.f32 %v2884, %v3076
    %v3109 = vmax.f32 %v2885, %v3077
    %v3110 = vmax.f32 %v2886, %v3078
    %v3111 = vmax.f32 %v2887, %v3079
    %v3112 = vmax.f32 %v2888, %v3080
    %v3113 = vmax.f32 %v2889, %v3081
    %v3114 = vmax.f32 %v2890, %v3082
    %v3115 = vmax.f32 %v2891, %v3083
    %v3116 = vmax.f32 %v2892, %v3084
    %v3117 = vmax.f32 %v2893, %v3085
    %v3118 = vmax.f32 %v2894, %v3086
    %v3119 = vmax.f32 %v2895, %v3087
    %v3120 = vmax.f32 %v2896, %v3088
    %v3121 = vmax.f32 %v2897, %v3089
    %v3122 = vmax.f32 %v2898, %v3090
    %v3123 = vmax.f32 %v2899, %v3091
    %v3124 = vmax.f32 %v2900, %v3092
    %v3125 = vmax.f32 %v2901, %v3093
    %v3126 = vmax.f32 %v2902, %v3094
    %v3127 = vmax.f32 %v2903, %v3095
    %v3128 = vmax.f32 %v2904, %v3096
    %v3129 = vmax.f32 %v2905, %v3097
    %v3130 = vmax.f32 %v2906, %v3098
    %v3131 = vmax.f32 %v2907, %v3099
    %v3132 = vmax.f32 %v2908, %v3100
    %v3133 = vmax.f32 %v2909, %v3101
    %v3134 = vmul.f32 %v959, %v2225
    %v3135 = vmul.f32 %v959, %v2229
    %v3136 = vmul.f32 %v959, %v2233
    %v3137 = vmul.f32 %v959, %v2237
    %v3138 = vmul.f32 %v959, %v2241
    %v3139 = vmul.f32 %v959, %v2245
    %v3140 = vmul.f32 %v959, %v2249
    %v3141 = vmul.f32 %v959, %v2253
    %v3142 = vmul.f32 %v959, %v2257
    %v3143 = vmul.f32 %v959, %v2261
    %v3144 = vmul.f32 %v959, %v2265
    %v3145 = vmul.f32 %v959, %v2269
    %v3146 = vmul.f32 %v959, %v2273
    %v3147 = vmul.f32 %v959, %v2277
    %v3148 = vmul.f32 %v959, %v2281
    %v3149 = vmul.f32 %v959, %v2285
    %v3150 = vmul.f32 %v964, %v2225
    %v3151 = vmul.f32 %v964, %v2229
    %v3152 = vmul.f32 %v964, %v2233
    %v3153 = vmul.f32 %v964, %v2237
    %v3154 = vmul.f32 %v964, %v2241
    %v3155 = vmul.f32 %v964, %v2245
    %v3156 = vmul.f32 %v964, %v2249
    %v3157 = vmul.f32 %v964, %v2253
    %v3158 = vmul.f32 %v964, %v2257
    %v3159 = vmul.f32 %v964, %v2261
    %v3160 = vmul.f32 %v964, %v2265
    %v3161 = vmul.f32 %v964, %v2269
    %v3162 = vmul.f32 %v964, %v2273
    %v3163 = vmul.f32 %v964, %v2277
    %v3164 = vmul.f32 %v964, %v2281
    %v3165 = vmul.f32 %v964, %v2285
    %v3166 = vmul.f32 %v1000, %v2369
    %v3167 = vmul.f32 %v1000, %v2373
    %v3168 = vmul.f32 %v1000, %v2377
    %v3169 = vmul.f32 %v1000, %v2381
    %v3170 = vmul.f32 %v1000, %v2385
    %v3171 = vmul.f32 %v1000, %v2389
    %v3172 = vmul.f32 %v1000, %v2393
    %v3173 = vmul.f32 %v1000, %v2397
    %v3174 = vmul.f32 %v1000, %v2401
    %v3175 = vmul.f32 %v1000, %v2405
    %v3176 = vmul.f32 %v1000, %v2409
    %v3177 = vmul.f32 %v1000, %v2413
    %v3178 = vmul.f32 %v1000, %v2417
    %v3179 = vmul.f32 %v1000, %v2421
    %v3180 = vmul.f32 %v1000, %v2425
    %v3181 = vmul.f32 %v1000, %v2429
    %v3182 = vmul.f32 %v1004, %v2369
    %v3183 = vmul.f32 %v1004, %v2373
    %v3184 = vmul.f32 %v1004, %v2377
    %v3185 = vmul.f32 %v1004, %v2381
    %v3186 = vmul.f32 %v1004, %v2385
    %v3187 = vmul.f32 %v1004, %v2389
    %v3188 = vmul.f32 %v1004, %v2393
    %v3189 = vmul.f32 %v1004, %v2397
    %v3190 = vmul.f32 %v1004, %v2401
    %v3191 = vmul.f32 %v1004, %v2405
    %v3192 = vmul.f32 %v1004, %v2409
    %v3193 = vmul.f32 %v1004, %v2413
    %v3194 = vmul.f32 %v1004, %v2417
    %v3195 = vmul.f32 %v1004, %v2421
    %v3196 = vmul.f32 %v1004, %v2425
    %v3197 = vmul.f32 %v1004, %v2429
    %v3198 = vadd.f32 %v3134, %v3166
    %v3199 = vadd.f32 %v3135, %v3167
    %v3200 = vadd.f32 %v3136, %v3168
    %v3201 = vadd.f32 %v3137, %v3169
    %v3202 = vadd.f32 %v3138, %v3170
    %v3203 = vadd.f32 %v3139, %v3171
    %v3204 = vadd.f32 %v3140, %v3172
    %v3205 = vadd.f32 %v3141, %v3173
    %v3206 = vadd.f32 %v3142, %v3174
    %v3207 = vadd.f32 %v3143, %v3175
    %v3208 = vadd.f32 %v3144, %v3176
    %v3209 = vadd.f32 %v3145, %v3177
    %v3210 = vadd.f32 %v3146, %v3178
    %v3211 = vadd.f32 %v3147, %v3179
    %v3212 = vadd.f32 %v3148, %v3180
    %v3213 = vadd.f32 %v3149, %v3181
    %v3214 = vadd.f32 %v3150, %v3182
    %v3215 = vadd.f32 %v3151, %v3183
    %v3216 = vadd.f32 %v3152, %v3184
    %v3217 = vadd.f32 %v3153, %v3185
    %v3218 = vadd.f32 %v3154, %v3186
    %v3219 = vadd.f32 %v3155, %v3187
    %v3220 = vadd.f32 %v3156, %v3188
    %v3221 = vadd.f32 %v3157, %v3189
    %v3222 = vadd.f32 %v3158, %v3190
    %v3223 = vadd.f32 %v3159, %v3191
    %v3224 = vadd.f32 %v3160, %v3192
    %v3225 = vadd.f32 %v3161, %v3193
    %v3226 = vadd.f32 %v3162, %v3194
    %v3227 = vadd.f32 %v3163, %v3195
    %v3228 = vadd.f32 %v3164, %v3196
    %v3229 = vadd.f32 %v3165, %v3197
    %v3230 = vmul.f32 %v1072, %v2513
    %v3231 = vmul.f32 %v1072, %v2517
    %v3232 = vmul.f32 %v1072, %v2521
    %v3233 = vmul.f32 %v1072, %v2525
    %v3234 = vmul.f32 %v1072, %v2529
    %v3235 = vmul.f32 %v1072, %v2533
    %v3236 = vmul.f32 %v1072, %v2537
    %v3237 = vmul.f32 %v1072, %v2541
    %v3238 = vmul.f32 %v1072, %v2545
    %v3239 = vmul.f32 %v1072, %v2549
    %v3240 = vmul.f32 %v1072, %v2553
    %v3241 = vmul.f32 %v1072, %v2557
    %v3242 = vmul.f32 %v1072, %v2561
    %v3243 = vmul.f32 %v1072, %v2565
    %v3244 = vmul.f32 %v1072, %v2569
    %v3245 = vmul.f32 %v1072, %v2573
    %v3246 = vmul.f32 %v1076, %v2513
    %v3247 = vmul.f32 %v1076, %v2517
    %v3248 = vmul.f32 %v1076, %v2521
    %v3249 = vmul.f32 %v1076, %v2525
    %v3250 = vmul.f32 %v1076, %v2529
    %v3251 = vmul.f32 %v1076, %v2533
    %v3252 = vmul.f32 %v1076, %v2537
    %v3253 = vmul.f32 %v1076, %v2541
    %v3254 = vmul.f32 %v1076, %v2545
    %v3255 = vmul.f32 %v1076, %v2549
    %v3256 = vmul.f32 %v1076, %v2553
    %v3257 = vmul.f32 %v1076, %v2557
    %v3258 = vmul.f32 %v1076, %v2561
    %v3259 = vmul.f32 %v1076, %v2565
    %v3260 = vmul.f32 %v1076, %v2569
    %v3261 = vmul.f32 %v1076, %v2573
    %v3262 = vadd.f32 %v3198, %v3230
    %v3263 = vadd.f32 %v3199, %v3231
    %v3264 = vadd.f32 %v3200, %v3232
    %v3265 = vadd.f32 %v3201, %v3233
    %v3266 = vadd.f32 %v3202, %v3234
    %v3267 = vadd.f32 %v3203, %v3235
    %v3268 = vadd.f32 %v3204, %v3236
    %v3269 = vadd.f32 %v3205, %v3237
    %v3270 = vadd.f32 %v3206, %v3238
    %v3271 = vadd.f32 %v3207, %v3239
    %v3272 = vadd.f32 %v3208, %v3240
    %v3273 = vadd.f32 %v3209, %v3241
    %v3274 = vadd.f32 %v3210, %v3242
    %v3275 = vadd.f32 %v3211, %v3243
    %v3276 = vadd.f32 %v3212, %v3244
    %v3277 = vadd.f32 %v3213, %v3245
    %v3278 = vadd.f32 %v3214, %v3246
    %v3279 = vadd.f32 %v3215, %v3247
    %v3280 = vadd.f32 %v3216, %v3248
    %v3281 = vadd.f32 %v3217, %v3249
    %v3282 = vadd.f32 %v3218, %v3250
    %v3283 = vadd.f32 %v3219, %v3251
    %v3284 = vadd.f32 %v3220, %v3252
    %v3285 = vadd.f32 %v3221, %v3253
    %v3286 = vadd.f32 %v3222, %v3254
    %v3287 = vadd.f32 %v3223, %v3255
    %v3288 = vadd.f32 %v3224, %v3256
    %v3289 = vadd.f32 %v3225, %v3257
    %v3290 = vadd.f32 %v3226, %v3258
    %v3291 = vadd.f32 %v3227, %v3259
    %v3292 = vadd.f32 %v3228, %v3260
    %v3293 = vadd.f32 %v3229, %v3261
    %v3294 = vadd.f32 %v3262, %v1144
    %v3295 = vadd.f32 %v3263, %v1144
    %v3296 = vadd.f32 %v3264, %v1144
    %v3297 = vadd.f32 %v3265, %v1144
    %v3298 = vadd.f32 %v3266, %v1144
    %v3299 = vadd.f32 %v3267, %v1144
    %v3300 = vadd.f32 %v3268, %v1144
    %v3301 = vadd.f32 %v3269, %v1144
    %v3302 = vadd.f32 %v3270, %v1144
    %v3303 = vadd.f32 %v3271, %v1144
    %v3304 = vadd.f32 %v3272, %v1144
    %v3305 = vadd.f32 %v3273, %v1144
    %v3306 = vadd.f32 %v3274, %v1144
    %v3307 = vadd.f32 %v3275, %v1144
    %v3308 = vadd.f32 %v3276, %v1144
    %v3309 = vadd.f32 %v3277, %v1144
    %v3310 = vadd.f32 %v3278, %v1148
    %v3311 = vadd.f32 %v3279, %v1148
    %v3312 = vadd.f32 %v3280, %v1148
    %v3313 = vadd.f32 %v3281, %v1148
    %v3314 = vadd.f32 %v3282, %v1148
    %v3315 = vadd.f32 %v3283, %v1148
    %v3316 = vadd.f32 %v3284, %v1148
    %v3317 = vadd.f32 %v3285, %v1148
    %v3318 = vadd.f32 %v3286, %v1148
    %v3319 = vadd.f32 %v3287, %v1148
    %v3320 = vadd.f32 %v3288, %v1148
    %v3321 = vadd.f32 %v3289, %v1148
    %v3322 = vadd.f32 %v3290, %v1148
    %v3323 = vadd.f32 %v3291, %v1148
    %v3324 = vadd.f32 %v3292, %v1148
    %v3325 = vadd.f32 %v3293, %v1148
    %v3326 = vmax.f32 %v3102, %v3294
    %v3327 = vmax.f32 %v3103, %v3295
    %v3328 = vmax.f32 %v3104, %v3296
    %v3329 = vmax.f32 %v3105, %v3297
    %v3330 = vmax.f32 %v3106, %v3298
    %v3331 = vmax.f32 %v3107, %v3299
    %v3332 = vmax.f32 %v3108, %v3300
    %v3333 = vmax.f32 %v3109, %v3301
    %v3334 = vmax.f32 %v3110, %v3302
    %v3335 = vmax.f32 %v3111, %v3303
    %v3336 = vmax.f32 %v3112, %v3304
    %v3337 = vmax.f32 %v3113, %v3305
    %v3338 = vmax.f32 %v3114, %v3306
    %v3339 = vmax.f32 %v3115, %v3307
    %v3340 = vmax.f32 %v3116, %v3308
    %v3341 = vmax.f32 %v3117, %v3309
    %v3342 = vmax.f32 %v3118, %v3310
    %v3343 = vmax.f32 %v3119, %v3311
    %v3344 = vmax.f32 %v3120, %v3312
    %v3345 = vmax.f32 %v3121, %v3313
    %v3346 = vmax.f32 %v3122, %v3314
    %v3347 = vmax.f32 %v3123, %v3315
    %v3348 = vmax.f32 %v3124, %v3316
    %v3349 = vmax.f32 %v3125, %v3317
    %v3350 = vmax.f32 %v3126, %v3318
    %v3351 = vmax.f32 %v3127, %v3319
    %v3352 = vmax.f32 %v3128, %v3320
    %v3353 = vmax.f32 %v3129, %v3321
    %v3354 = vmax.f32 %v3130, %v3322
    %v3355 = vmax.f32 %v3131, %v3323
    %v3356 = vmax.f32 %v3132, %v3324
    %v3357 = vmax.f32 %v3133, %v3325
    %v3358 = vmul.f32 %v959, %v2369
    %v3359 = vmul.f32 %v959, %v2373
    %v3360 = vmul.f32 %v959, %v2377
    %v3361 = vmul.f32 %v959, %v2381
    %v3362 = vmul.f32 %v959, %v2385
    %v3363 = vmul.f32 %v959, %v2389
    %v3364 = vmul.f32 %v959, %v2393
    %v3365 = vmul.f32 %v959, %v2397
    %v3366 = vmul.f32 %v959, %v2401
    %v3367 = vmul.f32 %v959, %v2405
    %v3368 = vmul.f32 %v959, %v2409
    %v3369 = vmul.f32 %v959, %v2413
    %v3370 = vmul.f32 %v959, %v2417
    %v3371 = vmul.f32 %v959, %v2421
    %v3372 = vmul.f32 %v959, %v2425
    %v3373 = vmul.f32 %v959, %v2429
    %v3374 = vmul.f32 %v964, %v2369
    %v3375 = vmul.f32 %v964, %v2373
    %v3376 = vmul.f32 %v964, %v2377
    %v3377 = vmul.f32 %v964, %v2381
    %v3378 = vmul.f32 %v964, %v2385
    %v3379 = vmul.f32 %v964, %v2389
    %v3380 = vmul.f32 %v964, %v2393
    %v3381 = vmul.f32 %v964, %v2397
    %v3382 = vmul.f32 %v964, %v2401
    %v3383 = vmul.f32 %v964, %v2405
    %v3384 = vmul.f32 %v964, %v2409
    %v3385 = vmul.f32 %v964, %v2413
    %v3386 = vmul.f32 %v964, %v2417
    %v3387 = vmul.f32 %v964, %v2421
    %v3388 = vmul.f32 %v964, %v2425
    %v3389 = vmul.f32 %v964, %v2429
    %v3390 = vmul.f32 %v1000, %v2513
    %v3391 = vmul.f32 %v1000, %v2517
    %v3392 = vmul.f32 %v1000, %v2521
    %v3393 = vmul.f32 %v1000, %v2525
    %v3394 = vmul.f32 %v1000, %v2529
    %v3395 = vmul.f32 %v1000, %v2533
    %v3396 = vmul.f32 %v1000, %v2537
    %v3397 = vmul.f32 %v1000, %v2541
    %v3398 = vmul.f32 %v1000, %v2545
    %v3399 = vmul.f32 %v1000, %v2549
    %v3400 = vmul.f32 %v1000, %v2553
    %v3401 = vmul.f32 %v1000, %v2557
    %v3402 = vmul.f32 %v1000, %v2561
    %v3403 = vmul.f32 %v1000, %v2565
    %v3404 = vmul.f32 %v1000, %v2569
    %v3405 = vmul.f32 %v1000, %v2573
    %v3406 = vmul.f32 %v1004, %v2513
    %v3407 = vmul.f32 %v1004, %v2517
    %v3408 = vmul.f32 %v1004, %v2521
    %v3409 = vmul.f32 %v1004, %v2525
    %v3410 = vmul.f32 %v1004, %v2529
    %v3411 = vmul.f32 %v1004, %v2533
    %v3412 = vmul.f32 %v1004, %v2537
    %v3413 = vmul.f32 %v1004, %v2541
    %v3414 = vmul.f32 %v1004, %v2545
    %v3415 = vmul.f32 %v1004, %v2549
    %v3416 = vmul.f32 %v1004, %v2553
    %v3417 = vmul.f32 %v1004, %v2557
    %v3418 = vmul.f32 %v1004, %v2561
    %v3419 = vmul.f32 %v1004, %v2565
    %v3420 = vmul.f32 %v1004, %v2569
    %v3421 = vmul.f32 %v1004, %v2573
    %v3422 = vadd.f32 %v3358, %v3390
    %v3423 = vadd.f32 %v3359, %v3391
    %v3424 = vadd.f32 %v3360, %v3392
    %v3425 = vadd.f32 %v3361, %v3393
    %v3426 = vadd.f32 %v3362, %v3394
    %v3427 = vadd.f32 %v3363, %v3395
    %v3428 = vadd.f32 %v3364, %v3396
    %v3429 = vadd.f32 %v3365, %v3397
    %v3430 = vadd.f32 %v3366, %v3398
    %v3431 = vadd.f32 %v3367, %v3399
    %v3432 = vadd.f32 %v3368, %v3400
    %v3433 = vadd.f32 %v3369, %v3401
    %v3434 = vadd.f32 %v3370, %v3402
    %v3435 = vadd.f32 %v3371, %v3403
    %v3436 = vadd.f32 %v3372, %v3404
    %v3437 = vadd.f32 %v3373, %v3405
    %v3438 = vadd.f32 %v3374, %v3406
    %v3439 = vadd.f32 %v3375, %v3407
    %v3440 = vadd.f32 %v3376, %v3408
    %v3441 = vadd.f32 %v3377, %v3409
    %v3442 = vadd.f32 %v3378, %v3410
    %v3443 = vadd.f32 %v3379, %v3411
    %v3444 = vadd.f32 %v3380, %v3412
    %v3445 = vadd.f32 %v3381, %v3413
    %v3446 = vadd.f32 %v3382, %v3414
    %v3447 = vadd.f32 %v3383, %v3415
    %v3448 = vadd.f32 %v3384, %v3416
    %v3449 = vadd.f32 %v3385, %v3417
    %v3450 = vadd.f32 %v3386, %v3418
    %v3451 = vadd.f32 %v3387, %v3419
    %v3452 = vadd.f32 %v3388, %v3420
    %v3453 = vadd.f32 %v3389, %v3421
    %v3454 = vmul.f32 %v1072, %v2657
    %v3455 = vmul.f32 %v1072, %v2661
    %v3456 = vmul.f32 %v1072, %v2665
    %v3457 = vmul.f32 %v1072, %v2669
    %v3458 = vmul.f32 %v1072, %v2673
    %v3459 = vmul.f32 %v1072, %v2677
    %v3460 = vmul.f32 %v1072, %v2681
    %v3461 = vmul.f32 %v1072, %v2685
    %v3462 = vmul.f32 %v1072, %v2689
    %v3463 = vmul.f32 %v1072, %v2693
    %v3464 = vmul.f32 %v1072, %v2697
    %v3465 = vmul.f32 %v1072, %v2701
    %v3466 = vmul.f32 %v1072, %v2705
    %v3467 = vmul.f32 %v1072, %v2709
    %v3468 = vmul.f32 %v1072, %v2713
    %v3469 = vmul.f32 %v1072, %v2717
    %v3470 = vmul.f32 %v1076, %v2657
    %v3471 = vmul.f32 %v1076, %v2661
    %v3472 = vmul.f32 %v1076, %v2665
    %v3473 = vmul.f32 %v1076, %v2669
    %v3474 = vmul.f32 %v1076, %v2673
    %v3475 = vmul.f32 %v1076, %v2677
    %v3476 = vmul.f32 %v1076, %v2681
    %v3477 = vmul.f32 %v1076, %v2685
    %v3478 = vmul.f32 %v1076, %v2689
    %v3479 = vmul.f32 %v1076, %v2693
    %v3480 = vmul.f32 %v1076, %v2697
    %v3481 = vmul.f32 %v1076, %v2701
    %v3482 = vmul.f32 %v1076, %v2705
    %v3483 = vmul.f32 %v1076, %v2709
    %v3484 = vmul.f32 %v1076, %v2713
    %v3485 = vmul.f32 %v1076, %v2717
    %v3486 = vadd.f32 %v3422, %v3454
    %v3487 = vadd.f32 %v3423, %v3455
    %v3488 = vadd.f32 %v3424, %v3456
    %v3489 = vadd.f32 %v3425, %v3457
    %v3490 = vadd.f32 %v3426, %v3458
    %v3491 = vadd.f32 %v3427, %v3459
    %v3492 = vadd.f32 %v3428, %v3460
    %v3493 = vadd.f32 %v3429, %v3461
    %v3494 = vadd.f32 %v3430, %v3462
    %v3495 = vadd.f32 %v3431, %v3463
    %v3496 = vadd.f32 %v3432, %v3464
    %v3497 = vadd.f32 %v3433, %v3465
    %v3498 = vadd.f32 %v3434, %v3466
    %v3499 = vadd.f32 %v3435, %v3467
    %v3500 = vadd.f32 %v3436, %v3468
    %v3501 = vadd.f32 %v3437, %v3469
    %v3502 = vadd.f32 %v3438, %v3470
    %v3503 = vadd.f32 %v3439, %v3471
    %v3504 = vadd.f32 %v3440, %v3472
    %v3505 = vadd.f32 %v3441, %v3473
    %v3506 = vadd.f32 %v3442, %v3474
    %v3507 = vadd.f32 %v3443, %v3475
    %v3508 = vadd.f32 %v3444, %v3476
    %v3509 = vadd.f32 %v3445, %v3477
    %v3510 = vadd.f32 %v3446, %v3478
    %v3511 = vadd.f32 %v3447, %v3479
    %v3512 = vadd.f32 %v3448, %v3480
    %v3513 = vadd.f32 %v3449, %v3481
    %v3514 = vadd.f32 %v3450, %v3482
    %v3515 = vadd.f32 %v3451, %v3483
    %v3516 = vadd.f32 %v3452, %v3484
    %v3517 = vadd.f32 %v3453, %v3485
    %v3518 = vadd.f32 %v3486, %v1144
    %v3519 = vadd.f32 %v3487, %v1144
    %v3520 = vadd.f32 %v3488, %v1144
    %v3521 = vadd.f32 %v3489, %v1144
    %v3522 = vadd.f32 %v3490, %v1144
    %v3523 = vadd.f32 %v3491, %v1144
    %v3524 = vadd.f32 %v3492, %v1144
    %v3525 = vadd.f32 %v3493, %v1144
    %v3526 = vadd.f32 %v3494, %v1144
    %v3527 = vadd.f32 %v3495, %v1144
    %v3528 = vadd.f32 %v3496, %v1144
    %v3529 = vadd.f32 %v3497, %v1144
    %v3530 = vadd.f32 %v3498, %v1144
    %v3531 = vadd.f32 %v3499, %v1144
    %v3532 = vadd.f32 %v3500, %v1144
    %v3533 = vadd.f32 %v3501, %v1144
    %v3534 = vadd.f32 %v3502, %v1148
    %v3535 = vadd.f32 %v3503, %v1148
    %v3536 = vadd.f32 %v3504, %v1148
    %v3537 = vadd.f32 %v3505, %v1148
    %v3538 = vadd.f32 %v3506, %v1148
    %v3539 = vadd.f32 %v3507, %v1148
    %v3540 = vadd.f32 %v3508, %v1148
    %v3541 = vadd.f32 %v3509, %v1148
    %v3542 = vadd.f32 %v3510, %v1148
    %v3543 = vadd.f32 %v3511, %v1148
    %v3544 = vadd.f32 %v3512, %v1148
    %v3545 = vadd.f32 %v3513, %v1148
    %v3546 = vadd.f32 %v3514, %v1148
    %v3547 = vadd.f32 %v3515, %v1148
    %v3548 = vadd.f32 %v3516, %v1148
    %v3549 = vadd.f32 %v3517, %v1148
    %v3550 = vmax.f32 %v3326, %v3518
    %v3551 = vmax.f32 %v3327, %v3519
    %v3552 = vmax.f32 %v3328, %v3520
    %v3553 = vmax.f32 %v3329, %v3521
    %v3554 = vmax.f32 %v3330, %v3522
    %v3555 = vmax.f32 %v3331, %v3523
    %v3556 = vmax.f32 %v3332, %v3524
    %v3557 = vmax.f32 %v3333, %v3525
    %v3558 = vmax.f32 %v3334, %v3526
    %v3559 = vmax.f32 %v3335, %v3527
    %v3560 = vmax.f32 %v3336, %v3528
    %v3561 = vmax.f32 %v3337, %v3529
    %v3562 = vmax.f32 %v3338, %v3530
    %v3563 = vmax.f32 %v3339, %v3531
    %v3564 = vmax.f32 %v3340, %v3532
    %v3565 = vmax.f32 %v3341, %v3533
    %v3566 = vmax.f32 %v3342, %v3534
    %v3567 = vmax.f32 %v3343, %v3535
    %v3568 = vmax.f32 %v3344, %v3536
    %v3569 = vmax.f32 %v3345, %v3537
    %v3570 = vmax.f32 %v3346, %v3538
    %v3571 = vmax.f32 %v3347, %v3539
    %v3572 = vmax.f32 %v3348, %v3540
    %v3573 = vmax.f32 %v3349, %v3541
    %v3574 = vmax.f32 %v3350, %v3542
    %v3575 = vmax.f32 %v3351, %v3543
    %v3576 = vmax.f32 %v3352, %v3544
    %v3577 = vmax.f32 %v3353, %v3545
    %v3578 = vmax.f32 %v3354, %v3546
    %v3579 = vmax.f32 %v3355, %v3547
    %v3580 = vmax.f32 %v3356, %v3548
    %v3581 = vmax.f32 %v3357, %v3549
    %vm3614 = vcmask 1041408
    %v3615 = vrot.slane %v3550, 6
    %v3616 = vrot.slane %v3551, 6
    %v3617 = vrot.slane %v3552, 6
    %v3618 = vrot.slane %v3553, 6
    %v3619 = vrot.slane %v3554, 6
    %v3620 = vrot.slane %v3555, 6
    %v3621 = vrot.slane %v3556, 6
    %v3622 = vrot.slane %v3557, 6
    %v3623 = vrot.slane %v3558, 6
    %v3624 = vrot.slane %v3559, 6
    %v3625 = vrot.slane %v3560, 6
    %v3626 = vrot.slane %v3561, 6
    %v3627 = vrot.slane %v3562, 6
    %v3628 = vrot.slane %v3563, 6
    %v3629 = vrot.slane %v3564, 6
    %v3630 = vrot.slane %v3565, 6
    %v3631 = vrot.slane %v3566, 6
    %v3632 = vsel %vm3614, %v3615, %v3631
    %v3633 = vrot.slane %v3567, 6
    %v3634 = vsel %vm3614, %v3616, %v3633
    %v3635 = vrot.slane %v3568, 6
    %v3636 = vsel %vm3614, %v3617, %v3635
    %v3637 = vrot.slane %v3569, 6
    %v3638 = vsel %vm3614, %v3618, %v3637
    %v3639 = vrot.slane %v3570, 6
    %v3640 = vsel %vm3614, %v3619, %v3639
    %v3641 = vrot.slane %v3571, 6
    %v3642 = vsel %vm3614, %v3620, %v3641
    %v3643 = vrot.slane %v3572, 6
    %v3644 = vsel %vm3614, %v3621, %v3643
    %v3645 = vrot.slane %v3573, 6
    %v3646 = vsel %vm3614, %v3622, %v3645
    %v3647 = vrot.slane %v3574, 6
    %v3648 = vsel %vm3614, %v3623, %v3647
    %v3649 = vrot.slane %v3575, 6
    %v3650 = vsel %vm3614, %v3624, %v3649
    %v3651 = vrot.slane %v3576, 6
    %v3652 = vsel %vm3614, %v3625, %v3651
    %v3653 = vrot.slane %v3577, 6
    %v3654 = vsel %vm3614, %v3626, %v3653
    %v3655 = vrot.slane %v3578, 6
    %v3656 = vsel %vm3614, %v3627, %v3655
    %v3657 = vrot.slane %v3579, 6
    %v3658 = vsel %vm3614, %v3628, %v3657
    %v3659 = vrot.slane %v3580, 6
    %v3660 = vsel %vm3614, %v3629, %v3659
    %v3661 = vrot.slane %v3581, 6
    %v3662 = vsel %vm3614, %v3630, %v3661
    %v3695 = vsel %vm3614, %v1838, %v3615
    %v3696 = vsel %vm3614, %v1839, %v3616
    %v3697 = vsel %vm3614, %v1840, %v3617
    %v3698 = vsel %vm3614, %v1841, %v3618
    %v3699 = vsel %vm3614, %v1842, %v3619
    %v3700 = vsel %vm3614, %v1843, %v3620
    %v3701 = vsel %vm3614, %v1844, %v3621
    %v3702 = vsel %vm3614, %v1845, %v3622
    %v3703 = vsel %vm3614, %v1846, %v3623
    %v3704 = vsel %vm3614, %v1847, %v3624
    %v3705 = vsel %vm3614, %v1848, %v3625
    %v3706 = vsel %vm3614, %v1849, %v3626
    %v3707 = vsel %vm3614, %v1850, %v3627
    %v3708 = vsel %vm3614, %v1851, %v3628
    %v3709 = vsel %vm3614, %v1852, %v3629
    %v3710 = vsel %vm3614, %v1853, %v3630
    %v3711 = vpack.c.bf16 %v3695, %v1822
    %v3712 = vpack.c.bf16 %v3696, %v1823
    %v3713 = vpack.c.bf16 %v3697, %v1824
    %v3714 = vpack.c.bf16 %v3698, %v1825
    %v3715 = vpack.c.bf16 %v3699, %v1826
    %v3716 = vpack.c.bf16 %v3700, %v1827
    %v3717 = vpack.c.bf16 %v3701, %v1828
    %v3718 = vpack.c.bf16 %v3702, %v1829
    %v3719 = vpack.c.bf16 %v3703, %v1830
    %v3720 = vpack.c.bf16 %v3704, %v1831
    %v3721 = vpack.c.bf16 %v3705, %v1832
    %v3722 = vpack.c.bf16 %v3706, %v1833
    %v3723 = vpack.c.bf16 %v3707, %v1834
    %v3724 = vpack.c.bf16 %v3708, %v1835
    %v3725 = vpack.c.bf16 %v3709, %v1836
    %v3726 = vpack.c.bf16 %v3710, %v1837
    %v3727 = vpack.c.bf16 %v3632, %v3632
    %v3728 = vpack.c.bf16 %v3634, %v3634
    %v3729 = vpack.c.bf16 %v3636, %v3636
    %v3730 = vpack.c.bf16 %v3638, %v3638
    %v3731 = vpack.c.bf16 %v3640, %v3640
    %v3732 = vpack.c.bf16 %v3642, %v3642
    %v3733 = vpack.c.bf16 %v3644, %v3644
    %v3734 = vpack.c.bf16 %v3646, %v3646
    %v3735 = vpack.c.bf16 %v3648, %v3648
    %v3736 = vpack.c.bf16 %v3650, %v3650
    %v3737 = vpack.c.bf16 %v3652, %v3652
    %v3738 = vpack.c.bf16 %v3654, %v3654
    %v3739 = vpack.c.bf16 %v3656, %v3656
    %v3740 = vpack.c.bf16 %v3658, %v3658
    %v3741 = vpack.c.bf16 %v3660, %v3660
    %v3742 = vpack.c.bf16 %v3662, %v3662
    %v3743 = vld [vmem:[#allocation2] sm:$0xf]
    %v3744 = vld [vmem:[#allocation2 + $0x4] sm:$0xf]
    %v3745 = vld [vmem:[#allocation2 + $0x8] sm:$0xf]
    %v3746 = vld [vmem:[#allocation2 + $0xc] sm:$0xf]
    %v3747 = vld [vmem:[#allocation2 + $0x10] sm:$0xf]
    %v3748 = vld [vmem:[#allocation2 + $0x14] sm:$0xf]
    %v3749 = vld [vmem:[#allocation2 + $0x18] sm:$0xf]
    %v3750 = vld [vmem:[#allocation2 + $0x1c] sm:$0xf]
    %v3751 = vld [vmem:[#allocation2 + $0x20] sm:$0xf]
    %v3752 = vld [vmem:[#allocation2 + $0x24] sm:$0xf]
    %v3753 = vld [vmem:[#allocation2 + $0x28] sm:$0xf]
    %v3754 = vld [vmem:[#allocation2 + $0x2c] sm:$0xf]
    %v3755 = vld [vmem:[#allocation2 + $0x30] sm:$0xf]
    %v3756 = vld [vmem:[#allocation2 + $0x34] sm:$0xf]
    %v3757 = vld [vmem:[#allocation2 + $0x38] sm:$0xf]
    %v3758 = vld [vmem:[#allocation2 + $0x3c] sm:$0xf]
    %v3759 = vld [vmem:[#allocation2 + $0x40] sm:$0xf]
    %v3760 = vld [vmem:[#allocation2 + $0x44] sm:$0xf]
    %v3761 = vld [vmem:[#allocation2 + $0x48] sm:$0xf]
    %v3762 = vld [vmem:[#allocation2 + $0x4c] sm:$0xf]
    %v3763 = vld [vmem:[#allocation2 + $0x50] sm:$0xf]
    %v3764 = vld [vmem:[#allocation2 + $0x54] sm:$0xf]
    %v3765 = vld [vmem:[#allocation2 + $0x58] sm:$0xf]
    %v3766 = vld [vmem:[#allocation2 + $0x5c] sm:$0xf]
    %v3767 = vld [vmem:[#allocation2 + $0x60] sm:$0xf]
    %v3768 = vld [vmem:[#allocation2 + $0x64] sm:$0xf]
    %v3769 = vld [vmem:[#allocation2 + $0x68] sm:$0xf]
    %v3770 = vld [vmem:[#allocation2 + $0x6c] sm:$0xf]
    %v3771 = vld [vmem:[#allocation2 + $0x70] sm:$0xf]
    %v3772 = vld [vmem:[#allocation2 + $0x74] sm:$0xf]
    %v3773 = vld [vmem:[#allocation2 + $0x78] sm:$0xf]
    %v3774 = vld [vmem:[#allocation2 + $0x7c] sm:$0xf]
    %v3775 = vld [vmem:[#allocation2 + $0x80] sm:$0xf]
    %v3776 = vld [vmem:[#allocation2 + $0x84] sm:$0xf]
    %v3777 = vld [vmem:[#allocation2 + $0x88] sm:$0xf]
    %v3778 = vld [vmem:[#allocation2 + $0x8c] sm:$0xf]
    %v3779 = vld [vmem:[#allocation2 + $0x90] sm:$0xf]
    %v3780 = vld [vmem:[#allocation2 + $0x94] sm:$0xf]
    %v3781 = vld [vmem:[#allocation2 + $0x98] sm:$0xf]
    %v3782 = vld [vmem:[#allocation2 + $0x9c] sm:$0xf]
    %v3783 = vld [vmem:[#allocation2 + $0xa0] sm:$0xf]
    %v3784 = vld [vmem:[#allocation2 + $0xa4] sm:$0xf]
    %v3785 = vld [vmem:[#allocation2 + $0xa8] sm:$0xf]
    %v3786 = vld [vmem:[#allocation2 + $0xac] sm:$0xf]
    %v3787 = vld [vmem:[#allocation2 + $0xb0] sm:$0xf]
    %v3788 = vld [vmem:[#allocation2 + $0xb4] sm:$0xf]
    %v3789 = vld [vmem:[#allocation2 + $0xb8] sm:$0xf]
    %v3790 = vld [vmem:[#allocation2 + $0xbc] sm:$0xf]
    %v3791 = vld [vmem:[#allocation2 + $0xc0] sm:$0xf]
    %v3792 = vld [vmem:[#allocation2 + $0xc4] sm:$0xf]
    %v3793 = vld [vmem:[#allocation2 + $0xc8] sm:$0xf]
    %v3794 = vld [vmem:[#allocation2 + $0xcc] sm:$0xf]
    %v3795 = vld [vmem:[#allocation2 + $0xd0] sm:$0xf]
    %v3796 = vld [vmem:[#allocation2 + $0xd4] sm:$0xf]
    %v3797 = vld [vmem:[#allocation2 + $0xd8] sm:$0xf]
    %v3798 = vld [vmem:[#allocation2 + $0xdc] sm:$0xf]
    %v3799 = vld [vmem:[#allocation2 + $0xe0] sm:$0xf]
    %v3800 = vld [vmem:[#allocation2 + $0xe4] sm:$0xf]
    %v3801 = vld [vmem:[#allocation2 + $0xe8] sm:$0xf]
    %v3802 = vld [vmem:[#allocation2 + $0xec] sm:$0xf]
    %v3803 = vld [vmem:[#allocation2 + $0xf0] sm:$0xf]
    %v3804 = vld [vmem:[#allocation2 + $0xf4] sm:$0xf]
    %v3805 = vld [vmem:[#allocation2 + $0xf8] sm:$0xf]
    %v3806 = vld [vmem:[#allocation2 + $0xfc] sm:$0xf]
    %v3807 = vld [vmem:[#allocation2 + $0x100] sm:$0xf]
    %v3808 = vld [vmem:[#allocation2 + $0x104] sm:$0xf]
    %v3809 = vld [vmem:[#allocation2 + $0x108] sm:$0xf]
    %v3810 = vld [vmem:[#allocation2 + $0x10c] sm:$0xf]
    %v3811 = vld [vmem:[#allocation2 + $0x110] sm:$0xf]
    %v3812 = vld [vmem:[#allocation2 + $0x114] sm:$0xf]
    %v3813 = vld [vmem:[#allocation2 + $0x118] sm:$0xf]
    %v3814 = vld [vmem:[#allocation2 + $0x11c] sm:$0xf]
    %v3815 = vld [vmem:[#allocation2 + $0x120] sm:$0xf]
    %v3816 = vld [vmem:[#allocation2 + $0x124] sm:$0xf]
    %v3817 = vld [vmem:[#allocation2 + $0x128] sm:$0xf]
    %v3818 = vld [vmem:[#allocation2 + $0x12c] sm:$0xf]
    %v3819 = vld [vmem:[#allocation2 + $0x130] sm:$0xf]
    %v3820 = vld [vmem:[#allocation2 + $0x134] sm:$0xf]
    %v3821 = vld [vmem:[#allocation2 + $0x138] sm:$0xf]
    %v3822 = vld [vmem:[#allocation2 + $0x13c] sm:$0xf]
    %v3823 = vld [vmem:[#allocation2 + $0x140] sm:$0xf]
    %v3824 = vld [vmem:[#allocation2 + $0x144] sm:$0xf]
    %v3825 = vld [vmem:[#allocation2 + $0x148] sm:$0xf]
    %v3826 = vld [vmem:[#allocation2 + $0x14c] sm:$0xf]
    %v3827 = vld [vmem:[#allocation2 + $0x150] sm:$0xf]
    %v3828 = vld [vmem:[#allocation2 + $0x154] sm:$0xf]
    %v3829 = vld [vmem:[#allocation2 + $0x158] sm:$0xf]
    %v3830 = vld [vmem:[#allocation2 + $0x15c] sm:$0xf]
    %v3831 = vld [vmem:[#allocation2 + $0x160] sm:$0xf]
    %v3832 = vld [vmem:[#allocation2 + $0x164] sm:$0xf]
    %v3833 = vld [vmem:[#allocation2 + $0x168] sm:$0xf]
    %v3834 = vld [vmem:[#allocation2 + $0x16c] sm:$0xf]
    %v3835 = vld [vmem:[#allocation2 + $0x170] sm:$0xf]
    %v3836 = vld [vmem:[#allocation2 + $0x174] sm:$0xf]
    %v3837 = vld [vmem:[#allocation2 + $0x178] sm:$0xf]
    %v3838 = vld [vmem:[#allocation2 + $0x17c] sm:$0xf]
    %v3839 = vld [vmem:[#allocation2 + $0x180] sm:$0xf]
    %v3840 = vld [vmem:[#allocation2 + $0x184] sm:$0xf]
    %v3841 = vld [vmem:[#allocation2 + $0x188] sm:$0xf]
    %v3842 = vld [vmem:[#allocation2 + $0x18c] sm:$0xf]
    %v3843 = vld [vmem:[#allocation2 + $0x190] sm:$0xf]
    %v3844 = vld [vmem:[#allocation2 + $0x194] sm:$0xf]
    %v3845 = vld [vmem:[#allocation2 + $0x198] sm:$0xf]
    %v3846 = vld [vmem:[#allocation2 + $0x19c] sm:$0xf]
    %v3847 = vld [vmem:[#allocation2 + $0x1a0] sm:$0xf]
    %v3848 = vld [vmem:[#allocation2 + $0x1a4] sm:$0xf]
    %v3849 = vld [vmem:[#allocation2 + $0x1a8] sm:$0xf]
    %v3850 = vld [vmem:[#allocation2 + $0x1ac] sm:$0xf]
    %v3851 = vld [vmem:[#allocation2 + $0x1b0] sm:$0xf]
    %v3852 = vld [vmem:[#allocation2 + $0x1b4] sm:$0xf]
    %v3853 = vld [vmem:[#allocation2 + $0x1b8] sm:$0xf]
    %v3854 = vld [vmem:[#allocation2 + $0x1bc] sm:$0xf]
    %v3855 = vld [vmem:[#allocation2 + $0x1c0] sm:$0xf]
    %v3856 = vld [vmem:[#allocation2 + $0x1c4] sm:$0xf]
    %v3857 = vld [vmem:[#allocation2 + $0x1c8] sm:$0xf]
    %v3858 = vld [vmem:[#allocation2 + $0x1cc] sm:$0xf]
    %v3859 = vld [vmem:[#allocation2 + $0x1d0] sm:$0xf]
    %v3860 = vld [vmem:[#allocation2 + $0x1d4] sm:$0xf]
    %v3861 = vld [vmem:[#allocation2 + $0x1d8] sm:$0xf]
    %v3862 = vld [vmem:[#allocation2 + $0x1dc] sm:$0xf]
    %v3863 = vld [vmem:[#allocation2 + $0x1e0] sm:$0xf]
    %v3864 = vld [vmem:[#allocation2 + $0x1e4] sm:$0xf]
    %v3865 = vld [vmem:[#allocation2 + $0x1e8] sm:$0xf]
    %v3866 = vld [vmem:[#allocation2 + $0x1ec] sm:$0xf]
    %v3867 = vld [vmem:[#allocation2 + $0x1f0] sm:$0xf]
    %v3868 = vld [vmem:[#allocation2 + $0x1f4] sm:$0xf]
    %v3869 = vld [vmem:[#allocation2 + $0x1f8] sm:$0xf]
    %v3870 = vld [vmem:[#allocation2 + $0x1fc] sm:$0xf]
    %v3871 = vld [vmem:[#allocation2 + $0x200] sm:$0xf]
    %v3872 = vld [vmem:[#allocation2 + $0x204] sm:$0xf]
    %v3873 = vld [vmem:[#allocation2 + $0x208] sm:$0xf]
    %v3874 = vld [vmem:[#allocation2 + $0x20c] sm:$0xf]
    %v3875 = vld [vmem:[#allocation2 + $0x210] sm:$0xf]
    %v3876 = vld [vmem:[#allocation2 + $0x214] sm:$0xf]
    %v3877 = vld [vmem:[#allocation2 + $0x218] sm:$0xf]
    %v3878 = vld [vmem:[#allocation2 + $0x21c] sm:$0xf]
    %v3879 = vld [vmem:[#allocation2 + $0x220] sm:$0xf]
    %v3880 = vld [vmem:[#allocation2 + $0x224] sm:$0xf]
    %v3881 = vld [vmem:[#allocation2 + $0x228] sm:$0xf]
    %v3882 = vld [vmem:[#allocation2 + $0x22c] sm:$0xf]
    %v3883 = vld [vmem:[#allocation2 + $0x230] sm:$0xf]
    %v3884 = vld [vmem:[#allocation2 + $0x234] sm:$0xf]
    %v3885 = vld [vmem:[#allocation2 + $0x238] sm:$0xf]
    %v3886 = vld [vmem:[#allocation2 + $0x23c] sm:$0xf]
    %v3887 = vld [vmem:[#allocation2 + $0x240] sm:$0xf]
    %v3888 = vld [vmem:[#allocation2 + $0x244] sm:$0xf]
    %v3889 = vld [vmem:[#allocation2 + $0x248] sm:$0xf]
    %v3890 = vld [vmem:[#allocation2 + $0x24c] sm:$0xf]
    %v3891 = vld [vmem:[#allocation2 + $0x250] sm:$0xf]
    %v3892 = vld [vmem:[#allocation2 + $0x254] sm:$0xf]
    %v3893 = vld [vmem:[#allocation2 + $0x258] sm:$0xf]
    %v3894 = vld [vmem:[#allocation2 + $0x25c] sm:$0xf]
    %v3895 = vld [vmem:[#allocation2 + $0x260] sm:$0xf]
    %v3896 = vld [vmem:[#allocation2 + $0x264] sm:$0xf]
    %v3897 = vld [vmem:[#allocation2 + $0x268] sm:$0xf]
    %v3898 = vld [vmem:[#allocation2 + $0x26c] sm:$0xf]
    %v3899 = vld [vmem:[#allocation2 + $0x270] sm:$0xf]
    %v3900 = vld [vmem:[#allocation2 + $0x274] sm:$0xf]
    %v3901 = vld [vmem:[#allocation2 + $0x278] sm:$0xf]
    %v3902 = vld [vmem:[#allocation2 + $0x27c] sm:$0xf]
    %v3903 = vld [vmem:[#allocation2 + $0x280] sm:$0xf]
    %v3904 = vld [vmem:[#allocation2 + $0x284] sm:$0xf]
    %v3905 = vld [vmem:[#allocation2 + $0x288] sm:$0xf]
    %v3906 = vld [vmem:[#allocation2 + $0x28c] sm:$0xf]
    %v3907 = vld [vmem:[#allocation2 + $0x290] sm:$0xf]
    %v3908 = vld [vmem:[#allocation2 + $0x294] sm:$0xf]
    %v3909 = vld [vmem:[#allocation2 + $0x298] sm:$0xf]
    %v3910 = vld [vmem:[#allocation2 + $0x29c] sm:$0xf]
    %v3911 = vld [vmem:[#allocation2 + $0x2a0] sm:$0xf]
    %v3912 = vld [vmem:[#allocation2 + $0x2a4] sm:$0xf]
    %v3913 = vld [vmem:[#allocation2 + $0x2a8] sm:$0xf]
    %v3914 = vld [vmem:[#allocation2 + $0x2ac] sm:$0xf]
    %v3915 = vld [vmem:[#allocation2 + $0x2b0] sm:$0xf]
    %v3916 = vld [vmem:[#allocation2 + $0x2b4] sm:$0xf]
    %v3917 = vld [vmem:[#allocation2 + $0x2b8] sm:$0xf]
    %v3918 = vld [vmem:[#allocation2 + $0x2bc] sm:$0xf]
    %v3919 = vld [vmem:[#allocation2 + $0x2c0] sm:$0xf]
    %v3920 = vld [vmem:[#allocation2 + $0x2c4] sm:$0xf]
    %v3921 = vld [vmem:[#allocation2 + $0x2c8] sm:$0xf]
    %v3922 = vld [vmem:[#allocation2 + $0x2cc] sm:$0xf]
    %v3923 = vld [vmem:[#allocation2 + $0x2d0] sm:$0xf]
    %v3924 = vld [vmem:[#allocation2 + $0x2d4] sm:$0xf]
    %v3925 = vld [vmem:[#allocation2 + $0x2d8] sm:$0xf]
    %v3926 = vld [vmem:[#allocation2 + $0x2dc] sm:$0xf]
    %v3927 = vld [vmem:[#allocation2 + $0x2e0] sm:$0xf]
    %v3928 = vld [vmem:[#allocation2 + $0x2e4] sm:$0xf]
    %v3929 = vld [vmem:[#allocation2 + $0x2e8] sm:$0xf]
    %v3930 = vld [vmem:[#allocation2 + $0x2ec] sm:$0xf]
    %v3931 = vld [vmem:[#allocation2 + $0x2f0] sm:$0xf]
    %v3932 = vld [vmem:[#allocation2 + $0x2f4] sm:$0xf]
    %v3933 = vld [vmem:[#allocation2 + $0x2f8] sm:$0xf]
    %v3934 = vld [vmem:[#allocation2 + $0x2fc] sm:$0xf]
    %v3935 = vld [vmem:[#allocation2 + $0x300] sm:$0xf]
    %v3936 = vld [vmem:[#allocation2 + $0x304] sm:$0xf]
    %v3937 = vld [vmem:[#allocation2 + $0x308] sm:$0xf]
    %v3938 = vld [vmem:[#allocation2 + $0x30c] sm:$0xf]
    %v3939 = vld [vmem:[#allocation2 + $0x310] sm:$0xf]
    %v3940 = vld [vmem:[#allocation2 + $0x314] sm:$0xf]
    %v3941 = vld [vmem:[#allocation2 + $0x318] sm:$0xf]
    %v3942 = vld [vmem:[#allocation2 + $0x31c] sm:$0xf]
    %v3943 = vld [vmem:[#allocation2 + $0x320] sm:$0xf]
    %v3944 = vld [vmem:[#allocation2 + $0x324] sm:$0xf]
    %v3945 = vld [vmem:[#allocation2 + $0x328] sm:$0xf]
    %v3946 = vld [vmem:[#allocation2 + $0x32c] sm:$0xf]
    %v3947 = vld [vmem:[#allocation2 + $0x330] sm:$0xf]
    %v3948 = vld [vmem:[#allocation2 + $0x334] sm:$0xf]
    %v3949 = vld [vmem:[#allocation2 + $0x338] sm:$0xf]
    %v3950 = vld [vmem:[#allocation2 + $0x33c] sm:$0xf]
    %v3951 = vld [vmem:[#allocation2 + $0x340] sm:$0xf]
    %v3952 = vld [vmem:[#allocation2 + $0x344] sm:$0xf]
    %v3953 = vld [vmem:[#allocation2 + $0x348] sm:$0xf]
    %v3954 = vld [vmem:[#allocation2 + $0x34c] sm:$0xf]
    %v3955 = vld [vmem:[#allocation2 + $0x350] sm:$0xf]
    %v3956 = vld [vmem:[#allocation2 + $0x354] sm:$0xf]
    %v3957 = vld [vmem:[#allocation2 + $0x358] sm:$0xf]
    %v3958 = vld [vmem:[#allocation2 + $0x35c] sm:$0xf]
    %v3959 = vld [vmem:[#allocation2 + $0x360] sm:$0xf]
    %v3960 = vld [vmem:[#allocation2 + $0x364] sm:$0xf]
    %v3961 = vld [vmem:[#allocation2 + $0x368] sm:$0xf]
    %v3962 = vld [vmem:[#allocation2 + $0x36c] sm:$0xf]
    %v3963 = vld [vmem:[#allocation2 + $0x370] sm:$0xf]
    %v3964 = vld [vmem:[#allocation2 + $0x374] sm:$0xf]
    %v3965 = vld [vmem:[#allocation2 + $0x378] sm:$0xf]
    %v3966 = vld [vmem:[#allocation2 + $0x37c] sm:$0xf]
    %v3967 = vld [vmem:[#allocation2 + $0x380] sm:$0xf]
    %v3968 = vld [vmem:[#allocation2 + $0x384] sm:$0xf]
    %v3969 = vld [vmem:[#allocation2 + $0x388] sm:$0xf]
    %v3970 = vld [vmem:[#allocation2 + $0x38c] sm:$0xf]
    %v3971 = vld [vmem:[#allocation2 + $0x390] sm:$0xf]
    %v3972 = vld [vmem:[#allocation2 + $0x394] sm:$0xf]
    %v3973 = vld [vmem:[#allocation2 + $0x398] sm:$0xf]
    %v3974 = vld [vmem:[#allocation2 + $0x39c] sm:$0xf]
    %v3975 = vld [vmem:[#allocation2 + $0x3a0] sm:$0xf]
    %v3976 = vld [vmem:[#allocation2 + $0x3a4] sm:$0xf]
    %v3977 = vld [vmem:[#allocation2 + $0x3a8] sm:$0xf]
    %v3978 = vld [vmem:[#allocation2 + $0x3ac] sm:$0xf]
    %v3979 = vld [vmem:[#allocation2 + $0x3b0] sm:$0xf]
    %v3980 = vld [vmem:[#allocation2 + $0x3b4] sm:$0xf]
    %v3981 = vld [vmem:[#allocation2 + $0x3b8] sm:$0xf]
    %v3982 = vld [vmem:[#allocation2 + $0x3bc] sm:$0xf]
    %v3983 = vld [vmem:[#allocation2 + $0x3c0] sm:$0xf]
    %v3984 = vld [vmem:[#allocation2 + $0x3c4] sm:$0xf]
    %v3985 = vld [vmem:[#allocation2 + $0x3c8] sm:$0xf]
    %v3986 = vld [vmem:[#allocation2 + $0x3cc] sm:$0xf]
    %v3987 = vld [vmem:[#allocation2 + $0x3d0] sm:$0xf]
    %v3988 = vld [vmem:[#allocation2 + $0x3d4] sm:$0xf]
    %v3989 = vld [vmem:[#allocation2 + $0x3d8] sm:$0xf]
    %v3990 = vld [vmem:[#allocation2 + $0x3dc] sm:$0xf]
    %v3991 = vld [vmem:[#allocation2 + $0x3e0] sm:$0xf]
    %v3992 = vld [vmem:[#allocation2 + $0x3e4] sm:$0xf]
    %v3993 = vld [vmem:[#allocation2 + $0x3e8] sm:$0xf]
    %v3994 = vld [vmem:[#allocation2 + $0x3ec] sm:$0xf]
    %v3995 = vld [vmem:[#allocation2 + $0x3f0] sm:$0xf]
    %v3996 = vld [vmem:[#allocation2 + $0x3f4] sm:$0xf]
    %v3997 = vld [vmem:[#allocation2 + $0x3f8] sm:$0xf]
    %v3998 = vld [vmem:[#allocation2 + $0x3fc] sm:$0xf]
    %v3999 = vld [vmem:[%s4] sm:$0x1]
    %v4000 = vlaneseq
    %v4001 = vshrl.u32 %v4000, 7
    %v4002 = vsub.s32 0, %v4001
    %v4003 = vrot.slane %v3999, %v4002
    %v4260 = vunpack.c.l.b16 %v3743
    %v4261 = vunpack.c.l.b16 %v3744
    %v4262 = vunpack.c.l.b16 %v3745
    %v4263 = vunpack.c.l.b16 %v3746
    %v4264 = vunpack.c.l.b16 %v3747
    %v4265 = vunpack.c.l.b16 %v3748
    %v4266 = vunpack.c.l.b16 %v3749
    %v4267 = vunpack.c.l.b16 %v3750
    %v4268 = vunpack.c.l.b16 %v3751
    %v4269 = vunpack.c.l.b16 %v3752
    %v4270 = vunpack.c.l.b16 %v3753
    %v4271 = vunpack.c.l.b16 %v3754
    %v4272 = vunpack.c.l.b16 %v3755
    %v4273 = vunpack.c.l.b16 %v3756
    %v4274 = vunpack.c.l.b16 %v3757
    %v4275 = vunpack.c.l.b16 %v3758
    %v4276 = vunpack.c.l.b16 %v3759
    %v4277 = vunpack.c.l.b16 %v3760
    %v4278 = vunpack.c.l.b16 %v3761
    %v4279 = vunpack.c.l.b16 %v3762
    %v4280 = vunpack.c.l.b16 %v3763
    %v4281 = vunpack.c.l.b16 %v3764
    %v4282 = vunpack.c.l.b16 %v3765
    %v4283 = vunpack.c.l.b16 %v3766
    %v4284 = vunpack.c.l.b16 %v3767
    %v4285 = vunpack.c.l.b16 %v3768
    %v4286 = vunpack.c.l.b16 %v3769
    %v4287 = vunpack.c.l.b16 %v3770
    %v4288 = vunpack.c.l.b16 %v3771
    %v4289 = vunpack.c.l.b16 %v3772
    %v4290 = vunpack.c.l.b16 %v3773
    %v4291 = vunpack.c.l.b16 %v3774
    %v4292 = vunpack.c.l.b16 %v3775
    %v4293 = vunpack.c.l.b16 %v3776
    %v4294 = vunpack.c.l.b16 %v3777
    %v4295 = vunpack.c.l.b16 %v3778
    %v4296 = vunpack.c.l.b16 %v3779
    %v4297 = vunpack.c.l.b16 %v3780
    %v4298 = vunpack.c.l.b16 %v3781
    %v4299 = vunpack.c.l.b16 %v3782
    %v4300 = vunpack.c.l.b16 %v3783
    %v4301 = vunpack.c.l.b16 %v3784
    %v4302 = vunpack.c.l.b16 %v3785
    %v4303 = vunpack.c.l.b16 %v3786
    %v4304 = vunpack.c.l.b16 %v3787
    %v4305 = vunpack.c.l.b16 %v3788
    %v4306 = vunpack.c.l.b16 %v3789
    %v4307 = vunpack.c.l.b16 %v3790
    %v4308 = vunpack.c.l.b16 %v3791
    %v4309 = vunpack.c.l.b16 %v3792
    %v4310 = vunpack.c.l.b16 %v3793
    %v4311 = vunpack.c.l.b16 %v3794
    %v4312 = vunpack.c.l.b16 %v3795
    %v4313 = vunpack.c.l.b16 %v3796
    %v4314 = vunpack.c.l.b16 %v3797
    %v4315 = vunpack.c.l.b16 %v3798
    %v4316 = vunpack.c.l.b16 %v3799
    %v4317 = vunpack.c.l.b16 %v3800
    %v4318 = vunpack.c.l.b16 %v3801
    %v4319 = vunpack.c.l.b16 %v3802
    %v4320 = vunpack.c.l.b16 %v3803
    %v4321 = vunpack.c.l.b16 %v3804
    %v4322 = vunpack.c.l.b16 %v3805
    %v4323 = vunpack.c.l.b16 %v3806
    %v4324 = vunpack.c.l.b16 %v3807
    %v4325 = vunpack.c.l.b16 %v3808
    %v4326 = vunpack.c.l.b16 %v3809
    %v4327 = vunpack.c.l.b16 %v3810
    %v4328 = vunpack.c.l.b16 %v3811
    %v4329 = vunpack.c.l.b16 %v3812
    %v4330 = vunpack.c.l.b16 %v3813
    %v4331 = vunpack.c.l.b16 %v3814
    %v4332 = vunpack.c.l.b16 %v3815
    %v4333 = vunpack.c.l.b16 %v3816
    %v4334 = vunpack.c.l.b16 %v3817
    %v4335 = vunpack.c.l.b16 %v3818
    %v4336 = vunpack.c.l.b16 %v3819
    %v4337 = vunpack.c.l.b16 %v3820
    %v4338 = vunpack.c.l.b16 %v3821
    %v4339 = vunpack.c.l.b16 %v3822
    %v4340 = vunpack.c.l.b16 %v3823
    %v4341 = vunpack.c.l.b16 %v3824
    %v4342 = vunpack.c.l.b16 %v3825
    %v4343 = vunpack.c.l.b16 %v3826
    %v4344 = vunpack.c.l.b16 %v3827
    %v4345 = vunpack.c.l.b16 %v3828
    %v4346 = vunpack.c.l.b16 %v3829
    %v4347 = vunpack.c.l.b16 %v3830
    %v4348 = vunpack.c.l.b16 %v3831
    %v4349 = vunpack.c.l.b16 %v3832
    %v4350 = vunpack.c.l.b16 %v3833
    %v4351 = vunpack.c.l.b16 %v3834
    %v4352 = vunpack.c.l.b16 %v3835
    %v4353 = vunpack.c.l.b16 %v3836
    %v4354 = vunpack.c.l.b16 %v3837
    %v4355 = vunpack.c.l.b16 %v3838
    %v4356 = vunpack.c.l.b16 %v3839
    %v4357 = vunpack.c.l.b16 %v3840
    %v4358 = vunpack.c.l.b16 %v3841
    %v4359 = vunpack.c.l.b16 %v3842
    %v4360 = vunpack.c.l.b16 %v3843
    %v4361 = vunpack.c.l.b16 %v3844
    %v4362 = vunpack.c.l.b16 %v3845
    %v4363 = vunpack.c.l.b16 %v3846
    %v4364 = vunpack.c.l.b16 %v3847
    %v4365 = vunpack.c.l.b16 %v3848
    %v4366 = vunpack.c.l.b16 %v3849
    %v4367 = vunpack.c.l.b16 %v3850
    %v4368 = vunpack.c.l.b16 %v3851
    %v4369 = vunpack.c.l.b16 %v3852
    %v4370 = vunpack.c.l.b16 %v3853
    %v4371 = vunpack.c.l.b16 %v3854
    %v4372 = vunpack.c.l.b16 %v3855
    %v4373 = vunpack.c.l.b16 %v3856
    %v4374 = vunpack.c.l.b16 %v3857
    %v4375 = vunpack.c.l.b16 %v3858
    %v4376 = vunpack.c.l.b16 %v3859
    %v4377 = vunpack.c.l.b16 %v3860
    %v4378 = vunpack.c.l.b16 %v3861
    %v4379 = vunpack.c.l.b16 %v3862
    %v4380 = vunpack.c.l.b16 %v3863
    %v4381 = vunpack.c.l.b16 %v3864
    %v4382 = vunpack.c.l.b16 %v3865
    %v4383 = vunpack.c.l.b16 %v3866
    %v4384 = vunpack.c.l.b16 %v3867
    %v4385 = vunpack.c.l.b16 %v3868
    %v4386 = vunpack.c.l.b16 %v3869
    %v4387 = vunpack.c.l.b16 %v3870
    %v4388 = vunpack.c.l.b16 %v3871
    %v4389 = vunpack.c.l.b16 %v3872
    %v4390 = vunpack.c.l.b16 %v3873
    %v4391 = vunpack.c.l.b16 %v3874
    %v4392 = vunpack.c.l.b16 %v3875
    %v4393 = vunpack.c.l.b16 %v3876
    %v4394 = vunpack.c.l.b16 %v3877
    %v4395 = vunpack.c.l.b16 %v3878
    %v4396 = vunpack.c.l.b16 %v3879
    %v4397 = vunpack.c.l.b16 %v3880
    %v4398 = vunpack.c.l.b16 %v3881
    %v4399 = vunpack.c.l.b16 %v3882
    %v4400 = vunpack.c.l.b16 %v3883
    %v4401 = vunpack.c.l.b16 %v3884
    %v4402 = vunpack.c.l.b16 %v3885
    %v4403 = vunpack.c.l.b16 %v3886
    %v4404 = vunpack.c.l.b16 %v3887
    %v4405 = vunpack.c.l.b16 %v3888
    %v4406 = vunpack.c.l.b16 %v3889
    %v4407 = vunpack.c.l.b16 %v3890
    %v4408 = vunpack.c.l.b16 %v3891
    %v4409 = vunpack.c.l.b16 %v3892
    %v4410 = vunpack.c.l.b16 %v3893
    %v4411 = vunpack.c.l.b16 %v3894
    %v4412 = vunpack.c.l.b16 %v3895
    %v4413 = vunpack.c.l.b16 %v3896
    %v4414 = vunpack.c.l.b16 %v3897
    %v4415 = vunpack.c.l.b16 %v3898
    %v4416 = vunpack.c.l.b16 %v3899
    %v4417 = vunpack.c.l.b16 %v3900
    %v4418 = vunpack.c.l.b16 %v3901
    %v4419 = vunpack.c.l.b16 %v3902
    %v4420 = vunpack.c.l.b16 %v3903
    %v4421 = vunpack.c.l.b16 %v3904
    %v4422 = vunpack.c.l.b16 %v3905
    %v4423 = vunpack.c.l.b16 %v3906
    %v4424 = vunpack.c.l.b16 %v3907
    %v4425 = vunpack.c.l.b16 %v3908
    %v4426 = vunpack.c.l.b16 %v3909
    %v4427 = vunpack.c.l.b16 %v3910
    %v4428 = vunpack.c.l.b16 %v3911
    %v4429 = vunpack.c.l.b16 %v3912
    %v4430 = vunpack.c.l.b16 %v3913
    %v4431 = vunpack.c.l.b16 %v3914
    %v4432 = vunpack.c.l.b16 %v3915
    %v4433 = vunpack.c.l.b16 %v3916
    %v4434 = vunpack.c.l.b16 %v3917
    %v4435 = vunpack.c.l.b16 %v3918
    %v4436 = vunpack.c.l.b16 %v3919
    %v4437 = vunpack.c.l.b16 %v3920
    %v4438 = vunpack.c.l.b16 %v3921
    %v4439 = vunpack.c.l.b16 %v3922
    %v4440 = vunpack.c.l.b16 %v3923
    %v4441 = vunpack.c.l.b16 %v3924
    %v4442 = vunpack.c.l.b16 %v3925
    %v4443 = vunpack.c.l.b16 %v3926
    %v4444 = vunpack.c.l.b16 %v3927
    %v4445 = vunpack.c.l.b16 %v3928
    %v4446 = vunpack.c.l.b16 %v3929
    %v4447 = vunpack.c.l.b16 %v3930
    %v4448 = vunpack.c.l.b16 %v3931
    %v4449 = vunpack.c.l.b16 %v3932
    %v4450 = vunpack.c.l.b16 %v3933
    %v4451 = vunpack.c.l.b16 %v3934
    %v4452 = vunpack.c.l.b16 %v3935
    %v4453 = vunpack.c.l.b16 %v3936
    %v4454 = vunpack.c.l.b16 %v3937
    %v4455 = vunpack.c.l.b16 %v3938
    %v4456 = vunpack.c.l.b16 %v3939
    %v4457 = vunpack.c.l.b16 %v3940
    %v4458 = vunpack.c.l.b16 %v3941
    %v4459 = vunpack.c.l.b16 %v3942
    %v4460 = vunpack.c.l.b16 %v3943
    %v4461 = vunpack.c.l.b16 %v3944
    %v4462 = vunpack.c.l.b16 %v3945
    %v4463 = vunpack.c.l.b16 %v3946
    %v4464 = vunpack.c.l.b16 %v3947
    %v4465 = vunpack.c.l.b16 %v3948
    %v4466 = vunpack.c.l.b16 %v3949
    %v4467 = vunpack.c.l.b16 %v3950
    %v4468 = vunpack.c.l.b16 %v3951
    %v4469 = vunpack.c.l.b16 %v3952
    %v4470 = vunpack.c.l.b16 %v3953
    %v4471 = vunpack.c.l.b16 %v3954
    %v4472 = vunpack.c.l.b16 %v3955
    %v4473 = vunpack.c.l.b16 %v3956
    %v4474 = vunpack.c.l.b16 %v3957
    %v4475 = vunpack.c.l.b16 %v3958
    %v4476 = vunpack.c.l.b16 %v3959
    %v4477 = vunpack.c.l.b16 %v3960
    %v4478 = vunpack.c.l.b16 %v3961
    %v4479 = vunpack.c.l.b16 %v3962
    %v4480 = vunpack.c.l.b16 %v3963
    %v4481 = vunpack.c.l.b16 %v3964
    %v4482 = vunpack.c.l.b16 %v3965
    %v4483 = vunpack.c.l.b16 %v3966
    %v4484 = vunpack.c.l.b16 %v3967
    %v4485 = vunpack.c.l.b16 %v3968
    %v4486 = vunpack.c.l.b16 %v3969
    %v4487 = vunpack.c.l.b16 %v3970
    %v4488 = vunpack.c.l.b16 %v3971
    %v4489 = vunpack.c.l.b16 %v3972
    %v4490 = vunpack.c.l.b16 %v3973
    %v4491 = vunpack.c.l.b16 %v3974
    %v4492 = vunpack.c.l.b16 %v3975
    %v4493 = vunpack.c.l.b16 %v3976
    %v4494 = vunpack.c.l.b16 %v3977
    %v4495 = vunpack.c.l.b16 %v3978
    %v4496 = vunpack.c.l.b16 %v3979
    %v4497 = vunpack.c.l.b16 %v3980
    %v4498 = vunpack.c.l.b16 %v3981
    %v4499 = vunpack.c.l.b16 %v3982
    %v4500 = vunpack.c.l.b16 %v3983
    %v4501 = vunpack.c.l.b16 %v3984
    %v4502 = vunpack.c.l.b16 %v3985
    %v4503 = vunpack.c.l.b16 %v3986
    %v4504 = vunpack.c.l.b16 %v3987
    %v4505 = vunpack.c.l.b16 %v3988
    %v4506 = vunpack.c.l.b16 %v3989
    %v4507 = vunpack.c.l.b16 %v3990
    %v4508 = vunpack.c.l.b16 %v3991
    %v4509 = vunpack.c.l.b16 %v3992
    %v4510 = vunpack.c.l.b16 %v3993
    %v4511 = vunpack.c.l.b16 %v3994
    %v4512 = vunpack.c.l.b16 %v3995
    %v4513 = vunpack.c.l.b16 %v3996
    %v4514 = vunpack.c.l.b16 %v3997
    %v4515 = vunpack.c.l.b16 %v3998
    %v4516 = vpack.c.b16 %v4261, %v4260
    %v4517 = vpack.c.b16 %v4263, %v4262
    %v4518 = vpack.c.b16 %v4265, %v4264
    %v4519 = vpack.c.b16 %v4267, %v4266
    %v4520 = vpack.c.b16 %v4269, %v4268
    %v4521 = vpack.c.b16 %v4271, %v4270
    %v4522 = vpack.c.b16 %v4273, %v4272
    %v4523 = vpack.c.b16 %v4275, %v4274
    %v4524 = vpack.c.b16 %v4277, %v4276
    %v4525 = vpack.c.b16 %v4279, %v4278
    %v4526 = vpack.c.b16 %v4281, %v4280
    %v4527 = vpack.c.b16 %v4283, %v4282
    %v4528 = vpack.c.b16 %v4285, %v4284
    %v4529 = vpack.c.b16 %v4287, %v4286
    %v4530 = vpack.c.b16 %v4289, %v4288
    %v4531 = vpack.c.b16 %v4291, %v4290
    %v4532 = vpack.c.b16 %v4293, %v4292
    %v4533 = vpack.c.b16 %v4295, %v4294
    %v4534 = vpack.c.b16 %v4297, %v4296
    %v4535 = vpack.c.b16 %v4299, %v4298
    %v4536 = vpack.c.b16 %v4301, %v4300
    %v4537 = vpack.c.b16 %v4303, %v4302
    %v4538 = vpack.c.b16 %v4305, %v4304
    %v4539 = vpack.c.b16 %v4307, %v4306
    %v4540 = vpack.c.b16 %v4309, %v4308
    %v4541 = vpack.c.b16 %v4311, %v4310
    %v4542 = vpack.c.b16 %v4313, %v4312
    %v4543 = vpack.c.b16 %v4315, %v4314
    %v4544 = vpack.c.b16 %v4317, %v4316
    %v4545 = vpack.c.b16 %v4319, %v4318
    %v4546 = vpack.c.b16 %v4321, %v4320
    %v4547 = vpack.c.b16 %v4323, %v4322
    %v4548 = vpack.c.b16 %v4325, %v4324
    %v4549 = vpack.c.b16 %v4327, %v4326
    %v4550 = vpack.c.b16 %v4329, %v4328
    %v4551 = vpack.c.b16 %v4331, %v4330
    %v4552 = vpack.c.b16 %v4333, %v4332
    %v4553 = vpack.c.b16 %v4335, %v4334
    %v4554 = vpack.c.b16 %v4337, %v4336
    %v4555 = vpack.c.b16 %v4339, %v4338
    %v4556 = vpack.c.b16 %v4341, %v4340
    %v4557 = vpack.c.b16 %v4343, %v4342
    %v4558 = vpack.c.b16 %v4345, %v4344
    %v4559 = vpack.c.b16 %v4347, %v4346
    %v4560 = vpack.c.b16 %v4349, %v4348
    %v4561 = vpack.c.b16 %v4351, %v4350
    %v4562 = vpack.c.b16 %v4353, %v4352
    %v4563 = vpack.c.b16 %v4355, %v4354
    %v4564 = vpack.c.b16 %v4357, %v4356
    %v4565 = vpack.c.b16 %v4359, %v4358
    %v4566 = vpack.c.b16 %v4361, %v4360
    %v4567 = vpack.c.b16 %v4363, %v4362
    %v4568 = vpack.c.b16 %v4365, %v4364
    %v4569 = vpack.c.b16 %v4367, %v4366
    %v4570 = vpack.c.b16 %v4369, %v4368
    %v4571 = vpack.c.b16 %v4371, %v4370
    %v4572 = vpack.c.b16 %v4373, %v4372
    %v4573 = vpack.c.b16 %v4375, %v4374
    %v4574 = vpack.c.b16 %v4377, %v4376
    %v4575 = vpack.c.b16 %v4379, %v4378
    %v4576 = vpack.c.b16 %v4381, %v4380
    %v4577 = vpack.c.b16 %v4383, %v4382
    %v4578 = vpack.c.b16 %v4385, %v4384
    %v4579 = vpack.c.b16 %v4387, %v4386
    %v4580 = vpack.c.b16 %v4389, %v4388
    %v4581 = vpack.c.b16 %v4391, %v4390
    %v4582 = vpack.c.b16 %v4393, %v4392
    %v4583 = vpack.c.b16 %v4395, %v4394
    %v4584 = vpack.c.b16 %v4397, %v4396
    %v4585 = vpack.c.b16 %v4399, %v4398
    %v4586 = vpack.c.b16 %v4401, %v4400
    %v4587 = vpack.c.b16 %v4403, %v4402
    %v4588 = vpack.c.b16 %v4405, %v4404
    %v4589 = vpack.c.b16 %v4407, %v4406
    %v4590 = vpack.c.b16 %v4409, %v4408
    %v4591 = vpack.c.b16 %v4411, %v4410
    %v4592 = vpack.c.b16 %v4413, %v4412
    %v4593 = vpack.c.b16 %v4415, %v4414
    %v4594 = vpack.c.b16 %v4417, %v4416
    %v4595 = vpack.c.b16 %v4419, %v4418
    %v4596 = vpack.c.b16 %v4421, %v4420
    %v4597 = vpack.c.b16 %v4423, %v4422
    %v4598 = vpack.c.b16 %v4425, %v4424
    %v4599 = vpack.c.b16 %v4427, %v4426
    %v4600 = vpack.c.b16 %v4429, %v4428
    %v4601 = vpack.c.b16 %v4431, %v4430
    %v4602 = vpack.c.b16 %v4433, %v4432
    %v4603 = vpack.c.b16 %v4435, %v4434
    %v4604 = vpack.c.b16 %v4437, %v4436
    %v4605 = vpack.c.b16 %v4439, %v4438
    %v4606 = vpack.c.b16 %v4441, %v4440
    %v4607 = vpack.c.b16 %v4443, %v4442
    %v4608 = vpack.c.b16 %v4445, %v4444
    %v4609 = vpack.c.b16 %v4447, %v4446
    %v4610 = vpack.c.b16 %v4449, %v4448
    %v4611 = vpack.c.b16 %v4451, %v4450
    %v4612 = vpack.c.b16 %v4453, %v4452
    %v4613 = vpack.c.b16 %v4455, %v4454
    %v4614 = vpack.c.b16 %v4457, %v4456
    %v4615 = vpack.c.b16 %v4459, %v4458
    %v4616 = vpack.c.b16 %v4461, %v4460
    %v4617 = vpack.c.b16 %v4463, %v4462
    %v4618 = vpack.c.b16 %v4465, %v4464
    %v4619 = vpack.c.b16 %v4467, %v4466
    %v4620 = vpack.c.b16 %v4469, %v4468
    %v4621 = vpack.c.b16 %v4471, %v4470
    %v4622 = vpack.c.b16 %v4473, %v4472
    %v4623 = vpack.c.b16 %v4475, %v4474
    %v4624 = vpack.c.b16 %v4477, %v4476
    %v4625 = vpack.c.b16 %v4479, %v4478
    %v4626 = vpack.c.b16 %v4481, %v4480
    %v4627 = vpack.c.b16 %v4483, %v4482
    %v4628 = vpack.c.b16 %v4485, %v4484
    %v4629 = vpack.c.b16 %v4487, %v4486
    %v4630 = vpack.c.b16 %v4489, %v4488
    %v4631 = vpack.c.b16 %v4491, %v4490
    %v4632 = vpack.c.b16 %v4493, %v4492
    %v4633 = vpack.c.b16 %v4495, %v4494
    %v4634 = vpack.c.b16 %v4497, %v4496
    %v4635 = vpack.c.b16 %v4499, %v4498
    %v4636 = vpack.c.b16 %v4501, %v4500
    %v4637 = vpack.c.b16 %v4503, %v4502
    %v4638 = vpack.c.b16 %v4505, %v4504
    %v4639 = vpack.c.b16 %v4507, %v4506
    %v4640 = vpack.c.b16 %v4509, %v4508
    %v4641 = vpack.c.b16 %v4511, %v4510
    %v4642 = vpack.c.b16 %v4513, %v4512
    %v4643 = vpack.c.b16 %v4515, %v4514
    %4772 = vmatprep.subr.bf16.mxu0 0
    %4773 = vmatpush1.bf16.msra.mxu0 %v4516
    %4774 = vmatprep.subr.bf16.mxu0 0
    %4775 = vmatpush1.bf16.msra.mxu0 %v4517
    %4776 = vmatprep.subr.bf16.mxu0 0
    %4777 = vmatpush1.bf16.msra.mxu0 %v4518
    %4778 = vmatprep.subr.bf16.mxu0 0
    %4779 = vmatpush1.bf16.msra.mxu0 %v4519
    %4780 = vmatprep.subr.bf16.mxu0 0
    %4781 = vmatpush1.bf16.msra.mxu0 %v4520
    %4782 = vmatprep.subr.bf16.mxu0 0
    %4783 = vmatpush1.bf16.msra.mxu0 %v4521
    %4784 = vmatprep.subr.bf16.mxu0 0
    %4785 = vmatpush1.bf16.msra.mxu0 %v4522
    %4786 = vmatprep.subr.bf16.mxu0 0
    %4787 = vmatpush1.bf16.msra.mxu0 %v4523
    %4788 = vmatprep.subr.bf16.mxu0 0
    %4789 = vmatpush1.bf16.msra.mxu0 %v4524
    %4790 = vmatprep.subr.bf16.mxu0 0
    %4791 = vmatpush1.bf16.msra.mxu0 %v4525
    %4792 = vmatprep.subr.bf16.mxu0 0
    %4793 = vmatpush1.bf16.msra.mxu0 %v4526
    %4794 = vmatprep.subr.bf16.mxu0 0
    %4795 = vmatpush1.bf16.msra.mxu0 %v4527
    %4796 = vmatprep.subr.bf16.mxu0 0
    %4797 = vmatpush1.bf16.msra.mxu0 %v4528
    %4798 = vmatprep.subr.bf16.mxu0 0
    %4799 = vmatpush1.bf16.msra.mxu0 %v4529
    %4800 = vmatprep.subr.bf16.mxu0 0
    %4801 = vmatpush1.bf16.msra.mxu0 %v4530
    %4802 = vmatprep.subr.bf16.mxu0 0
    %4803 = vmatpush1.bf16.msra.mxu0 %v4531
    %4804 = vmatprep.mubr.bf16.mxu0 %v3712
    %4805 = vmatmul.mubr.bf16.gmra.mrb[0].mxu0 %v3711
    %v4806 = vpop.f32.mrb[0].mxu0
    %v4807 = vadd.f32 %v4003, %v4806
    %v4808 = vpop.f32.mrb[0].mxu0
    %v4809 = vpop.f32.mrb[0].mxu0
    %v4810 = vadd.f32 %v4003, %v4809
    %v4811 = vpop.f32.mrb[0].mxu0
    %4812 = vmatprep.mubr.bf16.mxu0 %v3728
    %4813 = vmatmul.mubr.bf16.gmra.mrb[0].mxu0 %v3727
    %v4814 = vpop.f32.mrb[0].mxu0
    %v4815 = vadd.f32 %v4003, %v4814
    %v4816 = vpop.f32.mrb[0].mxu0
    %v4817 = vpop.f32.mrb[0].mxu0
    %v4818 = vpop.f32.mrb[0].mxu0
    %4819 = vdwg.mxu0
    %4820 = vmatprep.subr.bf16.mxu0 0
    %4821 = vmatpush1.bf16.msra.mxu0 %v4532
    %4822 = vmatprep.subr.bf16.mxu0 0
    %4823 = vmatpush1.bf16.msra.mxu0 %v4533
    %4824 = vmatprep.subr.bf16.mxu0 0
    %4825 = vmatpush1.bf16.msra.mxu0 %v4534
    %4826 = vmatprep.subr.bf16.mxu0 0
    %4827 = vmatpush1.bf16.msra.mxu0 %v4535
    %4828 = vmatprep.subr.bf16.mxu0 0
    %4829 = vmatpush1.bf16.msra.mxu0 %v4536
    %4830 = vmatprep.subr.bf16.mxu0 0
    %4831 = vmatpush1.bf16.msra.mxu0 %v4537
    %4832 = vmatprep.subr.bf16.mxu0 0
    %4833 = vmatpush1.bf16.msra.mxu0 %v4538
    %4834 = vmatprep.subr.bf16.mxu0 0
    %4835 = vmatpush1.bf16.msra.mxu0 %v4539
    %4836 = vmatprep.subr.bf16.mxu0 0
    %4837 = vmatpush1.bf16.msra.mxu0 %v4540
    %4838 = vmatprep.subr.bf16.mxu0 0
    %4839 = vmatpush1.bf16.msra.mxu0 %v4541
    %4840 = vmatprep.subr.bf16.mxu0 0
    %4841 = vmatpush1.bf16.msra.mxu0 %v4542
    %4842 = vmatprep.subr.bf16.mxu0 0
    %4843 = vmatpush1.bf16.msra.mxu0 %v4543
    %4844 = vmatprep.subr.bf16.mxu0 0
    %4845 = vmatpush1.bf16.msra.mxu0 %v4544
    %4846 = vmatprep.subr.bf16.mxu0 0
    %4847 = vmatpush1.bf16.msra.mxu0 %v4545
    %4848 = vmatprep.subr.bf16.mxu0 0
    %4849 = vmatpush1.bf16.msra.mxu0 %v4546
    %4850 = vmatprep.subr.bf16.mxu0 0
    %4851 = vmatpush1.bf16.msra.mxu0 %v4547
    %4852 = vmatprep.mubr.bf16.mxu0 %v3714
    %4853 = vmatmul.mubr.bf16.gmra.mrb[0].mxu0 %v3713
    %v4854 = vpop.f32.mrb[0].mxu0
    %v4855 = vadd.f32 %v4807, %v4854
    %v4856 = vpop.f32.mrb[0].mxu0
    %v4857 = vpop.f32.mrb[0].mxu0
    %v4858 = vadd.f32 %v4810, %v4857
    %v4859 = vpop.f32.mrb[0].mxu0
    %4860 = vmatprep.mubr.bf16.mxu0 %v3730
    %4861 = vmatmul.mubr.bf16.gmra.mrb[0].mxu0 %v3729
    %v4862 = vpop.f32.mrb[0].mxu0
    %v4863 = vadd.f32 %v4815, %v4862
    %v4864 = vpop.f32.mrb[0].mxu0
    %v4865 = vpop.f32.mrb[0].mxu0
    %v4866 = vpop.f32.mrb[0].mxu0
    %4867 = vdwg.mxu0
    %4868 = vmatprep.subr.bf16.mxu0 0
    %4869 = vmatpush1.bf16.msra.mxu0 %v4548
    %4870 = vmatprep.subr.bf16.mxu0 0
    %4871 = vmatpush1.bf16.msra.mxu0 %v4549
    %4872 = vmatprep.subr.bf16.mxu0 0
    %4873 = vmatpush1.bf16.msra.mxu0 %v4550
    %4874 = vmatprep.subr.bf16.mxu0 0
    %4875 = vmatpush1.bf16.msra.mxu0 %v4551
    %4876 = vmatprep.subr.bf16.mxu0 0
    %4877 = vmatpush1.bf16.msra.mxu0 %v4552
    %4878 = vmatprep.subr.bf16.mxu0 0
    %4879 = vmatpush1.bf16.msra.mxu0 %v4553
    %4880 = vmatprep.subr.bf16.mxu0 0
    %4881 = vmatpush1.bf16.msra.mxu0 %v4554
    %4882 = vmatprep.subr.bf16.mxu0 0
    %4883 = vmatpush1.bf16.msra.mxu0 %v4555
    %4884 = vmatprep.subr.bf16.mxu0 0
    %4885 = vmatpush1.bf16.msra.mxu0 %v4556
    %4886 = vmatprep.subr.bf16.mxu0 0
    %4887 = vmatpush1.bf16.msra.mxu0 %v4557
    %4888 = vmatprep.subr.bf16.mxu0 0
    %4889 = vmatpush1.bf16.msra.mxu0 %v4558
    %4890 = vmatprep.subr.bf16.mxu0 0
    %4891 = vmatpush1.bf16.msra.mxu0 %v4559
    %4892 = vmatprep.subr.bf16.mxu0 0
    %4893 = vmatpush1.bf16.msra.mxu0 %v4560
    %4894 = vmatprep.subr.bf16.mxu0 0
    %4895 = vmatpush1.bf16.msra.mxu0 %v4561
    %4896 = vmatprep.subr.bf16.mxu0 0
    %4897 = vmatpush1.bf16.msra.mxu0 %v4562
    %4898 = vmatprep.subr.bf16.mxu0 0
    %4899 = vmatpush1.bf16.msra.mxu0 %v4563
    %4900 = vmatprep.mubr.bf16.mxu0 %v3716
    %4901 = vmatmul.mubr.bf16.gmra.mrb[0].mxu0 %v3715
    %v4902 = vpop.f32.mrb[0].mxu0
    %v4903 = vadd.f32 %v4855, %v4902
    %v4904 = vpop.f32.mrb[0].mxu0
    %v4905 = vpop.f32.mrb[0].mxu0
    %v4906 = vadd.f32 %v4858, %v4905
    %v4907 = vpop.f32.mrb[0].mxu0
    %4908 = vmatprep.mubr.bf16.mxu0 %v3732
    %4909 = vmatmul.mubr.bf16.gmra.mrb[0].mxu0 %v3731
    %v4910 = vpop.f32.mrb[0].mxu0
    %v4911 = vadd.f32 %v4863, %v4910
    %v4912 = vpop.f32.mrb[0].mxu0
    %v4913 = vpop.f32.mrb[0].mxu0
    %v4914 = vpop.f32.mrb[0].mxu0
    %4915 = vdwg.mxu0
    %4916 = vmatprep.subr.bf16.mxu0 0
    %4917 = vmatpush1.bf16.msra.mxu0 %v4564
    %4918 = vmatprep.subr.bf16.mxu0 0
    %4919 = vmatpush1.bf16.msra.mxu0 %v4565
    %4920 = vmatprep.subr.bf16.mxu0 0
    %4921 = vmatpush1.bf16.msra.mxu0 %v4566
    %4922 = vmatprep.subr.bf16.mxu0 0
    %4923 = vmatpush1.bf16.msra.mxu0 %v4567
    %4924 = vmatprep.subr.bf16.mxu0 0
    %4925 = vmatpush1.bf16.msra.mxu0 %v4568
    %4926 = vmatprep.subr.bf16.mxu0 0
    %4927 = vmatpush1.bf16.msra.mxu0 %v4569
    %4928 = vmatprep.subr.bf16.mxu0 0
    %4929 = vmatpush1.bf16.msra.mxu0 %v4570
    %4930 = vmatprep.subr.bf16.mxu0 0
    %4931 = vmatpush1.bf16.msra.mxu0 %v4571
    %4932 = vmatprep.subr.bf16.mxu0 0
    %4933 = vmatpush1.bf16.msra.mxu0 %v4572
    %4934 = vmatprep.subr.bf16.mxu0 0
    %4935 = vmatpush1.bf16.msra.mxu0 %v4573
    %4936 = vmatprep.subr.bf16.mxu0 0
    %4937 = vmatpush1.bf16.msra.mxu0 %v4574
    %4938 = vmatprep.subr.bf16.mxu0 0
    %4939 = vmatpush1.bf16.msra.mxu0 %v4575
    %4940 = vmatprep.subr.bf16.mxu0 0
    %4941 = vmatpush1.bf16.msra.mxu0 %v4576
    %4942 = vmatprep.subr.bf16.mxu0 0
    %4943 = vmatpush1.bf16.msra.mxu0 %v4577
    %4944 = vmatprep.subr.bf16.mxu0 0
    %4945 = vmatpush1.bf16.msra.mxu0 %v4578
    %4946 = vmatprep.subr.bf16.mxu0 0
    %4947 = vmatpush1.bf16.msra.mxu0 %v4579
    %4948 = vmatprep.mubr.bf16.mxu0 %v3718
    %4949 = vmatmul.mubr.bf16.gmra.mrb[0].mxu0 %v3717
    %v4950 = vpop.f32.mrb[0].mxu0
    %v4951 = vadd.f32 %v4903, %v4950
    %v4952 = vpop.f32.mrb[0].mxu0
    %v4953 = vpop.f32.mrb[0].mxu0
    %v4954 = vadd.f32 %v4906, %v4953
    %v4955 = vpop.f32.mrb[0].mxu0
    %4956 = vmatprep.mubr.bf16.mxu0 %v3734
    %4957 = vmatmul.mubr.bf16.gmra.mrb[0].mxu0 %v3733
    %v4958 = vpop.f32.mrb[0].mxu0
    %v4959 = vadd.f32 %v4911, %v4958
    %v4960 = vpop.f32.mrb[0].mxu0
    %v4961 = vpop.f32.mrb[0].mxu0
    %v4962 = vpop.f32.mrb[0].mxu0
    %4963 = vdwg.mxu0
    %4964 = vmatprep.subr.bf16.mxu0 0
    %4965 = vmatpush1.bf16.msra.mxu0 %v4580
    %4966 = vmatprep.subr.bf16.mxu0 0
    %4967 = vmatpush1.bf16.msra.mxu0 %v4581
    %4968 = vmatprep.subr.bf16.mxu0 0
    %4969 = vmatpush1.bf16.msra.mxu0 %v4582
    %4970 = vmatprep.subr.bf16.mxu0 0
    %4971 = vmatpush1.bf16.msra.mxu0 %v4583
    %4972 = vmatprep.subr.bf16.mxu0 0
    %4973 = vmatpush1.bf16.msra.mxu0 %v4584
    %4974 = vmatprep.subr.bf16.mxu0 0
    %4975 = vmatpush1.bf16.msra.mxu0 %v4585
    %4976 = vmatprep.subr.bf16.mxu0 0
    %4977 = vmatpush1.bf16.msra.mxu0 %v4586
    %4978 = vmatprep.subr.bf16.mxu0 0
    %4979 = vmatpush1.bf16.msra.mxu0 %v4587
    %4980 = vmatprep.subr.bf16.mxu0 0
    %4981 = vmatpush1.bf16.msra.mxu0 %v4588
    %4982 = vmatprep.subr.bf16.mxu0 0
    %4983 = vmatpush1.bf16.msra.mxu0 %v4589
    %4984 = vmatprep.subr.bf16.mxu0 0
    %4985 = vmatpush1.bf16.msra.mxu0 %v4590
    %4986 = vmatprep.subr.bf16.mxu0 0
    %4987 = vmatpush1.bf16.msra.mxu0 %v4591
    %4988 = vmatprep.subr.bf16.mxu0 0
    %4989 = vmatpush1.bf16.msra.mxu0 %v4592
    %4990 = vmatprep.subr.bf16.mxu0 0
    %4991 = vmatpush1.bf16.msra.mxu0 %v4593
    %4992 = vmatprep.subr.bf16.mxu0 0
    %4993 = vmatpush1.bf16.msra.mxu0 %v4594
    %4994 = vmatprep.subr.bf16.mxu0 0
    %4995 = vmatpush1.bf16.msra.mxu0 %v4595
    %4996 = vmatprep.mubr.bf16.mxu0 %v3720
    %4997 = vmatmul.mubr.bf16.gmra.mrb[0].mxu0 %v3719
    %v4998 = vpop.f32.mrb[0].mxu0
    %v4999 = vadd.f32 %v4951, %v4998
    %v5000 = vpop.f32.mrb[0].mxu0
    %v5001 = vpop.f32.mrb[0].mxu0
    %v5002 = vadd.f32 %v4954, %v5001
    %v5003 = vpop.f32.mrb[0].mxu0
    %5004 = vmatprep.mubr.bf16.mxu0 %v3736
    %5005 = vmatmul.mubr.bf16.gmra.mrb[0].mxu0 %v3735
    %v5006 = vpop.f32.mrb[0].mxu0
    %v5007 = vadd.f32 %v4959, %v5006
    %v5008 = vpop.f32.mrb[0].mxu0
    %v5009 = vpop.f32.mrb[0].mxu0
    %v5010 = vpop.f32.mrb[0].mxu0
    %5011 = vdwg.mxu0
    %5012 = vmatprep.subr.bf16.mxu0 0
    %5013 = vmatpush1.bf16.msra.mxu0 %v4596
    %5014 = vmatprep.subr.bf16.mxu0 0
    %5015 = vmatpush1.bf16.msra.mxu0 %v4597
    %5016 = vmatprep.subr.bf16.mxu0 0
    %5017 = vmatpush1.bf16.msra.mxu0 %v4598
    %5018 = vmatprep.subr.bf16.mxu0 0
    %5019 = vmatpush1.bf16.msra.mxu0 %v4599
    %5020 = vmatprep.subr.bf16.mxu0 0
    %5021 = vmatpush1.bf16.msra.mxu0 %v4600
    %5022 = vmatprep.subr.bf16.mxu0 0
    %5023 = vmatpush1.bf16.msra.mxu0 %v4601
    %5024 = vmatprep.subr.bf16.mxu0 0
    %5025 = vmatpush1.bf16.msra.mxu0 %v4602
    %5026 = vmatprep.subr.bf16.mxu0 0
    %5027 = vmatpush1.bf16.msra.mxu0 %v4603
    %5028 = vmatprep.subr.bf16.mxu0 0
    %5029 = vmatpush1.bf16.msra.mxu0 %v4604
    %5030 = vmatprep.subr.bf16.mxu0 0
    %5031 = vmatpush1.bf16.msra.mxu0 %v4605
    %5032 = vmatprep.subr.bf16.mxu0 0
    %5033 = vmatpush1.bf16.msra.mxu0 %v4606
    %5034 = vmatprep.subr.bf16.mxu0 0
    %5035 = vmatpush1.bf16.msra.mxu0 %v4607
    %5036 = vmatprep.subr.bf16.mxu0 0
    %5037 = vmatpush1.bf16.msra.mxu0 %v4608
    %5038 = vmatprep.subr.bf16.mxu0 0
    %5039 = vmatpush1.bf16.msra.mxu0 %v4609
    %5040 = vmatprep.subr.bf16.mxu0 0
    %5041 = vmatpush1.bf16.msra.mxu0 %v4610
    %5042 = vmatprep.subr.bf16.mxu0 0
    %5043 = vmatpush1.bf16.msra.mxu0 %v4611
    %5044 = vmatprep.mubr.bf16.mxu0 %v3722
    %5045 = vmatmul.mubr.bf16.gmra.mrb[0].mxu0 %v3721
    %v5046 = vpop.f32.mrb[0].mxu0
    %v5047 = vadd.f32 %v4999, %v5046
    %v5048 = vpop.f32.mrb[0].mxu0
    %v5049 = vpop.f32.mrb[0].mxu0
    %v5050 = vadd.f32 %v5002, %v5049
    %v5051 = vpop.f32.mrb[0].mxu0
    %5052 = vmatprep.mubr.bf16.mxu0 %v3738
    %5053 = vmatmul.mubr.bf16.gmra.mrb[0].mxu0 %v3737
    %v5054 = vpop.f32.mrb[0].mxu0
    %v5055 = vadd.f32 %v5007, %v5054
    %v5056 = vpop.f32.mrb[0].mxu0
    %v5057 = vpop.f32.mrb[0].mxu0
    %v5058 = vpop.f32.mrb[0].mxu0
    %5059 = vdwg.mxu0
    %5060 = vmatprep.subr.bf16.mxu0 0
    %5061 = vmatpush1.bf16.msra.mxu0 %v4612
    %5062 = vmatprep.subr.bf16.mxu0 0
    %5063 = vmatpush1.bf16.msra.mxu0 %v4613
    %5064 = vmatprep.subr.bf16.mxu0 0
    %5065 = vmatpush1.bf16.msra.mxu0 %v4614
    %5066 = vmatprep.subr.bf16.mxu0 0
    %5067 = vmatpush1.bf16.msra.mxu0 %v4615
    %5068 = vmatprep.subr.bf16.mxu0 0
    %5069 = vmatpush1.bf16.msra.mxu0 %v4616
    %5070 = vmatprep.subr.bf16.mxu0 0
    %5071 = vmatpush1.bf16.msra.mxu0 %v4617
    %5072 = vmatprep.subr.bf16.mxu0 0
    %5073 = vmatpush1.bf16.msra.mxu0 %v4618
    %5074 = vmatprep.subr.bf16.mxu0 0
    %5075 = vmatpush1.bf16.msra.mxu0 %v4619
    %5076 = vmatprep.subr.bf16.mxu0 0
    %5077 = vmatpush1.bf16.msra.mxu0 %v4620
    %5078 = vmatprep.subr.bf16.mxu0 0
    %5079 = vmatpush1.bf16.msra.mxu0 %v4621
    %5080 = vmatprep.subr.bf16.mxu0 0
    %5081 = vmatpush1.bf16.msra.mxu0 %v4622
    %5082 = vmatprep.subr.bf16.mxu0 0
    %5083 = vmatpush1.bf16.msra.mxu0 %v4623
    %5084 = vmatprep.subr.bf16.mxu0 0
    %5085 = vmatpush1.bf16.msra.mxu0 %v4624
    %5086 = vmatprep.subr.bf16.mxu0 0
    %5087 = vmatpush1.bf16.msra.mxu0 %v4625
    %5088 = vmatprep.subr.bf16.mxu0 0
    %5089 = vmatpush1.bf16.msra.mxu0 %v4626
    %5090 = vmatprep.subr.bf16.mxu0 0
    %5091 = vmatpush1.bf16.msra.mxu0 %v4627
    %5092 = vmatprep.mubr.bf16.mxu0 %v3724
    %5093 = vmatmul.mubr.bf16.gmra.mrb[0].mxu0 %v3723
    %v5094 = vpop.f32.mrb[0].mxu0
    %v5095 = vadd.f32 %v5047, %v5094
    %v5096 = vpop.f32.mrb[0].mxu0
    %v5097 = vpop.f32.mrb[0].mxu0
    %v5098 = vadd.f32 %v5050, %v5097
    %v5099 = vpop.f32.mrb[0].mxu0
    %5100 = vmatprep.mubr.bf16.mxu0 %v3740
    %5101 = vmatmul.mubr.bf16.gmra.mrb[0].mxu0 %v3739
    %v5102 = vpop.f32.mrb[0].mxu0
    %v5103 = vadd.f32 %v5055, %v5102
    %v5104 = vpop.f32.mrb[0].mxu0
    %v5105 = vpop.f32.mrb[0].mxu0
    %v5106 = vpop.f32.mrb[0].mxu0
    %5107 = vdwg.mxu0
    %5108 = vmatprep.subr.bf16.mxu0 0
    %5109 = vmatpush1.bf16.msra.mxu0 %v4628
    %5110 = vmatprep.subr.bf16.mxu0 0
    %5111 = vmatpush1.bf16.msra.mxu0 %v4629
    %5112 = vmatprep.subr.bf16.mxu0 0
    %5113 = vmatpush1.bf16.msra.mxu0 %v4630
    %5114 = vmatprep.subr.bf16.mxu0 0
    %5115 = vmatpush1.bf16.msra.mxu0 %v4631
    %5116 = vmatprep.subr.bf16.mxu0 0
    %5117 = vmatpush1.bf16.msra.mxu0 %v4632
    %5118 = vmatprep.subr.bf16.mxu0 0
    %5119 = vmatpush1.bf16.msra.mxu0 %v4633
    %5120 = vmatprep.subr.bf16.mxu0 0
    %5121 = vmatpush1.bf16.msra.mxu0 %v4634
    %5122 = vmatprep.subr.bf16.mxu0 0
    %5123 = vmatpush1.bf16.msra.mxu0 %v4635
    %5124 = vmatprep.subr.bf16.mxu0 0
    %5125 = vmatpush1.bf16.msra.mxu0 %v4636
    %5126 = vmatprep.subr.bf16.mxu0 0
    %5127 = vmatpush1.bf16.msra.mxu0 %v4637
    %5128 = vmatprep.subr.bf16.mxu0 0
    %5129 = vmatpush1.bf16.msra.mxu0 %v4638
    %5130 = vmatprep.subr.bf16.mxu0 0
    %5131 = vmatpush1.bf16.msra.mxu0 %v4639
    %5132 = vmatprep.subr.bf16.mxu0 0
    %5133 = vmatpush1.bf16.msra.mxu0 %v4640
    %5134 = vmatprep.subr.bf16.mxu0 0
    %5135 = vmatpush1.bf16.msra.mxu0 %v4641
    %5136 = vmatprep.subr.bf16.mxu0 0
    %5137 = vmatpush1.bf16.msra.mxu0 %v4642
    %5138 = vmatprep.subr.bf16.mxu0 0
    %5139 = vmatpush1.bf16.msra.mxu0 %v4643
    %5140 = vmatprep.mubr.bf16.mxu0 %v3726
    %5141 = vmatmul.mubr.bf16.gmra.mrb[0].mxu0 %v3725
    %v5142 = vpop.f32.mrb[0].mxu0
    %v5143 = vadd.f32 %v5095, %v5142
    %v5144 = vpop.f32.mrb[0].mxu0
    %v5145 = vpop.f32.mrb[0].mxu0
    %v5146 = vadd.f32 %v5098, %v5145
    %v5147 = vpop.f32.mrb[0].mxu0
    %5148 = vmatprep.mubr.bf16.mxu0 %v3742
    %5149 = vmatmul.mubr.bf16.gmra.mrb[0].mxu0 %v3741
    %v5150 = vpop.f32.mrb[0].mxu0
    %v5151 = vadd.f32 %v5103, %v5150
    %v5152 = vpop.f32.mrb[0].mxu0
    %v5153 = vpop.f32.mrb[0].mxu0
    %v5154 = vpop.f32.mrb[0].mxu0
    %5155 = vdwg.mxu0
    %v5156 = vmax.f32 %v5143, 0.0
    %v5157 = vmax.f32 %v5146, 0.0
    %v5158 = vmax.f32 %v5151, 0.0
    %v5159 = vld [vmem:[%s2] sm:$0x3]
    %vm5160 = vcmask 162816
    %v5162 = vsel %vm5160, %v5159, 0
    %vm5164 = vcmask 1043456
    %v5166 = vsel %vm5164, %v5158, 0
    %5168 = vmatprep.subr.mxu0 0.0
    %5169 = vmatpush1.msra.mxu0 %v5156
    %5170 = vmatprep.subr.mxu0 0.0
    %5171 = vmatpush1.msra.mxu0 %v5157
    %5172 = vmatprep.subr.mxu0 0.0
    %5173 = vmatpush1.msra.mxu0 %v5166
    %5174 = vmatprep.subr.mxu0 0.0
    %5175 = vmatpush1.msra.mxu0 0.0
    %5176 = vmatprep.subr.mxu0 0.0
    %5177 = vmatpush1.msra.mxu0 0.0
    %5178 = vmatprep.subr.mxu0 0.0
    %5179 = vmatpush1.msra.mxu0 0.0
    %5180 = vmatprep.subr.mxu0 0.0
    %5181 = vmatpush1.msra.mxu0 0.0
    %5182 = vmatprep.subr.mxu0 0.0
    %5183 = vmatpush1.msra.mxu0 0.0
    %5184 = vmatprep.subr.mxu0 0.0
    %5185 = vmatpush1.msra.mxu0 0.0
    %5186 = vmatprep.subr.mxu0 0.0
    %5187 = vmatpush1.msra.mxu0 0.0
    %5188 = vmatprep.subr.mxu0 0.0
    %5189 = vmatpush1.msra.mxu0 0.0
    %5190 = vmatprep.subr.mxu0 0.0
    %5191 = vmatpush1.msra.mxu0 0.0
    %5192 = vmatprep.subr.mxu0 0.0
    %5193 = vmatpush1.msra.mxu0 0.0
    %5194 = vmatprep.subr.mxu0 0.0
    %5195 = vmatpush1.msra.mxu0 0.0
    %5196 = vmatprep.subr.mxu0 0.0
    %5197 = vmatpush1.msra.mxu0 0.0
    %5198 = vmatprep.subr.mxu0 0.0
    %5199 = vmatpush1.msra.mxu0 0.0
    %5200 = vmatprep.subr.mxu0 0.0
    %5201 = vmatpush1.msra.mxu0 0.0
    %5202 = vmatprep.subr.mxu0 0.0
    %5203 = vmatpush1.msra.mxu0 0.0
    %5204 = vmatprep.subr.mxu0 0.0
    %5205 = vmatpush1.msra.mxu0 0.0
    %5206 = vmatprep.subr.mxu0 0.0
    %5207 = vmatpush1.msra.mxu0 0.0
    %5208 = vmatprep.subr.mxu0 0.0
    %5209 = vmatpush1.msra.mxu0 0.0
    %5210 = vmatprep.subr.mxu0 0.0
    %5211 = vmatpush1.msra.mxu0 0.0
    %5212 = vmatprep.subr.mxu0 0.0
    %5213 = vmatpush1.msra.mxu0 0.0
    %5214 = vmatprep.subr.mxu0 0.0
    %5215 = vmatpush1.msra.mxu0 0.0
    %5216 = vmatprep.subr.mxu0 0.0
    %5217 = vmatpush1.msra.mxu0 0.0
    %5218 = vmatprep.subr.mxu0 0.0
    %5219 = vmatpush1.msra.mxu0 0.0
    %5220 = vmatprep.subr.mxu0 0.0
    %5221 = vmatpush1.msra.mxu0 0.0
    %5222 = vmatprep.subr.mxu0 0.0
    %5223 = vmatpush1.msra.mxu0 0.0
    %5224 = vmatprep.subr.mxu0 0.0
    %5225 = vmatpush1.msra.mxu0 0.0
    %5226 = vmatprep.subr.mxu0 0.0
    %5227 = vmatpush1.msra.mxu0 0.0
    %5228 = vmatprep.subr.mxu0 0.0
    %5229 = vmatpush1.msra.mxu0 0.0
    %5230 = vmatprep.subr.mxu0 0.0
    %5231 = vmatpush1.msra.mxu0 0.0
    %5232 = vmatprep.mubr.f32.mxu0 0.0
    %5233 = vmatmul.mubr.f32.gmra.mrb[0].mxu0 %v5162
    %v5234 = vpop.f32.mrb[0].mxu0
    %v5235 = vadd.f32 0.0, %v5234
    %v5236 = vpop.f32.mrb[0].mxu0
    %5237 = vdwg.mxu0
    %v5238 = vld [vmem:[%s5] sm:$0xff]
    %v5239 = vld [vmem:[%s5 + $0x8] sm:$0xff]
    %v5240 = vld [vmem:[%s5 + $0x10] sm:$0xff]
    %v5241 = vld [vmem:[%s5 + $0x18] sm:$0xff]
    %v5242 = vld [vmem:[%s5 + $0x20] sm:$0xff]
    %v5243 = vld [vmem:[%s5 + $0x28] sm:$0xff]
    %v5244 = vld [vmem:[%s5 + $0x30] sm:$0xff]
    %v5245 = vld [vmem:[%s5 + $0x38] sm:$0xff]
    %v5246 = vld [vmem:[%s5 + $0x40] sm:$0xff]
    %v5247 = vld [vmem:[%s5 + $0x48] sm:$0xff]
    %v5248 = vld [vmem:[%s5 + $0x50] sm:$0xff]
    %v5249 = vld [vmem:[%s5 + $0x58] sm:$0xff]
    %v5250 = vld [vmem:[%s5 + $0x60] sm:$0xff]
    %v5251 = vld [vmem:[%s5 + $0x68] sm:$0xff]
    %v5252 = vld [vmem:[%s5 + $0x70] sm:$0xff]
    %v5253 = vld [vmem:[%s5 + $0x78] sm:$0xff]
    %v5254 = vld [vmem:[%s4 + $0x1] sm:$0x1]
    %v5255 = vlaneseq
    %v5256 = vshrl.u32 %v5255, 7
    %v5257 = vsub.s32 0, %v5256
    %v5258 = vrot.slane %v5254, %v5257
    %5259 = vmatprep.subr.mxu0 0.0
    %5260 = vmatpush1.msra.mxu0 %v5238
    %5261 = vmatprep.subr.mxu0 0.0
    %5262 = vmatpush1.msra.mxu0 %v5239
    %5263 = vmatprep.subr.mxu0 0.0
    %5264 = vmatpush1.msra.mxu0 %v5240
    %5265 = vmatprep.subr.mxu0 0.0
    %5266 = vmatpush1.msra.mxu0 %v5241
    %5267 = vmatprep.subr.mxu0 0.0
    %5268 = vmatpush1.msra.mxu0 %v5242
    %5269 = vmatprep.subr.mxu0 0.0
    %5270 = vmatpush1.msra.mxu0 %v5243
    %5271 = vmatprep.subr.mxu0 0.0
    %5272 = vmatpush1.msra.mxu0 %v5244
    %5273 = vmatprep.subr.mxu0 0.0
    %5274 = vmatpush1.msra.mxu0 %v5245
    %5275 = vmatprep.subr.mxu0 0.0
    %5276 = vmatpush1.msra.mxu0 %v5246
    %5277 = vmatprep.subr.mxu0 0.0
    %5278 = vmatpush1.msra.mxu0 %v5247
    %5279 = vmatprep.subr.mxu0 0.0
    %5280 = vmatpush1.msra.mxu0 %v5248
    %5281 = vmatprep.subr.mxu0 0.0
    %5282 = vmatpush1.msra.mxu0 %v5249
    %5283 = vmatprep.subr.mxu0 0.0
    %5284 = vmatpush1.msra.mxu0 %v5250
    %5285 = vmatprep.subr.mxu0 0.0
    %5286 = vmatpush1.msra.mxu0 %v5251
    %5287 = vmatprep.subr.mxu0 0.0
    %5288 = vmatpush1.msra.mxu0 %v5252
    %5289 = vmatprep.subr.mxu0 0.0
    %5290 = vmatpush1.msra.mxu0 %v5253
    %5291 = vmatprep.subr.mxu0 0.0
    %5292 = vmatpush1.msra.mxu0 0.0
    %5293 = vmatprep.subr.mxu0 0.0
    %5294 = vmatpush1.msra.mxu0 0.0
    %5295 = vmatprep.subr.mxu0 0.0
    %5296 = vmatpush1.msra.mxu0 0.0
    %5297 = vmatprep.subr.mxu0 0.0
    %5298 = vmatpush1.msra.mxu0 0.0
    %5299 = vmatprep.subr.mxu0 0.0
    %5300 = vmatpush1.msra.mxu0 0.0
    %5301 = vmatprep.subr.mxu0 0.0
    %5302 = vmatpush1.msra.mxu0 0.0
    %5303 = vmatprep.subr.mxu0 0.0
    %5304 = vmatpush1.msra.mxu0 0.0
    %5305 = vmatprep.subr.mxu0 0.0
    %5306 = vmatpush1.msra.mxu0 0.0
    %5307 = vmatprep.subr.mxu0 0.0
    %5308 = vmatpush1.msra.mxu0 0.0
    %5309 = vmatprep.subr.mxu0 0.0
    %5310 = vmatpush1.msra.mxu0 0.0
    %5311 = vmatprep.subr.mxu0 0.0
    %5312 = vmatpush1.msra.mxu0 0.0
    %5313 = vmatprep.subr.mxu0 0.0
    %5314 = vmatpush1.msra.mxu0 0.0
    %5315 = vmatprep.subr.mxu0 0.0
    %5316 = vmatpush1.msra.mxu0 0.0
    %5317 = vmatprep.subr.mxu0 0.0
    %5318 = vmatpush1.msra.mxu0 0.0
    %5319 = vmatprep.subr.mxu0 0.0
    %5320 = vmatpush1.msra.mxu0 0.0
    %5321 = vmatprep.subr.mxu0 0.0
    %5322 = vmatpush1.msra.mxu0 0.0
    %5323 = vmatprep.mubr.f32.mxu0 0.0
    %5324 = vmatmul.mubr.f32.gmra.mrb[0].mxu0 %v5235
    %v5325 = vpop.f32.mrb[0].mxu0
    %v5326 = vadd.f32 %v5258, %v5325
    %v5327 = vpop.f32.mrb[0].mxu0
    %5328 = vdwg.mxu0
    %v5329 = vmax.f32 %v5326, 0.0
    %v5330 = vld [vmem:[%s6] sm:$0xff]
    %v5331 = vld [vmem:[%s6 + $0x8] sm:$0xff]
    %v5332 = vld [vmem:[%s6 + $0x10] sm:$0xff]
    %v5333 = vld [vmem:[%s6 + $0x18] sm:$0xff]
    %v5334 = vld [vmem:[%s6 + $0x20] sm:$0xff]
    %v5335 = vld [vmem:[%s6 + $0x28] sm:$0xff]
    %v5336 = vld [vmem:[%s6 + $0x30] sm:$0xff]
    %v5337 = vld [vmem:[%s6 + $0x38] sm:$0xff]
    %v5338 = vld [vmem:[%s4 + $0x2] sm:$0x1]
    %v5339 = vlaneseq
    %v5340 = vshrl.u32 %v5339, 7
    %v5341 = vsub.s32 0, %v5340
    %v5342 = vrot.slane %v5338, %v5341
    %vm5343 = vcmask 523264
    %v5345 = vsel %vm5343, %v5329, 0
    %5347 = vmatprep.subr.mxu0 0.0
    %5348 = vmatpush1.msra.mxu0 %v5330
    %5349 = vmatprep.subr.mxu0 0.0
    %5350 = vmatpush1.msra.mxu0 %v5331
    %5351 = vmatprep.subr.mxu0 0.0
    %5352 = vmatpush1.msra.mxu0 %v5332
    %5353 = vmatprep.subr.mxu0 0.0
    %5354 = vmatpush1.msra.mxu0 %v5333
    %5355 = vmatprep.subr.mxu0 0.0
    %5356 = vmatpush1.msra.mxu0 %v5334
    %5357 = vmatprep.subr.mxu0 0.0
    %5358 = vmatpush1.msra.mxu0 %v5335
    %5359 = vmatprep.subr.mxu0 0.0
    %5360 = vmatpush1.msra.mxu0 %v5336
    %5361 = vmatprep.subr.mxu0 0.0
    %5362 = vmatpush1.msra.mxu0 %v5337
    %5363 = vmatprep.subr.mxu0 0.0
    %5364 = vmatpush1.msra.mxu0 0.0
    %5365 = vmatprep.subr.mxu0 0.0
    %5366 = vmatpush1.msra.mxu0 0.0
    %5367 = vmatprep.subr.mxu0 0.0
    %5368 = vmatpush1.msra.mxu0 0.0
    %5369 = vmatprep.subr.mxu0 0.0
    %5370 = vmatpush1.msra.mxu0 0.0
    %5371 = vmatprep.subr.mxu0 0.0
    %5372 = vmatpush1.msra.mxu0 0.0
    %5373 = vmatprep.subr.mxu0 0.0
    %5374 = vmatpush1.msra.mxu0 0.0
    %5375 = vmatprep.subr.mxu0 0.0
    %5376 = vmatpush1.msra.mxu0 0.0
    %5377 = vmatprep.subr.mxu0 0.0
    %5378 = vmatpush1.msra.mxu0 0.0
    %5379 = vmatprep.subr.mxu0 0.0
    %5380 = vmatpush1.msra.mxu0 0.0
    %5381 = vmatprep.subr.mxu0 0.0
    %5382 = vmatpush1.msra.mxu0 0.0
    %5383 = vmatprep.subr.mxu0 0.0
    %5384 = vmatpush1.msra.mxu0 0.0
    %5385 = vmatprep.subr.mxu0 0.0
    %5386 = vmatpush1.msra.mxu0 0.0
    %5387 = vmatprep.subr.mxu0 0.0
    %5388 = vmatpush1.msra.mxu0 0.0
    %5389 = vmatprep.subr.mxu0 0.0
    %5390 = vmatpush1.msra.mxu0 0.0
    %5391 = vmatprep.subr.mxu0 0.0
    %5392 = vmatpush1.msra.mxu0 0.0
    %5393 = vmatprep.subr.mxu0 0.0
    %5394 = vmatpush1.msra.mxu0 0.0
    %5395 = vmatprep.subr.mxu0 0.0
    %5396 = vmatpush1.msra.mxu0 0.0
    %5397 = vmatprep.subr.mxu0 0.0
    %5398 = vmatpush1.msra.mxu0 0.0
    %5399 = vmatprep.subr.mxu0 0.0
    %5400 = vmatpush1.msra.mxu0 0.0
    %5401 = vmatprep.subr.mxu0 0.0
    %5402 = vmatpush1.msra.mxu0 0.0
    %5403 = vmatprep.subr.mxu0 0.0
    %5404 = vmatpush1.msra.mxu0 0.0
    %5405 = vmatprep.subr.mxu0 0.0
    %5406 = vmatpush1.msra.mxu0 0.0
    %5407 = vmatprep.subr.mxu0 0.0
    %5408 = vmatpush1.msra.mxu0 0.0
    %5409 = vmatprep.subr.mxu0 0.0
    %5410 = vmatpush1.msra.mxu0 0.0
    %5411 = vmatprep.mubr.f32.mxu0 0.0
    %5412 = vmatmul.mubr.f32.gmra.mrb[0].mxu0 %v5345
    %v5413 = vpop.f32.mrb[0].mxu0
    %v5414 = vadd.f32 %v5342, %v5413
    %v5415 = vpop.f32.mrb[0].mxu0
    %5416 = vdwg.mxu0
    %vm5417 = vcmask 9216
    %v5418 = vsel %vm5417, %v5414, -inf
    %5419 = vmax.xlane.f32.xlu0 %v5418
    %v5420 = vpop.xlane.xlu0 %5419
    %v5421 = vsub.f32 %v5414, %v5420
    %v5422 = vmul.f32 %v5421, 1.442695
    %v5423 = vpow.pop %v5422
    %v5424 = vsel %vm5417, %v5423, 0.0
    %5425 = vadd.xlane.f32.xlu0 %v5424
    %v5426 = vpop.xlane.xlu0 %5425
    %v5427 = vrcp.pop %v5426
    %v5428 = vmul.f32 %v5423, %v5427
    %5429 = vst.msk [vmem:[#allocation5] sm:$0x3] %vm5417, %v5428
    // Predicated region
    $region34: #{tpu_custom_call.1} parent=1 // pred_check
      _
    $region35: #{tpu_custom_call.1} parent=1 // pred_check_branch
      %5431 = sbr.rel (0) target = $region37
    $region36: #{tpu_custom_call.1} parent=1 // pred_region
      %s5433 = ssub.s32 32, 32
      %5434 = vsyncadd [#allocation4], %s5433
      %s5436 = sshll.u32 [#allocation5], 4
      %s5437 = int_to_ptr.vmem [resolvable:$true] %s5436
      %5439 = dma.vmem_to_hbm [thread:$0]  %s5437, 32, %s7, [#allocation4]
    $region37: #{tpu_custom_call.1} parent=1 // pred_fallthru
      _
    // Predicated region
    $region38: #{tpu_custom_call.1} parent=1 // pred_check
      _
    $region39: #{tpu_custom_call.1} parent=1 // pred_check_branch
      %5441 = sbr.rel (0) target = $region41
    $region40: #{tpu_custom_call.1} parent=1 // pred_region
      %5442 = dma.done [#allocation4], 32
    $region41: #{tpu_custom_call.1} parent=1 // pred_fallthru
      _
    %5443 = vsyncpa [#allocation3], 1
    %5444 = vsyncpa [#allocation4], 1

</llo_original>
